<compile_context>
chip_gen: v7x
topology: tpu7x:2x2x1
jax: 0.10.0
libtpu: 0.0.40
codegen_flags: <defaults>
</compile_context>

<pallas_src>
import functools

import jax
import jax.numpy as jnp
from jax import lax
from jax.experimental import pallas as pl
from jax.experimental.pallas import tpu as pltpu

N_EMBED = 384
NUM_HEADS = 6
HEAD_SIZE = N_EMBED // NUM_HEADS  # 64
BLOCK_SIZE = 256                  # causal-mask buffer size in the module (T <= 256)

_NEG_BIG = -1e30


# ----------------------------------------------------------------------------
# Fused kernel: Bb batch rows, all heads, output projection per grid step.
# ----------------------------------------------------------------------------
def _mha_fused_kernel(x_ref, wqkv_ref, wp_ref, bp_ref, o_ref,
                      *, num_heads, head_size):
    bb, t, c = x_ref.shape
    e = wp_ref.shape[1]                      # = num_heads * head_size

    # Fold the batch block into the matmul M dimension.
    x = x_ref[...].reshape(bb * t, c).astype(jnp.bfloat16)       # (Bb*T, C)
    wqkv = wqkv_ref[...]                                          # (C, 3E) bf16

    # Single full-width QKV projection (MXU, bf16 in / f32 acc). Scale is
    # already folded into the Wq columns of wqkv.
    qkv = jnp.dot(x, wqkv, preferred_element_type=jnp.float32)    # (Bb*T, 3E)
    qkv16 = qkv.astype(jnp.bfloat16)                              # cast once

    q = qkv16[:, 0 * e:1 * e].reshape(bb, t, e)                   # (Bb, T, E)
    k = qkv16[:, 1 * e:2 * e].reshape(bb, t, e)
    v = qkv16[:, 2 * e:3 * e].reshape(bb, t, e)

    # Causal mask built once, reused by every (batch-row, head).
    row = lax.broadcasted_iota(jnp.int32, (1, t, t), 1)
    col = lax.broadcasted_iota(jnp.int32, (1, t, t), 2)
    causal = col <= row                                           # (1, T, T)

    zs = []
    # Static unroll over heads only (num_heads = 6); batch rows are batched
    # inside the dot_generals.
    for h in range(num_heads):
        lo = h * head_size
        qh = q[:, :, lo:lo + head_size]                           # (Bb, T, HS) bf16
        kh = k[:, :, lo:lo + head_size]
        vh = v[:, :, lo:lo + head_size]

        # wei = q @ k^T  (scale already in Wq); batched over Bb, no explicit
        # transpose of k.
        wei = lax.dot_general(qh, kh, (((2,), (2,)), ((0,), (0,))),
                              preferred_element_type=jnp.float32)  # (Bb, T, T)
        wei = jnp.where(causal, wei, _NEG_BIG)

        # Numerically-stable softmax; normalize AFTER the P@V matmul so the
        # reciprocal-multiply touches (T, HS) instead of (T, T).
        m = jnp.max(wei, axis=-1, keepdims=True)
        p = jnp.exp(wei - m)
        denom = jnp.sum(p, axis=-1, keepdims=True)                # (Bb, T, 1)
        # TODO(synk): attention-weight dropout skipped (eval-mode identity).

        zh = lax.dot_general(p.astype(jnp.bfloat16), vh,
                             (((2,), (1,)), ((0,), (0,))),
                             preferred_element_type=jnp.float32)  # (Bb, T, HS)
        zh = zh * pl.reciprocal(denom, approx=True)
        zs.append(zh.astype(jnp.bfloat16))

    # concat(head outputs) -> single K=384 output projection + bias.
    z = jnp.concatenate(zs, axis=-1).reshape(bb * t, e)           # (Bb*T, E) bf16
    y = jnp.dot(z, wp_ref[...], preferred_element_type=jnp.float32)
    y = y + bp_ref[...].astype(jnp.float32)                       # (Bb*T, E)
    # TODO(synk): output dropout skipped (eval-mode identity).
    o_ref[...] = y.reshape(bb, t, e).astype(o_ref.dtype)


# ----------------------------------------------------------------------------
# Parameter prep (done ONCE at init — not on the forward path).
# ----------------------------------------------------------------------------
def prepare_params(wq, wk, wv, w_proj, b_proj):
    """Stack QKV weights, fold in the attention scale, cast to bf16."""
    c = wq.shape[0]
    scale = float(c) ** (-0.5)  # matches the PyTorch module: C ** (-0.5)
    wqkv = jnp.concatenate([wq * scale, wk, wv], axis=1).astype(jnp.bfloat16)
    wp = w_proj.astype(jnp.bfloat16)
    bp = jnp.reshape(b_proj, (1, -1)).astype(jnp.float32)
    return wqkv, wp, bp


def _pick_block_b(B, T):
    """Largest batch block <= 8 that divides B, keeps >= 2 grid steps (v7x's
    two TensorCores), and keeps reshapes sublane-clean."""
    if T % 8 != 0:
        return 1
    best = 1
    min_steps = min(2, B)
    for bb in range(1, min(8, B) + 1):
        if B % bb == 0 and (B // bb) >= min_steps:
            best = bb
    return best


def multi_head_forward(x, prepared_params):
    """x: (B, T, C) f32/bf16; prepared_params from prepare_params()."""
    wqkv, wp, bp = prepared_params
    B, T, C = x.shape
    E = wp.shape[1]
    bb = _pick_block_b(B, T)
    grid = (B // bb,)

    kernel = functools.partial(_mha_fused_kernel,
                               num_heads=NUM_HEADS, head_size=HEAD_SIZE)

    flops = (2 * B * T * C * 3 * E        # QKV projection
             + 4 * B * T * T * E          # QK^T + PV over all heads
             + 2 * B * T * E * E)         # output projection
    transcendentals = NUM_HEADS * B * T * T
    bytes_accessed = (B * T * C * x.dtype.itemsize        # x in
                      + B * T * E * x.dtype.itemsize      # out
                      + (C * 3 * E + E * E) * 2 + E * 4)  # weights + bias

    return pl.pallas_call(
        kernel,
        out_shape=jax.ShapeDtypeStruct((B, T, E), x.dtype),
        grid_spec=pltpu.PrefetchScalarGridSpec(
            num_scalar_prefetch=0,
            grid=grid,
            in_specs=[
                pl.BlockSpec((bb, T, C), lambda i: (i, 0, 0)),     # x block
                pl.BlockSpec((C, 3 * E), lambda i: (0, 0)),        # Wqkv (resident)
                pl.BlockSpec((E, E), lambda i: (0, 0)),            # W_proj (resident)
                pl.BlockSpec((1, E), lambda i: (0, 0)),            # b_proj
            ],
            out_specs=pl.BlockSpec((bb, T, E), lambda i: (i, 0, 0)),  # lane-dense
        ),
        compiler_params=pltpu.CompilerParams(
            dimension_semantics=("parallel",)),
        cost_estimate=pl.CostEstimate(flops=flops,
                                      transcendentals=transcendentals,
                                      bytes_accessed=bytes_accessed),
    )(x, wqkv, wp, bp)


# ----------------------------------------------------------------------------
# Pure-JAX reference (f32 end-to-end) for a correctness check.
# ----------------------------------------------------------------------------
def multi_head_reference(x, wq, wk, wv, w_proj, b_proj):
    B, T, C = x.shape
    scale = float(C) ** (-0.5)
    mask = jnp.tril(jnp.ones((T, T), bool))
    outs = []
    for h in range(NUM_HEADS):
        lo = h * HEAD_SIZE
        qh = x @ wq[:, lo:lo + HEAD_SIZE]
        kh = x @ wk[:, lo:lo + HEAD_SIZE]
        vh = x @ wv[:, lo:lo + HEAD_SIZE]
        wei = jnp.einsum('btd,bsd->bts', qh, kh) * scale
        wei = jnp.where(mask, wei, -jnp.inf)
        p = jax.nn.softmax(wei, axis=-1)
        outs.append(p @ vh)
    cat = jnp.concatenate(outs, axis=-1)
    return cat @ w_proj + b_proj


def init_params(key):
    kq, kk, kv, kp, kb = jax.random.split(key, 5)
    s = 0.02
    wq = s * jax.random.normal(kq, (N_EMBED, NUM_HEADS * HEAD_SIZE), jnp.float32)
    wk = s * jax.random.normal(kk, (N_EMBED, NUM_HEADS * HEAD_SIZE), jnp.float32)
    wv = s * jax.random.normal(kv, (N_EMBED, NUM_HEADS * HEAD_SIZE), jnp.float32)
    w_proj = s * jax.random.normal(kp, (N_EMBED, N_EMBED), jnp.float32)
    b_proj = s * jax.random.normal(kb, (1, N_EMBED), jnp.float32)
    return wq, wk, wv, w_proj, b_proj


if __name__ == "__main__":
    key = jax.random.PRNGKey(0)
    kx, kp = jax.random.split(key)

    # Small shapes: B=4, T=16 (<= block_size=256). block_b=2 -> grid=(2,), so
    # both the batch-folding path and the 2-parallel-step grid are exercised.
    B, T = 4, 16
    x = jax.random.normal(kx, (B, T, N_EMBED), jnp.float32)
    raw_params = init_params(kp)
    prepared = prepare_params(*raw_params)

    out = multi_head_forward(x, prepared)
    out = jax.block_until_ready(out)
    assert out.shape == (B, T, N_EMBED), out.shape
    assert bool(jnp.all(jnp.isfinite(out)))

    ref = multi_head_reference(x, *raw_params)
    max_err = float(jnp.max(jnp.abs(out - ref)))
    assert jnp.allclose(out, ref, rtol=5e-2, atol=2e-2), max_err

    print("KERNEL_OK")
</pallas_src>

<mosaic_0001>
module attributes {stable_mosaic.version = 11 : i64} {
  func.func @_mha_fused_kernel(%arg0: i32, %arg1: memref<2x16x384xf32, #tpu.memory_space<vmem>>, %arg2: memref<384x1152xbf16, #tpu.memory_space<vmem>>, %arg3: memref<384x384xbf16, #tpu.memory_space<vmem>>, %arg4: memref<1x384xf32, #tpu.memory_space<vmem>>, %arg5: memref<2x16x384xf32, #tpu.memory_space<vmem>>) attributes {dimension_semantics = [#tpu.dimension_semantics<parallel>], iteration_bounds = array<i64: 2>, scalar_prefetch = 0 : i64, scratch_operands = 0 : i64, tpu.core_type = #tpu.core_type<tc>, window_params = [{transform_indices = @transform_0, window_bounds = array<i64: 2, 16, 384>}, {pipeline_mode = #tpu.pipeline_mode<synchronous>, transform_indices = @transform_1, window_bounds = array<i64: 384, 1152>}, {pipeline_mode = #tpu.pipeline_mode<synchronous>, transform_indices = @transform_2, window_bounds = array<i64: 384, 384>}, {pipeline_mode = #tpu.pipeline_mode<synchronous>, transform_indices = @transform_3, window_bounds = array<i64: 1, 384>}, {transform_indices = @transform_4, window_bounds = array<i64: 2, 16, 384>}]} {
    %c0 = arith.constant 0 : index
    %c0_0 = arith.constant 0 : index
    %c0_1 = arith.constant 0 : index
    %0 = vector.load %arg1[%c0, %c0_0, %c0_1] : memref<2x16x384xf32, #tpu.memory_space<vmem>>, vector<2x16x384xf32>
    %1 = vector.shape_cast %0 : vector<2x16x384xf32> to vector<32x384xf32>
    %2 = arith.truncf %1 : vector<32x384xf32> to vector<32x384xbf16>
    %c0_2 = arith.constant 0 : index
    %c0_3 = arith.constant 0 : index
    %3 = vector.load %arg2[%c0_2, %c0_3] : memref<384x1152xbf16, #tpu.memory_space<vmem>>, vector<384x1152xbf16>
    %cst = arith.constant dense<0.000000e+00> : vector<32x1152xf32>
    %4 = tpu.matmul %2, %3, %cst {dimension_numbers = #tpu.dot_dimension_numbers<[1], [0], [0], [1], [0, 0, 1, 1], [], []>} : vector<32x384xbf16>, vector<384x1152xbf16>, vector<32x1152xf32> -> vector<32x1152xf32>
    %5 = arith.truncf %4 : vector<32x1152xf32> to vector<32x1152xbf16>
    %6 = vector.extract_strided_slice %5 {offsets = [0, 0], sizes = [32, 384], strides = [1, 1]} : vector<32x1152xbf16> to vector<32x384xbf16>
    %7 = vector.shape_cast %6 : vector<32x384xbf16> to vector<2x16x384xbf16>
    %8 = vector.extract_strided_slice %5 {offsets = [0, 384], sizes = [32, 384], strides = [1, 1]} : vector<32x1152xbf16> to vector<32x384xbf16>
    %9 = vector.shape_cast %8 : vector<32x384xbf16> to vector<2x16x384xbf16>
    %10 = vector.extract_strided_slice %5 {offsets = [0, 768], sizes = [32, 384], strides = [1, 1]} : vector<32x1152xbf16> to vector<32x384xbf16>
    %11 = vector.shape_cast %10 : vector<32x384xbf16> to vector<2x16x384xbf16>
    %12 = tpu.iota {dimensions = array<i32: 1>} : vector<1x16x16xi32>
    %13 = tpu.iota {dimensions = array<i32: 2>} : vector<1x16x16xi32>
    %14 = arith.cmpi sle, %13, %12 : vector<1x16x16xi32>
    %15 = vector.extract_strided_slice %7 {offsets = [0, 0, 0], sizes = [2, 16, 64], strides = [1, 1, 1]} : vector<2x16x384xbf16> to vector<2x16x64xbf16>
    %16 = vector.extract_strided_slice %9 {offsets = [0, 0, 0], sizes = [2, 16, 64], strides = [1, 1, 1]} : vector<2x16x384xbf16> to vector<2x16x64xbf16>
    %17 = vector.extract_strided_slice %11 {offsets = [0, 0, 0], sizes = [2, 16, 64], strides = [1, 1, 1]} : vector<2x16x384xbf16> to vector<2x16x64xbf16>
    %cst_4 = arith.constant dense<0.000000e+00> : vector<2x16x16xf32>
    %18 = tpu.matmul %15, %16, %cst_4 {dimension_numbers = #tpu.dot_dimension_numbers<[2], [2], [1], [1], [0, 0, 0, 1, 1, 1], [0], [0]>} : vector<2x16x64xbf16>, vector<2x16x64xbf16>, vector<2x16x16xf32> -> vector<2x16x16xf32>
    %cst_5 = arith.constant -1.000000e+30 : f32
    %19 = vector.shape_cast %14 : vector<1x16x16xi1> to vector<1x16x16xi1>
    %20 = vector.broadcast %19 : vector<1x16x16xi1> to vector<2x16x16xi1>
    %21 = vector.broadcast %cst_5 : f32 to vector<2x16x16xf32>
    %22 = arith.select %20, %18, %21 : vector<2x16x16xi1>, vector<2x16x16xf32>
    %cst_6 = arith.constant dense<0xFF800000> : vector<2x16xf32>
    %23 = vector.multi_reduction <maximumf>, %22, %cst_6 [2] : vector<2x16x16xf32> to vector<2x16xf32>
    %24 = vector.shape_cast %23 : vector<2x16xf32> to vector<2x16x1xf32>
    %25 = vector.broadcast %24 : vector<2x16x1xf32> to vector<2x16x16xf32>
    %26 = arith.subf %22, %25 : vector<2x16x16xf32>
    %27 = math.exp %26 : vector<2x16x16xf32>
    %cst_7 = arith.constant dense<0.000000e+00> : vector<2x16xf32>
    %28 = vector.multi_reduction <add>, %27, %cst_7 [2] : vector<2x16x16xf32> to vector<2x16xf32>
    %29 = vector.shape_cast %28 : vector<2x16xf32> to vector<2x16x1xf32>
    %30 = arith.truncf %27 : vector<2x16x16xf32> to vector<2x16x16xbf16>
    %cst_8 = arith.constant dense<0.000000e+00> : vector<2x16x64xf32>
    %31 = tpu.matmul %30, %17, %cst_8 {dimension_numbers = #tpu.dot_dimension_numbers<[2], [1], [1], [2], [0, 0, 0, 1, 1, 2], [0], [0]>} : vector<2x16x16xbf16>, vector<2x16x64xbf16>, vector<2x16x64xf32> -> vector<2x16x64xf32>
    %32 = tpu.reciprocal %29 {approx = true} : vector<2x16x1xf32> -> vector<2x16x1xf32>
    %33 = vector.broadcast %32 : vector<2x16x1xf32> to vector<2x16x64xf32>
    %34 = arith.mulf %31, %33 : vector<2x16x64xf32>
    %35 = arith.truncf %34 : vector<2x16x64xf32> to vector<2x16x64xbf16>
    %36 = vector.extract_strided_slice %7 {offsets = [0, 0, 64], sizes = [2, 16, 64], strides = [1, 1, 1]} : vector<2x16x384xbf16> to vector<2x16x64xbf16>
    %37 = vector.extract_strided_slice %9 {offsets = [0, 0, 64], sizes = [2, 16, 64], strides = [1, 1, 1]} : vector<2x16x384xbf16> to vector<2x16x64xbf16>
    %38 = vector.extract_strided_slice %11 {offsets = [0, 0, 64], sizes = [2, 16, 64], strides = [1, 1, 1]} : vector<2x16x384xbf16> to vector<2x16x64xbf16>
    %cst_9 = arith.constant dense<0.000000e+00> : vector<2x16x16xf32>
    %39 = tpu.matmul %36, %37, %cst_9 {dimension_numbers = #tpu.dot_dimension_numbers<[2], [2], [1], [1], [0, 0, 0, 1, 1, 1], [0], [0]>} : vector<2x16x64xbf16>, vector<2x16x64xbf16>, vector<2x16x16xf32> -> vector<2x16x16xf32>
    %cst_10 = arith.constant -1.000000e+30 : f32
    %40 = vector.shape_cast %14 : vector<1x16x16xi1> to vector<1x16x16xi1>
    %41 = vector.broadcast %40 : vector<1x16x16xi1> to vector<2x16x16xi1>
    %42 = vector.broadcast %cst_10 : f32 to vector<2x16x16xf32>
    %43 = arith.select %41, %39, %42 : vector<2x16x16xi1>, vector<2x16x16xf32>
    %cst_11 = arith.constant dense<0xFF800000> : vector<2x16xf32>
    %44 = vector.multi_reduction <maximumf>, %43, %cst_11 [2] : vector<2x16x16xf32> to vector<2x16xf32>
    %45 = vector.shape_cast %44 : vector<2x16xf32> to vector<2x16x1xf32>
    %46 = vector.broadcast %45 : vector<2x16x1xf32> to vector<2x16x16xf32>
    %47 = arith.subf %43, %46 : vector<2x16x16xf32>
    %48 = math.exp %47 : vector<2x16x16xf32>
    %cst_12 = arith.constant dense<0.000000e+00> : vector<2x16xf32>
    %49 = vector.multi_reduction <add>, %48, %cst_12 [2] : vector<2x16x16xf32> to vector<2x16xf32>
    %50 = vector.shape_cast %49 : vector<2x16xf32> to vector<2x16x1xf32>
    %51 = arith.truncf %48 : vector<2x16x16xf32> to vector<2x16x16xbf16>
    %cst_13 = arith.constant dense<0.000000e+00> : vector<2x16x64xf32>
    %52 = tpu.matmul %51, %38, %cst_13 {dimension_numbers = #tpu.dot_dimension_numbers<[2], [1], [1], [2], [0, 0, 0, 1, 1, 2], [0], [0]>} : vector<2x16x16xbf16>, vector<2x16x64xbf16>, vector<2x16x64xf32> -> vector<2x16x64xf32>
    %53 = tpu.reciprocal %50 {approx = true} : vector<2x16x1xf32> -> vector<2x16x1xf32>
    %54 = vector.broadcast %53 : vector<2x16x1xf32> to vector<2x16x64xf32>
    %55 = arith.mulf %52, %54 : vector<2x16x64xf32>
    %56 = arith.truncf %55 : vector<2x16x64xf32> to vector<2x16x64xbf16>
    %57 = vector.extract_strided_slice %7 {offsets = [0, 0, 128], sizes = [2, 16, 64], strides = [1, 1, 1]} : vector<2x16x384xbf16> to vector<2x16x64xbf16>
    %58 = vector.extract_strided_slice %9 {offsets = [0, 0, 128], sizes = [2, 16, 64], strides = [1, 1, 1]} : vector<2x16x384xbf16> to vector<2x16x64xbf16>
    %59 = vector.extract_strided_slice %11 {offsets = [0, 0, 128], sizes = [2, 16, 64], strides = [1, 1, 1]} : vector<2x16x384xbf16> to vector<2x16x64xbf16>
    %cst_14 = arith.constant dense<0.000000e+00> : vector<2x16x16xf32>
    %60 = tpu.matmul %57, %58, %cst_14 {dimension_numbers = #tpu.dot_dimension_numbers<[2], [2], [1], [1], [0, 0, 0, 1, 1, 1], [0], [0]>} : vector<2x16x64xbf16>, vector<2x16x64xbf16>, vector<2x16x16xf32> -> vector<2x16x16xf32>
    %cst_15 = arith.constant -1.000000e+30 : f32
    %61 = vector.shape_cast %14 : vector<1x16x16xi1> to vector<1x16x16xi1>
    %62 = vector.broadcast %61 : vector<1x16x16xi1> to vector<2x16x16xi1>
    %63 = vector.broadcast %cst_15 : f32 to vector<2x16x16xf32>
    %64 = arith.select %62, %60, %63 : vector<2x16x16xi1>, vector<2x16x16xf32>
    %cst_16 = arith.constant dense<0xFF800000> : vector<2x16xf32>
    %65 = vector.multi_reduction <maximumf>, %64, %cst_16 [2] : vector<2x16x16xf32> to vector<2x16xf32>
    %66 = vector.shape_cast %65 : vector<2x16xf32> to vector<2x16x1xf32>
    %67 = vector.broadcast %66 : vector<2x16x1xf32> to vector<2x16x16xf32>
    %68 = arith.subf %64, %67 : vector<2x16x16xf32>
    %69 = math.exp %68 : vector<2x16x16xf32>
    %cst_17 = arith.constant dense<0.000000e+00> : vector<2x16xf32>
    %70 = vector.multi_reduction <add>, %69, %cst_17 [2] : vector<2x16x16xf32> to vector<2x16xf32>
    %71 = vector.shape_cast %70 : vector<2x16xf32> to vector<2x16x1xf32>
    %72 = arith.truncf %69 : vector<2x16x16xf32> to vector<2x16x16xbf16>
    %cst_18 = arith.constant dense<0.000000e+00> : vector<2x16x64xf32>
    %73 = tpu.matmul %72, %59, %cst_18 {dimension_numbers = #tpu.dot_dimension_numbers<[2], [1], [1], [2], [0, 0, 0, 1, 1, 2], [0], [0]>} : vector<2x16x16xbf16>, vector<2x16x64xbf16>, vector<2x16x64xf32> -> vector<2x16x64xf32>
    %74 = tpu.reciprocal %71 {approx = true} : vector<2x16x1xf32> -> vector<2x16x1xf32>
    %75 = vector.broadcast %74 : vector<2x16x1xf32> to vector<2x16x64xf32>
    %76 = arith.mulf %73, %75 : vector<2x16x64xf32>
    %77 = arith.truncf %76 : vector<2x16x64xf32> to vector<2x16x64xbf16>
    %78 = vector.extract_strided_slice %7 {offsets = [0, 0, 192], sizes = [2, 16, 64], strides = [1, 1, 1]} : vector<2x16x384xbf16> to vector<2x16x64xbf16>
    %79 = vector.extract_strided_slice %9 {offsets = [0, 0, 192], sizes = [2, 16, 64], strides = [1, 1, 1]} : vector<2x16x384xbf16> to vector<2x16x64xbf16>
    %80 = vector.extract_strided_slice %11 {offsets = [0, 0, 192], sizes = [2, 16, 64], strides = [1, 1, 1]} : vector<2x16x384xbf16> to vector<2x16x64xbf16>
    %cst_19 = arith.constant dense<0.000000e+00> : vector<2x16x16xf32>
    %81 = tpu.matmul %78, %79, %cst_19 {dimension_numbers = #tpu.dot_dimension_numbers<[2], [2], [1], [1], [0, 0, 0, 1, 1, 1], [0], [0]>} : vector<2x16x64xbf16>, vector<2x16x64xbf16>, vector<2x16x16xf32> -> vector<2x16x16xf32>
    %cst_20 = arith.constant -1.000000e+30 : f32
    %82 = vector.shape_cast %14 : vector<1x16x16xi1> to vector<1x16x16xi1>
    %83 = vector.broadcast %82 : vector<1x16x16xi1> to vector<2x16x16xi1>
    %84 = vector.broadcast %cst_20 : f32 to vector<2x16x16xf32>
    %85 = arith.select %83, %81, %84 : vector<2x16x16xi1>, vector<2x16x16xf32>
    %cst_21 = arith.constant dense<0xFF800000> : vector<2x16xf32>
    %86 = vector.multi_reduction <maximumf>, %85, %cst_21 [2] : vector<2x16x16xf32> to vector<2x16xf32>
    %87 = vector.shape_cast %86 : vector<2x16xf32> to vector<2x16x1xf32>
    %88 = vector.broadcast %87 : vector<2x16x1xf32> to vector<2x16x16xf32>
    %89 = arith.subf %85, %88 : vector<2x16x16xf32>
    %90 = math.exp %89 : vector<2x16x16xf32>
    %cst_22 = arith.constant dense<0.000000e+00> : vector<2x16xf32>
    %91 = vector.multi_reduction <add>, %90, %cst_22 [2] : vector<2x16x16xf32> to vector<2x16xf32>
    %92 = vector.shape_cast %91 : vector<2x16xf32> to vector<2x16x1xf32>
    %93 = arith.truncf %90 : vector<2x16x16xf32> to vector<2x16x16xbf16>
    %cst_23 = arith.constant dense<0.000000e+00> : vector<2x16x64xf32>
    %94 = tpu.matmul %93, %80, %cst_23 {dimension_numbers = #tpu.dot_dimension_numbers<[2], [1], [1], [2], [0, 0, 0, 1, 1, 2], [0], [0]>} : vector<2x16x16xbf16>, vector<2x16x64xbf16>, vector<2x16x64xf32> -> vector<2x16x64xf32>
    %95 = tpu.reciprocal %92 {approx = true} : vector<2x16x1xf32> -> vector<2x16x1xf32>
    %96 = vector.broadcast %95 : vector<2x16x1xf32> to vector<2x16x64xf32>
    %97 = arith.mulf %94, %96 : vector<2x16x64xf32>
    %98 = arith.truncf %97 : vector<2x16x64xf32> to vector<2x16x64xbf16>
    %99 = vector.extract_strided_slice %7 {offsets = [0, 0, 256], sizes = [2, 16, 64], strides = [1, 1, 1]} : vector<2x16x384xbf16> to vector<2x16x64xbf16>
    %100 = vector.extract_strided_slice %9 {offsets = [0, 0, 256], sizes = [2, 16, 64], strides = [1, 1, 1]} : vector<2x16x384xbf16> to vector<2x16x64xbf16>
    %101 = vector.extract_strided_slice %11 {offsets = [0, 0, 256], sizes = [2, 16, 64], strides = [1, 1, 1]} : vector<2x16x384xbf16> to vector<2x16x64xbf16>
    %cst_24 = arith.constant dense<0.000000e+00> : vector<2x16x16xf32>
    %102 = tpu.matmul %99, %100, %cst_24 {dimension_numbers = #tpu.dot_dimension_numbers<[2], [2], [1], [1], [0, 0, 0, 1, 1, 1], [0], [0]>} : vector<2x16x64xbf16>, vector<2x16x64xbf16>, vector<2x16x16xf32> -> vector<2x16x16xf32>
    %cst_25 = arith.constant -1.000000e+30 : f32
    %103 = vector.shape_cast %14 : vector<1x16x16xi1> to vector<1x16x16xi1>
    %104 = vector.broadcast %103 : vector<1x16x16xi1> to vector<2x16x16xi1>
    %105 = vector.broadcast %cst_25 : f32 to vector<2x16x16xf32>
    %106 = arith.select %104, %102, %105 : vector<2x16x16xi1>, vector<2x16x16xf32>
    %cst_26 = arith.constant dense<0xFF800000> : vector<2x16xf32>
    %107 = vector.multi_reduction <maximumf>, %106, %cst_26 [2] : vector<2x16x16xf32> to vector<2x16xf32>
    %108 = vector.shape_cast %107 : vector<2x16xf32> to vector<2x16x1xf32>
    %109 = vector.broadcast %108 : vector<2x16x1xf32> to vector<2x16x16xf32>
    %110 = arith.subf %106, %109 : vector<2x16x16xf32>
    %111 = math.exp %110 : vector<2x16x16xf32>
    %cst_27 = arith.constant dense<0.000000e+00> : vector<2x16xf32>
    %112 = vector.multi_reduction <add>, %111, %cst_27 [2] : vector<2x16x16xf32> to vector<2x16xf32>
    %113 = vector.shape_cast %112 : vector<2x16xf32> to vector<2x16x1xf32>
    %114 = arith.truncf %111 : vector<2x16x16xf32> to vector<2x16x16xbf16>
    %cst_28 = arith.constant dense<0.000000e+00> : vector<2x16x64xf32>
    %115 = tpu.matmul %114, %101, %cst_28 {dimension_numbers = #tpu.dot_dimension_numbers<[2], [1], [1], [2], [0, 0, 0, 1, 1, 2], [0], [0]>} : vector<2x16x16xbf16>, vector<2x16x64xbf16>, vector<2x16x64xf32> -> vector<2x16x64xf32>
    %116 = tpu.reciprocal %113 {approx = true} : vector<2x16x1xf32> -> vector<2x16x1xf32>
    %117 = vector.broadcast %116 : vector<2x16x1xf32> to vector<2x16x64xf32>
    %118 = arith.mulf %115, %117 : vector<2x16x64xf32>
    %119 = arith.truncf %118 : vector<2x16x64xf32> to vector<2x16x64xbf16>
    %120 = vector.extract_strided_slice %7 {offsets = [0, 0, 320], sizes = [2, 16, 64], strides = [1, 1, 1]} : vector<2x16x384xbf16> to vector<2x16x64xbf16>
    %121 = vector.extract_strided_slice %9 {offsets = [0, 0, 320], sizes = [2, 16, 64], strides = [1, 1, 1]} : vector<2x16x384xbf16> to vector<2x16x64xbf16>
    %122 = vector.extract_strided_slice %11 {offsets = [0, 0, 320], sizes = [2, 16, 64], strides = [1, 1, 1]} : vector<2x16x384xbf16> to vector<2x16x64xbf16>
    %cst_29 = arith.constant dense<0.000000e+00> : vector<2x16x16xf32>
    %123 = tpu.matmul %120, %121, %cst_29 {dimension_numbers = #tpu.dot_dimension_numbers<[2], [2], [1], [1], [0, 0, 0, 1, 1, 1], [0], [0]>} : vector<2x16x64xbf16>, vector<2x16x64xbf16>, vector<2x16x16xf32> -> vector<2x16x16xf32>
    %cst_30 = arith.constant -1.000000e+30 : f32
    %124 = vector.shape_cast %14 : vector<1x16x16xi1> to vector<1x16x16xi1>
    %125 = vector.broadcast %124 : vector<1x16x16xi1> to vector<2x16x16xi1>
    %126 = vector.broadcast %cst_30 : f32 to vector<2x16x16xf32>
    %127 = arith.select %125, %123, %126 : vector<2x16x16xi1>, vector<2x16x16xf32>
    %cst_31 = arith.constant dense<0xFF800000> : vector<2x16xf32>
    %128 = vector.multi_reduction <maximumf>, %127, %cst_31 [2] : vector<2x16x16xf32> to vector<2x16xf32>
    %129 = vector.shape_cast %128 : vector<2x16xf32> to vector<2x16x1xf32>
    %130 = vector.broadcast %129 : vector<2x16x1xf32> to vector<2x16x16xf32>
    %131 = arith.subf %127, %130 : vector<2x16x16xf32>
    %132 = math.exp %131 : vector<2x16x16xf32>
    %cst_32 = arith.constant dense<0.000000e+00> : vector<2x16xf32>
    %133 = vector.multi_reduction <add>, %132, %cst_32 [2] : vector<2x16x16xf32> to vector<2x16xf32>
    %134 = vector.shape_cast %133 : vector<2x16xf32> to vector<2x16x1xf32>
    %135 = arith.truncf %132 : vector<2x16x16xf32> to vector<2x16x16xbf16>
    %cst_33 = arith.constant dense<0.000000e+00> : vector<2x16x64xf32>
    %136 = tpu.matmul %135, %122, %cst_33 {dimension_numbers = #tpu.dot_dimension_numbers<[2], [1], [1], [2], [0, 0, 0, 1, 1, 2], [0], [0]>} : vector<2x16x16xbf16>, vector<2x16x64xbf16>, vector<2x16x64xf32> -> vector<2x16x64xf32>
    %137 = tpu.reciprocal %134 {approx = true} : vector<2x16x1xf32> -> vector<2x16x1xf32>
    %138 = vector.broadcast %137 : vector<2x16x1xf32> to vector<2x16x64xf32>
    %139 = arith.mulf %136, %138 : vector<2x16x64xf32>
    %140 = arith.truncf %139 : vector<2x16x64xf32> to vector<2x16x64xbf16>
    %141 = tpu.concatenate %35, %56, %77, %98, %119, %140 in 2 : vector<2x16x64xbf16>, vector<2x16x64xbf16>, vector<2x16x64xbf16>, vector<2x16x64xbf16>, vector<2x16x64xbf16>, vector<2x16x64xbf16> -> vector<2x16x384xbf16>
    %142 = vector.shape_cast %141 : vector<2x16x384xbf16> to vector<32x384xbf16>
    %c0_34 = arith.constant 0 : index
    %c0_35 = arith.constant 0 : index
    %143 = vector.load %arg3[%c0_34, %c0_35] : memref<384x384xbf16, #tpu.memory_space<vmem>>, vector<384x384xbf16>
    %cst_36 = arith.constant dense<0.000000e+00> : vector<32x384xf32>
    %144 = tpu.matmul %142, %143, %cst_36 {dimension_numbers = #tpu.dot_dimension_numbers<[1], [0], [0], [1], [0, 0, 1, 1], [], []>} : vector<32x384xbf16>, vector<384x384xbf16>, vector<32x384xf32> -> vector<32x384xf32>
    %c0_37 = arith.constant 0 : index
    %c0_38 = arith.constant 0 : index
    %145 = vector.load %arg4[%c0_37, %c0_38] : memref<1x384xf32, #tpu.memory_space<vmem>>, vector<1x384xf32>
    %146 = vector.broadcast %145 : vector<1x384xf32> to vector<32x384xf32>
    %147 = arith.addf %144, %146 : vector<32x384xf32>
    %148 = vector.shape_cast %147 : vector<32x384xf32> to vector<2x16x384xf32>
    %c0_39 = arith.constant 0 : index
    %c0_40 = arith.constant 0 : index
    %c0_41 = arith.constant 0 : index
    %149 = vector.load %arg5[%c0_39, %c0_40, %c0_41] : memref<2x16x384xf32, #tpu.memory_space<vmem>>, vector<2x16x384xf32>
    tpu.vector_store %arg5[%c0_39, %c0_40, %c0_41], %148 {strides = array<i32>} : memref<2x16x384xf32, #tpu.memory_space<vmem>>, vector<2x16x384xf32>,
    return
  }
  func.func @transform_0(%arg0: i32) -> (i32, i32, i32) {
    %c0_i32 = arith.constant 0 : i32
    %c0_i32_0 = arith.constant 0 : i32
    %c0_i32_1 = arith.constant 0 : i32
    return %arg0, %c0_i32, %c0_i32_0 : i32, i32, i32
  }
  func.func @transform_1(%arg0: i32) -> (i32, i32) {
    %c0_i32 = arith.constant 0 : i32
    %c0_i32_0 = arith.constant 0 : i32
    %c0_i32_1 = arith.constant 0 : i32
    return %c0_i32, %c0_i32_0 : i32, i32
  }
  func.func @transform_2(%arg0: i32) -> (i32, i32) {
    %c0_i32 = arith.constant 0 : i32
    %c0_i32_0 = arith.constant 0 : i32
    %c0_i32_1 = arith.constant 0 : i32
    return %c0_i32, %c0_i32_0 : i32, i32
  }
  func.func @transform_3(%arg0: i32) -> (i32, i32) {
    %c0_i32 = arith.constant 0 : i32
    %c0_i32_0 = arith.constant 0 : i32
    %c0_i32_1 = arith.constant 0 : i32
    return %c0_i32, %c0_i32_0 : i32, i32
  }
  func.func @transform_4(%arg0: i32) -> (i32, i32, i32) {
    %c0_i32 = arith.constant 0 : i32
    %c0_i32_0 = arith.constant 0 : i32
    %c0_i32_1 = arith.constant 0 : i32
    return %arg0, %c0_i32, %c0_i32_0 : i32, i32, i32
  }
}

</mosaic_0001>

<llo_original>
// kernel: tpu_custom_call.1
$region0: #{tpu_custom_call.1}
  #allocation0 [shape = 'u32[]', space=smem, size = 0x4, offset = 0x4, fixed_abs, tag = 'smem constant byte address 0x4 - core index']
  #allocation1 [shape = 'u32[144,128]{1,0:T(1,128)}', space=vmem, size = 0x12000, scoped, tag = 'internal scratch']
  %s0 = inlined_call_operand.hbm [shape: f32[4,16,384], index: 0, kind: input, shape index: {}]
  %s1 = inlined_call_operand.hbm [shape: bf16[384,1152], index: 1, kind: input, shape index: {}]
  %s2 = inlined_call_operand.hbm [shape: bf16[384,384], index: 2, kind: input, shape index: {}]
  %s3 = inlined_call_operand.vmem [shape: f32[1,384], index: 3, kind: input, shape index: {}]
  %s4 = inlined_call_operand.hbm [shape: f32[4,16,384], index: 4, kind: output, shape index: {}]
  %s5 = sld [smem:[#allocation0]]
  $region61: #{tpu_custom_call.1} parent=0
    _
  %s7 = ssub.s32 1, %s5
  %s8 = scalar_select 0, %s7, %s5
  $region1: #{tpu_custom_call.1} parent=0
    #allocation2 [shape = 'u8[98304]{0}', space=vmem, size = 0x18000, scoped, tag = 'input window, operand 0']
    #allocation3 [shape = 's32[2]{0}', space=sflag, size = 0x8, scoped, tag = 'scoped memory for tpu_custom_call.1']
    #allocation4 [shape = 's32[2]{0}', space=sflag, size = 0x8, scoped, tag = 'scoped memory for tpu_custom_call.1']
    #allocation5 [shape = 'u8[884736]{0}', space=vmem, size = 0xd8000, scoped, tag = 'input window, operand 1, single buffered']
    #allocation6 [shape = 's32[1]{0}', space=sflag, size = 0x4, scoped, tag = 'scoped memory for tpu_custom_call.1']
    #allocation7 [shape = 'u8[294912]{0}', space=vmem, size = 0x48000, scoped, tag = 'input window, operand 2, single buffered']
    #allocation8 [shape = 'u8[98304]{0}', space=vmem, size = 0x18000, scoped, tag = 'output window, operand 0']
    %9 = vsyncpa [#allocation3], 0
    %s10 = scalar_lea.sflag [#allocation3], 1
    %11 = vsyncpa %s10, 0
    %12 = vsyncpa [#allocation6], 0
    %13 = vsyncpa [#allocation4], 0
    %s14 = scalar_lea.sflag [#allocation4], 1
    %15 = vsyncpa %s14, 0
    loop: start=0, step=1, limit=4
    $region2: #{tpu_custom_call.1} parent=1 // loop_pre_header
      _
    $region3: #{tpu_custom_call.1} parent=1 // loop_header
      %s17 = sphi 0, %s21
      %p18 = scmp.ge.s32.totalorder %s17, 4
      %s27 = sphi 0, %s29
      %s30 = sphi 0, %s27
      %s31 = sphi 0, %s30
      %s47 = sphi 0, %s31
      %s51 = sphi 0, %s51
      %s53 = sphi 0, %s51
      %s54 = sphi 0, %s53
      %s68 = sphi 0, %s54
      %s72 = sphi 0, %s72
      %s74 = sphi 0, %s72
      %s75 = sphi 0, %s74
      %s89 = sphi 0, %s75
      %s93 = sphi 0, %s93
      %s95 = sphi 0, %s93
      %s96 = sphi 0, %s95
      %s110 = sphi 0, %s96
      %s116 = sphi 0, %s118
      %s119 = sphi 0, %s116
      %s120 = sphi 0, %s119
      %s136 = sphi 0, %s120
    $region4: #{tpu_custom_call.1} parent=1 // loop_header_branch
      %20 = sbr.rel (%p18) target = $region8
    $region5: #{tpu_custom_call.1} parent=1 // loop_body
      %s22 = ssub.s32 %s17, 1
      %s23 = ssub.s32 %s17, 2
      %s24 = sadd.s32 %s17, 1
      %s25 = ssub.s32 %s17, %s24
      %p26 = scmp.eq.s32.totalorder %s25, 0
      %s28 = sadd.s32 %s27, 1
      %s29 = scalar_select %p26, %s27, %s28
      %p32 = pneg %p26
      %p33 = scmp.eq.s32.totalorder %s17, 1
      %p34 = por %p32, %p33
      %p35 = scmp.ne.s32.totalorder %s27, %s30
      %p36 = scmp.eq.s32.totalorder %s17, 0
      %p37 = por %p35, %p36
      %p38 = scmp.ne.s32.totalorder %s27, %s30
      %p39 = scmp.eq.s32.totalorder %s22, 1
      %p40 = por %p38, %p39
      %p41 = scmp.ne.s32.totalorder %s30, %s31
      %p42 = scmp.eq.s32.totalorder %s22, 0
      %p43 = por %p41, %p42
      %p44 = scmp.ne.s32.totalorder %s30, %s31
      %p45 = scmp.eq.s32.totalorder %s23, 1
      %p46 = por %p44, %p45
      %p48 = scmp.ne.s32.totalorder %s31, %s47
      %p49 = scmp.eq.s32.totalorder %s23, 0
      %p50 = por %p48, %p49
      %s52 = sadd.s32 %s51, 1
      %p55 = scmp.eq.s32.totalorder %s17, 1
      %p56 = scmp.ne.s32.totalorder %s51, %s53
      %p57 = scmp.eq.s32.totalorder %s17, 0
      %p58 = por %p56, %p57
      %p59 = scmp.ne.s32.totalorder %s51, %s53
      %p60 = scmp.eq.s32.totalorder %s22, 1
      %p61 = por %p59, %p60
      %p62 = scmp.ne.s32.totalorder %s53, %s54
      %p63 = scmp.eq.s32.totalorder %s22, 0
      %p64 = por %p62, %p63
      %p65 = scmp.ne.s32.totalorder %s53, %s54
      %p66 = scmp.eq.s32.totalorder %s23, 1
      %p67 = por %p65, %p66
      %p69 = scmp.ne.s32.totalorder %s54, %s68
      %p70 = scmp.eq.s32.totalorder %s23, 0
      %p71 = por %p69, %p70
      %s73 = sadd.s32 %s72, 1
      %p76 = scmp.eq.s32.totalorder %s17, 1
      %p77 = scmp.ne.s32.totalorder %s72, %s74
      %p78 = scmp.eq.s32.totalorder %s17, 0
      %p79 = por %p77, %p78
      %p80 = scmp.ne.s32.totalorder %s72, %s74
      %p81 = scmp.eq.s32.totalorder %s22, 1
      %p82 = por %p80, %p81
      %p83 = scmp.ne.s32.totalorder %s74, %s75
      %p84 = scmp.eq.s32.totalorder %s22, 0
      %p85 = por %p83, %p84
      %p86 = scmp.ne.s32.totalorder %s74, %s75
      %p87 = scmp.eq.s32.totalorder %s23, 1
      %p88 = por %p86, %p87
      %p90 = scmp.ne.s32.totalorder %s75, %s89
      %p91 = scmp.eq.s32.totalorder %s23, 0
      %p92 = por %p90, %p91
      %s94 = sadd.s32 %s93, 1
      %p97 = scmp.eq.s32.totalorder %s17, 1
      %p98 = scmp.ne.s32.totalorder %s93, %s95
      %p99 = scmp.eq.s32.totalorder %s17, 0
      %p100 = por %p98, %p99
      %p101 = scmp.ne.s32.totalorder %s93, %s95
      %p102 = scmp.eq.s32.totalorder %s22, 1
      %p103 = por %p101, %p102
      %p104 = scmp.ne.s32.totalorder %s95, %s96
      %p105 = scmp.eq.s32.totalorder %s22, 0
      %p106 = por %p104, %p105
      %p107 = scmp.ne.s32.totalorder %s95, %s96
      %p108 = scmp.eq.s32.totalorder %s23, 1
      %p109 = por %p107, %p108
      %p111 = scmp.ne.s32.totalorder %s96, %s110
      %p112 = scmp.eq.s32.totalorder %s23, 0
      %p113 = por %p111, %p112
      %s114 = ssub.s32 %s17, %s24
      %p115 = scmp.eq.s32.totalorder %s114, 0
      %s117 = sadd.s32 %s116, 1
      %s118 = scalar_select %p115, %s116, %s117
      %p121 = pneg %p115
      %p122 = scmp.eq.s32.totalorder %s17, 1
      %p123 = por %p121, %p122
      %p124 = scmp.ne.s32.totalorder %s116, %s119
      %p125 = scmp.eq.s32.totalorder %s17, 0
      %p126 = por %p124, %p125
      %p127 = scmp.ne.s32.totalorder %s116, %s119
      %p128 = scmp.eq.s32.totalorder %s22, 1
      %p129 = por %p127, %p128
      %p130 = scmp.ne.s32.totalorder %s119, %s120
      %p131 = scmp.eq.s32.totalorder %s22, 0
      %p132 = por %p130, %p131
      %p133 = scmp.ne.s32.totalorder %s119, %s120
      %p134 = scmp.eq.s32.totalorder %s23, 1
      %p135 = por %p133, %p134
      %p137 = scmp.ne.s32.totalorder %s120, %s136
      %p138 = scmp.eq.s32.totalorder %s23, 0
      %p139 = por %p137, %p138
      %p140 = scmp.le.s32.totalorder 1, %s17
      %p141 = scmp.lt.s32.totalorder %s17, 3
      %p142 = pnand %p140, %p141
      %p143 = pneg %p142
      // Predicated region
      $region9: #{tpu_custom_call.1} parent=5 // pred_check
        _
      $region10: #{tpu_custom_call.1} parent=5 // pred_check_branch
        %145 = sbr.rel (%p142) target = $region12
      $region11: #{tpu_custom_call.1} parent=5 // pred_region
        %s146 = ssub.s32 %s17, 1
        // Predicated region
        $region13: #{tpu_custom_call.1} parent=11 // pred_check
          %p147 = pneg %p64
        $region14: #{tpu_custom_call.1} parent=11 // pred_check_branch
          %149 = sbr.rel (%p147) target = $region16
        $region15: #{tpu_custom_call.1} parent=11 // pred_region
          %s151 = ssub.s32 27648, 27648
          %152 = vsyncadd [#allocation6], %s151
          %s153 = sshll.u32 [#allocation5], 4
          %s154 = int_to_ptr.vmem [resolvable:$true] %s153
          %159 = dma.hbm_to_vmem [thread:$0]  %s1, 27648, %s154, [#allocation6], 576, 576, 36
        $region16: #{tpu_custom_call.1} parent=11 // pred_fallthru
          _
        // Predicated region
        $region17: #{tpu_custom_call.1} parent=11 // pred_check
          %p160 = pneg %p85
        $region18: #{tpu_custom_call.1} parent=11 // pred_check_branch
          %162 = sbr.rel (%p160) target = $region20
        $region19: #{tpu_custom_call.1} parent=11 // pred_region
          %s164 = ssub.s32 9216, 9216
          %165 = vsyncadd [#allocation6], %s164
          %s166 = sshll.u32 [#allocation7], 4
          %s167 = int_to_ptr.vmem [resolvable:$true] %s166
          %172 = dma.hbm_to_vmem [thread:$0]  %s2, 9216, %s167, [#allocation6], 192, 192, 12
        $region20: #{tpu_custom_call.1} parent=11 // pred_fallthru
          _
        // Predicated region
        $region21: #{tpu_custom_call.1} parent=11 // pred_check
          %p173 = pneg %p106
        $region22: #{tpu_custom_call.1} parent=11 // pred_check_branch
          %175 = sbr.rel (%p173) target = $region24
        $region23: #{tpu_custom_call.1} parent=11 // pred_region
          _
        $region24: #{tpu_custom_call.1} parent=11 // pred_fallthru
          _
      $region12: #{tpu_custom_call.1} parent=5 // pred_fallthru
        _
      %p176 = scmp.lt.s32.totalorder %s17, 2
      // Predicated region
      $region25: #{tpu_custom_call.1} parent=5 // pred_check
        %p177 = pneg %p176
      $region26: #{tpu_custom_call.1} parent=5 // pred_check_branch
        %179 = sbr.rel (%p177) target = $region28
      $region27: #{tpu_custom_call.1} parent=5 // pred_region
        // Predicated region
        $region29: #{tpu_custom_call.1} parent=27 // pred_check
          %p180 = pneg %p37
        $region30: #{tpu_custom_call.1} parent=27 // pred_check_branch
          %182 = sbr.rel (%p180) target = $region32
        $region31: #{tpu_custom_call.1} parent=27 // pred_region
          %s183 = sand.u32 %s27, 1
          %s184 = scalar_lea.sflag [#allocation3], %s183
          %s185 = sand.u32 %s27, 1
          %s186 = smul.addr %s185, 96
          %s187 = scalar_lea.vmem [#allocation2], %s186
          %s188 = smul.u32 2, %s17
          %s190 = ssub.s32 1536, 1536
          %191 = vsyncadd %s184, %s190
          %s192 = smul.addr %s188, 6
          %s193 = smul.addr %s192, 128
          %s194 = scalar_lea.hbm %s0, %s193
          %s195 = sshll.u32 %s187, 4
          %s196 = int_to_ptr.vmem [resolvable:$true] %s195
          %201 = dma.hbm_to_vmem [thread:$0]  %s194, 1536, %s196, %s184, 384, 384, 24
        $region32: #{tpu_custom_call.1} parent=27 // pred_fallthru
          _
      $region28: #{tpu_custom_call.1} parent=5 // pred_fallthru
        _
      %p202 = scmp.le.s32.totalorder 1, %s17
      %p203 = scmp.lt.s32.totalorder %s17, 3
      %p204 = pnand %p202, %p203
      %p205 = pneg %p204
      // Predicated region
      $region33: #{tpu_custom_call.1} parent=5 // pred_check
        _
      $region34: #{tpu_custom_call.1} parent=5 // pred_check_branch
        %207 = sbr.rel (%p204) target = $region36
      $region35: #{tpu_custom_call.1} parent=5 // pred_region
        %s208 = ssub.s32 %s17, 1
        %s209 = sand.u32 %s30, 1
        %s210 = scalar_lea.sflag [#allocation3], %s209
        %s211 = sand.u32 %s30, 1
        %s212 = smul.addr %s211, 96
        %s213 = scalar_lea.vmem [#allocation2], %s212
        // Predicated region
        $region37: #{tpu_custom_call.1} parent=35 // pred_check
          %p214 = pneg %p43
        $region38: #{tpu_custom_call.1} parent=35 // pred_check_branch
          %216 = sbr.rel (%p214) target = $region40
        $region39: #{tpu_custom_call.1} parent=35 // pred_region
          %217 = dma.done %s210, 1536
        $region40: #{tpu_custom_call.1} parent=35 // pred_fallthru
          _
        // Predicated region
        $region41: #{tpu_custom_call.1} parent=35 // pred_check
          %p218 = pneg %p64
        $region42: #{tpu_custom_call.1} parent=35 // pred_check_branch
          %220 = sbr.rel (%p218) target = $region44
        $region43: #{tpu_custom_call.1} parent=35 // pred_region
          %221 = dma.done [#allocation6], 27648
        $region44: #{tpu_custom_call.1} parent=35 // pred_fallthru
          _
        // Predicated region
        $region45: #{tpu_custom_call.1} parent=35 // pred_check
          %p222 = pneg %p85
        $region46: #{tpu_custom_call.1} parent=35 // pred_check_branch
          %224 = sbr.rel (%p222) target = $region48
        $region47: #{tpu_custom_call.1} parent=35 // pred_region
          %225 = dma.done [#allocation6], 9216
        $region48: #{tpu_custom_call.1} parent=35 // pred_fallthru
          _
        %s226 = sand.u32 %s30, 1
        %s227 = scalar_lea.sflag [#allocation3], %s226
        %s228 = sand.u32 %s30, 1
        %s229 = smul.addr %s228, 96
        %s230 = scalar_lea.vmem [#allocation2], %s229
        %p231 = pneg %p43
        %p232 = pneg %p40
        %p233 = pneg %p64
        %p234 = pneg %p61
        %p235 = pneg %p85
        %p236 = pneg %p82
        %p237 = pneg %p106
        %p238 = pneg %p103
        %p239 = pneg %p132
        %p240 = pneg %p129
        %s241 = sand.u32 %s119, 1
        %s242 = scalar_lea.sflag [#allocation4], %s241
        %s243 = sand.u32 %s119, 1
        %s244 = smul.addr %s243, 96
        %s245 = scalar_lea.vmem [#allocation8], %s244
        %s246 = smul.u32 2, %s22
        %s247 = smul.u32 2, %s22
        %v249 = vld [vmem:[%s213] sm:$0xff]
        %v250 = vld [vmem:[%s213 + $0x8] sm:$0xff]
        %v251 = vld [vmem:[%s213 + $0x10] sm:$0xff]
        %v252 = vld [vmem:[%s213 + $0x18] sm:$0xff]
        %v253 = vld [vmem:[%s213 + $0x20] sm:$0xff]
        %v254 = vld [vmem:[%s213 + $0x28] sm:$0xff]
        %v255 = vld [vmem:[%s213 + $0x30] sm:$0xff]
        %v256 = vld [vmem:[%s213 + $0x38] sm:$0xff]
        %v257 = vld [vmem:[%s213 + $0x40] sm:$0xff]
        %v258 = vld [vmem:[%s213 + $0x48] sm:$0xff]
        %v259 = vld [vmem:[%s213 + $0x50] sm:$0xff]
        %v260 = vld [vmem:[%s213 + $0x58] sm:$0xff]
        %v261 = vpack.c.bf16 %v252, %v249
        %v262 = vpack.c.bf16 %v253, %v250
        %v263 = vpack.c.bf16 %v254, %v251
        %v264 = vpack.c.bf16 %v258, %v255
        %v265 = vpack.c.bf16 %v259, %v256
        %v266 = vpack.c.bf16 %v260, %v257
        %v267 = vld [vmem:[#allocation5] sm:$0xff]
        %v268 = vld [vmem:[#allocation5 + $0x8] sm:$0xff]
        %v269 = vld [vmem:[#allocation5 + $0x10] sm:$0xff]
        %v270 = vld [vmem:[#allocation5 + $0x18] sm:$0xff]
        %v271 = vld [vmem:[#allocation5 + $0x20] sm:$0xf]
        %v272 = vld [vmem:[#allocation5 + $0x24] sm:$0xff]
        %v273 = vld [vmem:[#allocation5 + $0x2c] sm:$0xff]
        %v274 = vld [vmem:[#allocation5 + $0x34] sm:$0xff]
        %v275 = vld [vmem:[#allocation5 + $0x3c] sm:$0xff]
        %v276 = vld [vmem:[#allocation5 + $0x44] sm:$0xf]
        %v277 = vld [vmem:[#allocation5 + $0x48] sm:$0xff]
        %v278 = vld [vmem:[#allocation5 + $0x50] sm:$0xff]
        %v279 = vld [vmem:[#allocation5 + $0x58] sm:$0xff]
        %v280 = vld [vmem:[#allocation5 + $0x60] sm:$0xff]
        %v281 = vld [vmem:[#allocation5 + $0x68] sm:$0xf]
        %v282 = vld [vmem:[#allocation5 + $0x6c] sm:$0xff]
        %v283 = vld [vmem:[#allocation5 + $0x74] sm:$0xff]
        %v284 = vld [vmem:[#allocation5 + $0x7c] sm:$0xff]
        %v285 = vld [vmem:[#allocation5 + $0x84] sm:$0xff]
        %v286 = vld [vmem:[#allocation5 + $0x8c] sm:$0xf]
        %v287 = vld [vmem:[#allocation5 + $0x90] sm:$0xff]
        %v288 = vld [vmem:[#allocation5 + $0x98] sm:$0xff]
        %v289 = vld [vmem:[#allocation5 + $0xa0] sm:$0xff]
        %v290 = vld [vmem:[#allocation5 + $0xa8] sm:$0xff]
        %v291 = vld [vmem:[#allocation5 + $0xb0] sm:$0xf]
        %v292 = vld [vmem:[#allocation5 + $0xb4] sm:$0xff]
        %v293 = vld [vmem:[#allocation5 + $0xbc] sm:$0xff]
        %v294 = vld [vmem:[#allocation5 + $0xc4] sm:$0xff]
        %v295 = vld [vmem:[#allocation5 + $0xcc] sm:$0xff]
        %v296 = vld [vmem:[#allocation5 + $0xd4] sm:$0xf]
        %v297 = vld [vmem:[#allocation5 + $0xd8] sm:$0xff]
        %v298 = vld [vmem:[#allocation5 + $0xe0] sm:$0xff]
        %v299 = vld [vmem:[#allocation5 + $0xe8] sm:$0xff]
        %v300 = vld [vmem:[#allocation5 + $0xf0] sm:$0xff]
        %v301 = vld [vmem:[#allocation5 + $0xf8] sm:$0xf]
        %v302 = vld [vmem:[#allocation5 + $0xfc] sm:$0xff]
        %v303 = vld [vmem:[#allocation5 + $0x104] sm:$0xff]
        %v304 = vld [vmem:[#allocation5 + $0x10c] sm:$0xff]
        %v305 = vld [vmem:[#allocation5 + $0x114] sm:$0xff]
        %v306 = vld [vmem:[#allocation5 + $0x11c] sm:$0xf]
        %v307 = vld [vmem:[#allocation5 + $0x120] sm:$0xff]
        %v308 = vld [vmem:[#allocation5 + $0x128] sm:$0xff]
        %v309 = vld [vmem:[#allocation5 + $0x130] sm:$0xff]
        %v310 = vld [vmem:[#allocation5 + $0x138] sm:$0xff]
        %v311 = vld [vmem:[#allocation5 + $0x140] sm:$0xf]
        %v312 = vld [vmem:[#allocation5 + $0x144] sm:$0xff]
        %v313 = vld [vmem:[#allocation5 + $0x14c] sm:$0xff]
        %v314 = vld [vmem:[#allocation5 + $0x154] sm:$0xff]
        %v315 = vld [vmem:[#allocation5 + $0x15c] sm:$0xff]
        %v316 = vld [vmem:[#allocation5 + $0x164] sm:$0xf]
        %v317 = vld [vmem:[#allocation5 + $0x168] sm:$0xff]
        %v318 = vld [vmem:[#allocation5 + $0x170] sm:$0xff]
        %v319 = vld [vmem:[#allocation5 + $0x178] sm:$0xff]
        %v320 = vld [vmem:[#allocation5 + $0x180] sm:$0xff]
        %v321 = vld [vmem:[#allocation5 + $0x188] sm:$0xf]
        %v322 = vld [vmem:[#allocation5 + $0x18c] sm:$0xff]
        %v323 = vld [vmem:[#allocation5 + $0x194] sm:$0xff]
        %v324 = vld [vmem:[#allocation5 + $0x19c] sm:$0xff]
        %v325 = vld [vmem:[#allocation5 + $0x1a4] sm:$0xff]
        %v326 = vld [vmem:[#allocation5 + $0x1ac] sm:$0xf]
        %v327 = vld [vmem:[#allocation5 + $0x1b0] sm:$0xff]
        %v328 = vld [vmem:[#allocation5 + $0x1b8] sm:$0xff]
        %v329 = vld [vmem:[#allocation5 + $0x1c0] sm:$0xff]
        %v330 = vld [vmem:[#allocation5 + $0x1c8] sm:$0xff]
        %v331 = vld [vmem:[#allocation5 + $0x1d0] sm:$0xf]
        %v332 = vld [vmem:[#allocation5 + $0x1d4] sm:$0xff]
        %v333 = vld [vmem:[#allocation5 + $0x1dc] sm:$0xff]
        %v334 = vld [vmem:[#allocation5 + $0x1e4] sm:$0xff]
        %v335 = vld [vmem:[#allocation5 + $0x1ec] sm:$0xff]
        %v336 = vld [vmem:[#allocation5 + $0x1f4] sm:$0xf]
        %v337 = vld [vmem:[#allocation5 + $0x1f8] sm:$0xff]
        %v338 = vld [vmem:[#allocation5 + $0x200] sm:$0xff]
        %v339 = vld [vmem:[#allocation5 + $0x208] sm:$0xff]
        %v340 = vld [vmem:[#allocation5 + $0x210] sm:$0xff]
        %v341 = vld [vmem:[#allocation5 + $0x218] sm:$0xf]
        %v342 = vld [vmem:[#allocation5 + $0x21c] sm:$0xff]
        %v343 = vld [vmem:[#allocation5 + $0x224] sm:$0xff]
        %v344 = vld [vmem:[#allocation5 + $0x22c] sm:$0xff]
        %v345 = vld [vmem:[#allocation5 + $0x234] sm:$0xff]
        %v346 = vld [vmem:[#allocation5 + $0x23c] sm:$0xf]
        %v347 = vld [vmem:[#allocation5 + $0x240] sm:$0xff]
        %v348 = vld [vmem:[#allocation5 + $0x248] sm:$0xff]
        %v349 = vld [vmem:[#allocation5 + $0x250] sm:$0xff]
        %v350 = vld [vmem:[#allocation5 + $0x258] sm:$0xff]
        %v351 = vld [vmem:[#allocation5 + $0x260] sm:$0xf]
        %v352 = vld [vmem:[#allocation5 + $0x264] sm:$0xff]
        %v353 = vld [vmem:[#allocation5 + $0x26c] sm:$0xff]
        %v354 = vld [vmem:[#allocation5 + $0x274] sm:$0xff]
        %v355 = vld [vmem:[#allocation5 + $0x27c] sm:$0xff]
        %v356 = vld [vmem:[#allocation5 + $0x284] sm:$0xf]
        %v357 = vld [vmem:[#allocation5 + $0x288] sm:$0xff]
        %v358 = vld [vmem:[#allocation5 + $0x290] sm:$0xff]
        %v359 = vld [vmem:[#allocation5 + $0x298] sm:$0xff]
        %v360 = vld [vmem:[#allocation5 + $0x2a0] sm:$0xff]
        %v361 = vld [vmem:[#allocation5 + $0x2a8] sm:$0xf]
        %v362 = vld [vmem:[#allocation5 + $0x2ac] sm:$0xff]
        %v363 = vld [vmem:[#allocation5 + $0x2b4] sm:$0xff]
        %v364 = vld [vmem:[#allocation5 + $0x2bc] sm:$0xff]
        %v365 = vld [vmem:[#allocation5 + $0x2c4] sm:$0xff]
        %v366 = vld [vmem:[#allocation5 + $0x2cc] sm:$0xf]
        %v367 = vld [vmem:[#allocation5 + $0x2d0] sm:$0xff]
        %v368 = vld [vmem:[#allocation5 + $0x2d8] sm:$0xff]
        %v369 = vld [vmem:[#allocation5 + $0x2e0] sm:$0xff]
        %v370 = vld [vmem:[#allocation5 + $0x2e8] sm:$0xff]
        %v371 = vld [vmem:[#allocation5 + $0x2f0] sm:$0xf]
        %v372 = vld [vmem:[#allocation5 + $0x2f4] sm:$0xff]
        %v373 = vld [vmem:[#allocation5 + $0x2fc] sm:$0xff]
        %v374 = vld [vmem:[#allocation5 + $0x304] sm:$0xff]
        %v375 = vld [vmem:[#allocation5 + $0x30c] sm:$0xff]
        %v376 = vld [vmem:[#allocation5 + $0x314] sm:$0xf]
        %v377 = vld [vmem:[#allocation5 + $0x318] sm:$0xff]
        %v378 = vld [vmem:[#allocation5 + $0x320] sm:$0xff]
        %v379 = vld [vmem:[#allocation5 + $0x328] sm:$0xff]
        %v380 = vld [vmem:[#allocation5 + $0x330] sm:$0xff]
        %v381 = vld [vmem:[#allocation5 + $0x338] sm:$0xf]
        %v382 = vld [vmem:[#allocation5 + $0x33c] sm:$0xff]
        %v383 = vld [vmem:[#allocation5 + $0x344] sm:$0xff]
        %v384 = vld [vmem:[#allocation5 + $0x34c] sm:$0xff]
        %v385 = vld [vmem:[#allocation5 + $0x354] sm:$0xff]
        %v386 = vld [vmem:[#allocation5 + $0x35c] sm:$0xf]
        %v387 = vld [vmem:[#allocation5 + $0x360] sm:$0xff]
        %v388 = vld [vmem:[#allocation5 + $0x368] sm:$0xff]
        %v389 = vld [vmem:[#allocation5 + $0x370] sm:$0xff]
        %v390 = vld [vmem:[#allocation5 + $0x378] sm:$0xff]
        %v391 = vld [vmem:[#allocation5 + $0x380] sm:$0xf]
        %v392 = vld [vmem:[#allocation5 + $0x384] sm:$0xff]
        %v393 = vld [vmem:[#allocation5 + $0x38c] sm:$0xff]
        %v394 = vld [vmem:[#allocation5 + $0x394] sm:$0xff]
        %v395 = vld [vmem:[#allocation5 + $0x39c] sm:$0xff]
        %v396 = vld [vmem:[#allocation5 + $0x3a4] sm:$0xf]
        %v397 = vld [vmem:[#allocation5 + $0x3a8] sm:$0xff]
        %v398 = vld [vmem:[#allocation5 + $0x3b0] sm:$0xff]
        %v399 = vld [vmem:[#allocation5 + $0x3b8] sm:$0xff]
        %v400 = vld [vmem:[#allocation5 + $0x3c0] sm:$0xff]
        %v401 = vld [vmem:[#allocation5 + $0x3c8] sm:$0xf]
        %v402 = vld [vmem:[#allocation5 + $0x3cc] sm:$0xff]
        %v403 = vld [vmem:[#allocation5 + $0x3d4] sm:$0xff]
        %v404 = vld [vmem:[#allocation5 + $0x3dc] sm:$0xff]
        %v405 = vld [vmem:[#allocation5 + $0x3e4] sm:$0xff]
        %v406 = vld [vmem:[#allocation5 + $0x3ec] sm:$0xf]
        %v407 = vld [vmem:[#allocation5 + $0x3f0] sm:$0xff]
        %v408 = vld [vmem:[#allocation5 + $0x3f8] sm:$0xff]
        %v409 = vld [vmem:[#allocation5 + $0x400] sm:$0xff]
        %v410 = vld [vmem:[#allocation5 + $0x408] sm:$0xff]
        %v411 = vld [vmem:[#allocation5 + $0x410] sm:$0xf]
        %v412 = vld [vmem:[#allocation5 + $0x414] sm:$0xff]
        %v413 = vld [vmem:[#allocation5 + $0x41c] sm:$0xff]
        %v414 = vld [vmem:[#allocation5 + $0x424] sm:$0xff]
        %v415 = vld [vmem:[#allocation5 + $0x42c] sm:$0xff]
        %v416 = vld [vmem:[#allocation5 + $0x434] sm:$0xf]
        %v417 = vld [vmem:[#allocation5 + $0x438] sm:$0xff]
        %v418 = vld [vmem:[#allocation5 + $0x440] sm:$0xff]
        %v419 = vld [vmem:[#allocation5 + $0x448] sm:$0xff]
        %v420 = vld [vmem:[#allocation5 + $0x450] sm:$0xff]
        %v421 = vld [vmem:[#allocation5 + $0x458] sm:$0xf]
        %v422 = vld [vmem:[#allocation5 + $0x45c] sm:$0xff]
        %v423 = vld [vmem:[#allocation5 + $0x464] sm:$0xff]
        %v424 = vld [vmem:[#allocation5 + $0x46c] sm:$0xff]
        %v425 = vld [vmem:[#allocation5 + $0x474] sm:$0xff]
        %v426 = vld [vmem:[#allocation5 + $0x47c] sm:$0xf]
        %v427 = vld [vmem:[#allocation5 + $0x480] sm:$0xff]
        %v428 = vld [vmem:[#allocation5 + $0x488] sm:$0xff]
        %v429 = vld [vmem:[#allocation5 + $0x490] sm:$0xff]
        %v430 = vld [vmem:[#allocation5 + $0x498] sm:$0xff]
        %v431 = vld [vmem:[#allocation5 + $0x4a0] sm:$0xf]
        %v432 = vld [vmem:[#allocation5 + $0x4a4] sm:$0xff]
        %v433 = vld [vmem:[#allocation5 + $0x4ac] sm:$0xff]
        %v434 = vld [vmem:[#allocation5 + $0x4b4] sm:$0xff]
        %v435 = vld [vmem:[#allocation5 + $0x4bc] sm:$0xff]
        %v436 = vld [vmem:[#allocation5 + $0x4c4] sm:$0xf]
        %v437 = vld [vmem:[#allocation5 + $0x4c8] sm:$0xff]
        %v438 = vld [vmem:[#allocation5 + $0x4d0] sm:$0xff]
        %v439 = vld [vmem:[#allocation5 + $0x4d8] sm:$0xff]
        %v440 = vld [vmem:[#allocation5 + $0x4e0] sm:$0xff]
        %v441 = vld [vmem:[#allocation5 + $0x4e8] sm:$0xf]
        %v442 = vld [vmem:[#allocation5 + $0x4ec] sm:$0xff]
        %v443 = vld [vmem:[#allocation5 + $0x4f4] sm:$0xff]
        %v444 = vld [vmem:[#allocation5 + $0x4fc] sm:$0xff]
        %v445 = vld [vmem:[#allocation5 + $0x504] sm:$0xff]
        %v446 = vld [vmem:[#allocation5 + $0x50c] sm:$0xf]
        %v447 = vld [vmem:[#allocation5 + $0x510] sm:$0xff]
        %v448 = vld [vmem:[#allocation5 + $0x518] sm:$0xff]
        %v449 = vld [vmem:[#allocation5 + $0x520] sm:$0xff]
        %v450 = vld [vmem:[#allocation5 + $0x528] sm:$0xff]
        %v451 = vld [vmem:[#allocation5 + $0x530] sm:$0xf]
        %v452 = vld [vmem:[#allocation5 + $0x534] sm:$0xff]
        %v453 = vld [vmem:[#allocation5 + $0x53c] sm:$0xff]
        %v454 = vld [vmem:[#allocation5 + $0x544] sm:$0xff]
        %v455 = vld [vmem:[#allocation5 + $0x54c] sm:$0xff]
        %v456 = vld [vmem:[#allocation5 + $0x554] sm:$0xf]
        %v457 = vld [vmem:[#allocation5 + $0x558] sm:$0xff]
        %v458 = vld [vmem:[#allocation5 + $0x560] sm:$0xff]
        %v459 = vld [vmem:[#allocation5 + $0x568] sm:$0xff]
        %v460 = vld [vmem:[#allocation5 + $0x570] sm:$0xff]
        %v461 = vld [vmem:[#allocation5 + $0x578] sm:$0xf]
        %v462 = vld [vmem:[#allocation5 + $0x57c] sm:$0xff]
        %v463 = vld [vmem:[#allocation5 + $0x584] sm:$0xff]
        %v464 = vld [vmem:[#allocation5 + $0x58c] sm:$0xff]
        %v465 = vld [vmem:[#allocation5 + $0x594] sm:$0xff]
        %v466 = vld [vmem:[#allocation5 + $0x59c] sm:$0xf]
        %v467 = vld [vmem:[#allocation5 + $0x5a0] sm:$0xff]
        %v468 = vld [vmem:[#allocation5 + $0x5a8] sm:$0xff]
        %v469 = vld [vmem:[#allocation5 + $0x5b0] sm:$0xff]
        %v470 = vld [vmem:[#allocation5 + $0x5b8] sm:$0xff]
        %v471 = vld [vmem:[#allocation5 + $0x5c0] sm:$0xf]
        %v472 = vld [vmem:[#allocation5 + $0x5c4] sm:$0xff]
        %v473 = vld [vmem:[#allocation5 + $0x5cc] sm:$0xff]
        %v474 = vld [vmem:[#allocation5 + $0x5d4] sm:$0xff]
        %v475 = vld [vmem:[#allocation5 + $0x5dc] sm:$0xff]
        %v476 = vld [vmem:[#allocation5 + $0x5e4] sm:$0xf]
        %v477 = vld [vmem:[#allocation5 + $0x5e8] sm:$0xff]
        %v478 = vld [vmem:[#allocation5 + $0x5f0] sm:$0xff]
        %v479 = vld [vmem:[#allocation5 + $0x5f8] sm:$0xff]
        %v480 = vld [vmem:[#allocation5 + $0x600] sm:$0xff]
        %v481 = vld [vmem:[#allocation5 + $0x608] sm:$0xf]
        %v482 = vld [vmem:[#allocation5 + $0x60c] sm:$0xff]
        %v483 = vld [vmem:[#allocation5 + $0x614] sm:$0xff]
        %v484 = vld [vmem:[#allocation5 + $0x61c] sm:$0xff]
        %v485 = vld [vmem:[#allocation5 + $0x624] sm:$0xff]
        %v486 = vld [vmem:[#allocation5 + $0x62c] sm:$0xf]
        %v487 = vld [vmem:[#allocation5 + $0x630] sm:$0xff]
        %v488 = vld [vmem:[#allocation5 + $0x638] sm:$0xff]
        %v489 = vld [vmem:[#allocation5 + $0x640] sm:$0xff]
        %v490 = vld [vmem:[#allocation5 + $0x648] sm:$0xff]
        %v491 = vld [vmem:[#allocation5 + $0x650] sm:$0xf]
        %v492 = vld [vmem:[#allocation5 + $0x654] sm:$0xff]
        %v493 = vld [vmem:[#allocation5 + $0x65c] sm:$0xff]
        %v494 = vld [vmem:[#allocation5 + $0x664] sm:$0xff]
        %v495 = vld [vmem:[#allocation5 + $0x66c] sm:$0xff]
        %v496 = vld [vmem:[#allocation5 + $0x674] sm:$0xf]
        %v497 = vld [vmem:[#allocation5 + $0x678] sm:$0xff]
        %v498 = vld [vmem:[#allocation5 + $0x680] sm:$0xff]
        %v499 = vld [vmem:[#allocation5 + $0x688] sm:$0xff]
        %v500 = vld [vmem:[#allocation5 + $0x690] sm:$0xff]
        %v501 = vld [vmem:[#allocation5 + $0x698] sm:$0xf]
        %v502 = vld [vmem:[#allocation5 + $0x69c] sm:$0xff]
        %v503 = vld [vmem:[#allocation5 + $0x6a4] sm:$0xff]
        %v504 = vld [vmem:[#allocation5 + $0x6ac] sm:$0xff]
        %v505 = vld [vmem:[#allocation5 + $0x6b4] sm:$0xff]
        %v506 = vld [vmem:[#allocation5 + $0x6bc] sm:$0xf]
        %v747 = vunpack.c.l.b16 %v267
        %v748 = vunpack.c.h.b16 %v267
        %v749 = vunpack.c.l.b16 %v268
        %v750 = vunpack.c.h.b16 %v268
        %v751 = vunpack.c.l.b16 %v269
        %v752 = vunpack.c.h.b16 %v269
        %v753 = vunpack.c.l.b16 %v270
        %v754 = vunpack.c.h.b16 %v270
        %v755 = vunpack.c.l.b16 %v271
        %v756 = vunpack.c.l.b16 %v272
        %v757 = vunpack.c.h.b16 %v272
        %v758 = vunpack.c.l.b16 %v273
        %v759 = vunpack.c.h.b16 %v273
        %v760 = vunpack.c.l.b16 %v274
        %v761 = vunpack.c.h.b16 %v274
        %v762 = vunpack.c.l.b16 %v275
        %v763 = vunpack.c.h.b16 %v275
        %v764 = vunpack.c.l.b16 %v276
        %v765 = vunpack.c.l.b16 %v277
        %v766 = vunpack.c.h.b16 %v277
        %v767 = vunpack.c.l.b16 %v278
        %v768 = vunpack.c.h.b16 %v278
        %v769 = vunpack.c.l.b16 %v279
        %v770 = vunpack.c.h.b16 %v279
        %v771 = vunpack.c.l.b16 %v280
        %v772 = vunpack.c.h.b16 %v280
        %v773 = vunpack.c.l.b16 %v281
        %v774 = vunpack.c.l.b16 %v282
        %v775 = vunpack.c.h.b16 %v282
        %v776 = vunpack.c.l.b16 %v283
        %v777 = vunpack.c.h.b16 %v283
        %v778 = vunpack.c.l.b16 %v284
        %v779 = vunpack.c.h.b16 %v284
        %v780 = vunpack.c.l.b16 %v285
        %v781 = vunpack.c.h.b16 %v285
        %v782 = vunpack.c.l.b16 %v286
        %v783 = vunpack.c.l.b16 %v287
        %v784 = vunpack.c.h.b16 %v287
        %v785 = vunpack.c.l.b16 %v288
        %v786 = vunpack.c.h.b16 %v288
        %v787 = vunpack.c.l.b16 %v289
        %v788 = vunpack.c.h.b16 %v289
        %v789 = vunpack.c.l.b16 %v290
        %v790 = vunpack.c.h.b16 %v290
        %v791 = vunpack.c.l.b16 %v291
        %v792 = vunpack.c.l.b16 %v292
        %v793 = vunpack.c.h.b16 %v292
        %v794 = vunpack.c.l.b16 %v293
        %v795 = vunpack.c.h.b16 %v293
        %v796 = vunpack.c.l.b16 %v294
        %v797 = vunpack.c.h.b16 %v294
        %v798 = vunpack.c.l.b16 %v295
        %v799 = vunpack.c.h.b16 %v295
        %v800 = vunpack.c.l.b16 %v296
        %v801 = vunpack.c.l.b16 %v297
        %v802 = vunpack.c.h.b16 %v297
        %v803 = vunpack.c.l.b16 %v298
        %v804 = vunpack.c.h.b16 %v298
        %v805 = vunpack.c.l.b16 %v299
        %v806 = vunpack.c.h.b16 %v299
        %v807 = vunpack.c.l.b16 %v300
        %v808 = vunpack.c.h.b16 %v300
        %v809 = vunpack.c.l.b16 %v301
        %v810 = vunpack.c.l.b16 %v302
        %v811 = vunpack.c.h.b16 %v302
        %v812 = vunpack.c.l.b16 %v303
        %v813 = vunpack.c.h.b16 %v303
        %v814 = vunpack.c.l.b16 %v304
        %v815 = vunpack.c.h.b16 %v304
        %v816 = vunpack.c.l.b16 %v305
        %v817 = vunpack.c.h.b16 %v305
        %v818 = vunpack.c.l.b16 %v306
        %v819 = vunpack.c.l.b16 %v307
        %v820 = vunpack.c.h.b16 %v307
        %v821 = vunpack.c.l.b16 %v308
        %v822 = vunpack.c.h.b16 %v308
        %v823 = vunpack.c.l.b16 %v309
        %v824 = vunpack.c.h.b16 %v309
        %v825 = vunpack.c.l.b16 %v310
        %v826 = vunpack.c.h.b16 %v310
        %v827 = vunpack.c.l.b16 %v311
        %v828 = vunpack.c.l.b16 %v312
        %v829 = vunpack.c.h.b16 %v312
        %v830 = vunpack.c.l.b16 %v313
        %v831 = vunpack.c.h.b16 %v313
        %v832 = vunpack.c.l.b16 %v314
        %v833 = vunpack.c.h.b16 %v314
        %v834 = vunpack.c.l.b16 %v315
        %v835 = vunpack.c.h.b16 %v315
        %v836 = vunpack.c.l.b16 %v316
        %v837 = vunpack.c.l.b16 %v317
        %v838 = vunpack.c.h.b16 %v317
        %v839 = vunpack.c.l.b16 %v318
        %v840 = vunpack.c.h.b16 %v318
        %v841 = vunpack.c.l.b16 %v319
        %v842 = vunpack.c.h.b16 %v319
        %v843 = vunpack.c.l.b16 %v320
        %v844 = vunpack.c.h.b16 %v320
        %v845 = vunpack.c.l.b16 %v321
        %v846 = vunpack.c.l.b16 %v322
        %v847 = vunpack.c.h.b16 %v322
        %v848 = vunpack.c.l.b16 %v323
        %v849 = vunpack.c.h.b16 %v323
        %v850 = vunpack.c.l.b16 %v324
        %v851 = vunpack.c.h.b16 %v324
        %v852 = vunpack.c.l.b16 %v325
        %v853 = vunpack.c.h.b16 %v325
        %v854 = vunpack.c.l.b16 %v326
        %v855 = vunpack.c.l.b16 %v327
        %v856 = vunpack.c.h.b16 %v327
        %v857 = vunpack.c.l.b16 %v328
        %v858 = vunpack.c.h.b16 %v328
        %v859 = vunpack.c.l.b16 %v329
        %v860 = vunpack.c.h.b16 %v329
        %v861 = vunpack.c.l.b16 %v330
        %v862 = vunpack.c.h.b16 %v330
        %v863 = vunpack.c.l.b16 %v331
        %v864 = vunpack.c.l.b16 %v332
        %v865 = vunpack.c.h.b16 %v332
        %v866 = vunpack.c.l.b16 %v333
        %v867 = vunpack.c.h.b16 %v333
        %v868 = vunpack.c.l.b16 %v334
        %v869 = vunpack.c.h.b16 %v334
        %v870 = vunpack.c.l.b16 %v335
        %v871 = vunpack.c.h.b16 %v335
        %v872 = vunpack.c.l.b16 %v336
        %v873 = vunpack.c.l.b16 %v337
        %v874 = vunpack.c.h.b16 %v337
        %v875 = vunpack.c.l.b16 %v338
        %v876 = vunpack.c.h.b16 %v338
        %v877 = vunpack.c.l.b16 %v339
        %v878 = vunpack.c.h.b16 %v339
        %v879 = vunpack.c.l.b16 %v340
        %v880 = vunpack.c.h.b16 %v340
        %v881 = vunpack.c.l.b16 %v341
        %v882 = vunpack.c.l.b16 %v342
        %v883 = vunpack.c.h.b16 %v342
        %v884 = vunpack.c.l.b16 %v343
        %v885 = vunpack.c.h.b16 %v343
        %v886 = vunpack.c.l.b16 %v344
        %v887 = vunpack.c.h.b16 %v344
        %v888 = vunpack.c.l.b16 %v345
        %v889 = vunpack.c.h.b16 %v345
        %v890 = vunpack.c.l.b16 %v346
        %v891 = vunpack.c.l.b16 %v347
        %v892 = vunpack.c.h.b16 %v347
        %v893 = vunpack.c.l.b16 %v348
        %v894 = vunpack.c.h.b16 %v348
        %v895 = vunpack.c.l.b16 %v349
        %v896 = vunpack.c.h.b16 %v349
        %v897 = vunpack.c.l.b16 %v350
        %v898 = vunpack.c.h.b16 %v350
        %v899 = vunpack.c.l.b16 %v351
        %v900 = vunpack.c.l.b16 %v352
        %v901 = vunpack.c.h.b16 %v352
        %v902 = vunpack.c.l.b16 %v353
        %v903 = vunpack.c.h.b16 %v353
        %v904 = vunpack.c.l.b16 %v354
        %v905 = vunpack.c.h.b16 %v354
        %v906 = vunpack.c.l.b16 %v355
        %v907 = vunpack.c.h.b16 %v355
        %v908 = vunpack.c.l.b16 %v356
        %v909 = vunpack.c.l.b16 %v357
        %v910 = vunpack.c.h.b16 %v357
        %v911 = vunpack.c.l.b16 %v358
        %v912 = vunpack.c.h.b16 %v358
        %v913 = vunpack.c.l.b16 %v359
        %v914 = vunpack.c.h.b16 %v359
        %v915 = vunpack.c.l.b16 %v360
        %v916 = vunpack.c.h.b16 %v360
        %v917 = vunpack.c.l.b16 %v361
        %v918 = vunpack.c.l.b16 %v362
        %v919 = vunpack.c.h.b16 %v362
        %v920 = vunpack.c.l.b16 %v363
        %v921 = vunpack.c.h.b16 %v363
        %v922 = vunpack.c.l.b16 %v364
        %v923 = vunpack.c.h.b16 %v364
        %v924 = vunpack.c.l.b16 %v365
        %v925 = vunpack.c.h.b16 %v365
        %v926 = vunpack.c.l.b16 %v366
        %v927 = vunpack.c.l.b16 %v367
        %v928 = vunpack.c.h.b16 %v367
        %v929 = vunpack.c.l.b16 %v368
        %v930 = vunpack.c.h.b16 %v368
        %v931 = vunpack.c.l.b16 %v369
        %v932 = vunpack.c.h.b16 %v369
        %v933 = vunpack.c.l.b16 %v370
        %v934 = vunpack.c.h.b16 %v370
        %v935 = vunpack.c.l.b16 %v371
        %v936 = vunpack.c.l.b16 %v372
        %v937 = vunpack.c.h.b16 %v372
        %v938 = vunpack.c.l.b16 %v373
        %v939 = vunpack.c.h.b16 %v373
        %v940 = vunpack.c.l.b16 %v374
        %v941 = vunpack.c.h.b16 %v374
        %v942 = vunpack.c.l.b16 %v375
        %v943 = vunpack.c.h.b16 %v375
        %v944 = vunpack.c.l.b16 %v376
        %v945 = vunpack.c.l.b16 %v377
        %v946 = vunpack.c.h.b16 %v377
        %v947 = vunpack.c.l.b16 %v378
        %v948 = vunpack.c.h.b16 %v378
        %v949 = vunpack.c.l.b16 %v379
        %v950 = vunpack.c.h.b16 %v379
        %v951 = vunpack.c.l.b16 %v380
        %v952 = vunpack.c.h.b16 %v380
        %v953 = vunpack.c.l.b16 %v381
        %v954 = vunpack.c.l.b16 %v382
        %v955 = vunpack.c.h.b16 %v382
        %v956 = vunpack.c.l.b16 %v383
        %v957 = vunpack.c.h.b16 %v383
        %v958 = vunpack.c.l.b16 %v384
        %v959 = vunpack.c.h.b16 %v384
        %v960 = vunpack.c.l.b16 %v385
        %v961 = vunpack.c.h.b16 %v385
        %v962 = vunpack.c.l.b16 %v386
        %v963 = vunpack.c.l.b16 %v387
        %v964 = vunpack.c.h.b16 %v387
        %v965 = vunpack.c.l.b16 %v388
        %v966 = vunpack.c.h.b16 %v388
        %v967 = vunpack.c.l.b16 %v389
        %v968 = vunpack.c.h.b16 %v389
        %v969 = vunpack.c.l.b16 %v390
        %v970 = vunpack.c.h.b16 %v390
        %v971 = vunpack.c.l.b16 %v391
        %v972 = vunpack.c.l.b16 %v392
        %v973 = vunpack.c.h.b16 %v392
        %v974 = vunpack.c.l.b16 %v393
        %v975 = vunpack.c.h.b16 %v393
        %v976 = vunpack.c.l.b16 %v394
        %v977 = vunpack.c.h.b16 %v394
        %v978 = vunpack.c.l.b16 %v395
        %v979 = vunpack.c.h.b16 %v395
        %v980 = vunpack.c.l.b16 %v396
        %v981 = vunpack.c.l.b16 %v397
        %v982 = vunpack.c.h.b16 %v397
        %v983 = vunpack.c.l.b16 %v398
        %v984 = vunpack.c.h.b16 %v398
        %v985 = vunpack.c.l.b16 %v399
        %v986 = vunpack.c.h.b16 %v399
        %v987 = vunpack.c.l.b16 %v400
        %v988 = vunpack.c.h.b16 %v400
        %v989 = vunpack.c.l.b16 %v401
        %v990 = vunpack.c.l.b16 %v402
        %v991 = vunpack.c.h.b16 %v402
        %v992 = vunpack.c.l.b16 %v403
        %v993 = vunpack.c.h.b16 %v403
        %v994 = vunpack.c.l.b16 %v404
        %v995 = vunpack.c.h.b16 %v404
        %v996 = vunpack.c.l.b16 %v405
        %v997 = vunpack.c.h.b16 %v405
        %v998 = vunpack.c.l.b16 %v406
        %v999 = vunpack.c.l.b16 %v407
        %v1000 = vunpack.c.h.b16 %v407
        %v1001 = vunpack.c.l.b16 %v408
        %v1002 = vunpack.c.h.b16 %v408
        %v1003 = vunpack.c.l.b16 %v409
        %v1004 = vunpack.c.h.b16 %v409
        %v1005 = vunpack.c.l.b16 %v410
        %v1006 = vunpack.c.h.b16 %v410
        %v1007 = vunpack.c.l.b16 %v411
        %v1008 = vunpack.c.l.b16 %v412
        %v1009 = vunpack.c.h.b16 %v412
        %v1010 = vunpack.c.l.b16 %v413
        %v1011 = vunpack.c.h.b16 %v413
        %v1012 = vunpack.c.l.b16 %v414
        %v1013 = vunpack.c.h.b16 %v414
        %v1014 = vunpack.c.l.b16 %v415
        %v1015 = vunpack.c.h.b16 %v415
        %v1016 = vunpack.c.l.b16 %v416
        %v1017 = vunpack.c.l.b16 %v417
        %v1018 = vunpack.c.h.b16 %v417
        %v1019 = vunpack.c.l.b16 %v418
        %v1020 = vunpack.c.h.b16 %v418
        %v1021 = vunpack.c.l.b16 %v419
        %v1022 = vunpack.c.h.b16 %v419
        %v1023 = vunpack.c.l.b16 %v420
        %v1024 = vunpack.c.h.b16 %v420
        %v1025 = vunpack.c.l.b16 %v421
        %v1026 = vunpack.c.l.b16 %v422
        %v1027 = vunpack.c.h.b16 %v422
        %v1028 = vunpack.c.l.b16 %v423
        %v1029 = vunpack.c.h.b16 %v423
        %v1030 = vunpack.c.l.b16 %v424
        %v1031 = vunpack.c.h.b16 %v424
        %v1032 = vunpack.c.l.b16 %v425
        %v1033 = vunpack.c.h.b16 %v425
        %v1034 = vunpack.c.l.b16 %v426
        %v1035 = vunpack.c.l.b16 %v427
        %v1036 = vunpack.c.h.b16 %v427
        %v1037 = vunpack.c.l.b16 %v428
        %v1038 = vunpack.c.h.b16 %v428
        %v1039 = vunpack.c.l.b16 %v429
        %v1040 = vunpack.c.h.b16 %v429
        %v1041 = vunpack.c.l.b16 %v430
        %v1042 = vunpack.c.h.b16 %v430
        %v1043 = vunpack.c.l.b16 %v431
        %v1044 = vunpack.c.l.b16 %v432
        %v1045 = vunpack.c.h.b16 %v432
        %v1046 = vunpack.c.l.b16 %v433
        %v1047 = vunpack.c.h.b16 %v433
        %v1048 = vunpack.c.l.b16 %v434
        %v1049 = vunpack.c.h.b16 %v434
        %v1050 = vunpack.c.l.b16 %v435
        %v1051 = vunpack.c.h.b16 %v435
        %v1052 = vunpack.c.l.b16 %v436
        %v1053 = vunpack.c.l.b16 %v437
        %v1054 = vunpack.c.h.b16 %v437
        %v1055 = vunpack.c.l.b16 %v438
        %v1056 = vunpack.c.h.b16 %v438
        %v1057 = vunpack.c.l.b16 %v439
        %v1058 = vunpack.c.h.b16 %v439
        %v1059 = vunpack.c.l.b16 %v440
        %v1060 = vunpack.c.h.b16 %v440
        %v1061 = vunpack.c.l.b16 %v441
        %v1062 = vunpack.c.l.b16 %v442
        %v1063 = vunpack.c.h.b16 %v442
        %v1064 = vunpack.c.l.b16 %v443
        %v1065 = vunpack.c.h.b16 %v443
        %v1066 = vunpack.c.l.b16 %v444
        %v1067 = vunpack.c.h.b16 %v444
        %v1068 = vunpack.c.l.b16 %v445
        %v1069 = vunpack.c.h.b16 %v445
        %v1070 = vunpack.c.l.b16 %v446
        %v1071 = vunpack.c.l.b16 %v447
        %v1072 = vunpack.c.h.b16 %v447
        %v1073 = vunpack.c.l.b16 %v448
        %v1074 = vunpack.c.h.b16 %v448
        %v1075 = vunpack.c.l.b16 %v449
        %v1076 = vunpack.c.h.b16 %v449
        %v1077 = vunpack.c.l.b16 %v450
        %v1078 = vunpack.c.h.b16 %v450
        %v1079 = vunpack.c.l.b16 %v451
        %v1080 = vunpack.c.l.b16 %v452
        %v1081 = vunpack.c.h.b16 %v452
        %v1082 = vunpack.c.l.b16 %v453
        %v1083 = vunpack.c.h.b16 %v453
        %v1084 = vunpack.c.l.b16 %v454
        %v1085 = vunpack.c.h.b16 %v454
        %v1086 = vunpack.c.l.b16 %v455
        %v1087 = vunpack.c.h.b16 %v455
        %v1088 = vunpack.c.l.b16 %v456
        %v1089 = vunpack.c.l.b16 %v457
        %v1090 = vunpack.c.h.b16 %v457
        %v1091 = vunpack.c.l.b16 %v458
        %v1092 = vunpack.c.h.b16 %v458
        %v1093 = vunpack.c.l.b16 %v459
        %v1094 = vunpack.c.h.b16 %v459
        %v1095 = vunpack.c.l.b16 %v460
        %v1096 = vunpack.c.h.b16 %v460
        %v1097 = vunpack.c.l.b16 %v461
        %v1098 = vunpack.c.l.b16 %v462
        %v1099 = vunpack.c.h.b16 %v462
        %v1100 = vunpack.c.l.b16 %v463
        %v1101 = vunpack.c.h.b16 %v463
        %v1102 = vunpack.c.l.b16 %v464
        %v1103 = vunpack.c.h.b16 %v464
        %v1104 = vunpack.c.l.b16 %v465
        %v1105 = vunpack.c.h.b16 %v465
        %v1106 = vunpack.c.l.b16 %v466
        %v1107 = vunpack.c.l.b16 %v467
        %v1108 = vunpack.c.h.b16 %v467
        %v1109 = vunpack.c.l.b16 %v468
        %v1110 = vunpack.c.h.b16 %v468
        %v1111 = vunpack.c.l.b16 %v469
        %v1112 = vunpack.c.h.b16 %v469
        %v1113 = vunpack.c.l.b16 %v470
        %v1114 = vunpack.c.h.b16 %v470
        %v1115 = vunpack.c.l.b16 %v471
        %v1116 = vunpack.c.l.b16 %v472
        %v1117 = vunpack.c.h.b16 %v472
        %v1118 = vunpack.c.l.b16 %v473
        %v1119 = vunpack.c.h.b16 %v473
        %v1120 = vunpack.c.l.b16 %v474
        %v1121 = vunpack.c.h.b16 %v474
        %v1122 = vunpack.c.l.b16 %v475
        %v1123 = vunpack.c.h.b16 %v475
        %v1124 = vunpack.c.l.b16 %v476
        %v1125 = vunpack.c.l.b16 %v477
        %v1126 = vunpack.c.h.b16 %v477
        %v1127 = vunpack.c.l.b16 %v478
        %v1128 = vunpack.c.h.b16 %v478
        %v1129 = vunpack.c.l.b16 %v479
        %v1130 = vunpack.c.h.b16 %v479
        %v1131 = vunpack.c.l.b16 %v480
        %v1132 = vunpack.c.h.b16 %v480
        %v1133 = vunpack.c.l.b16 %v481
        %v1134 = vunpack.c.l.b16 %v482
        %v1135 = vunpack.c.h.b16 %v482
        %v1136 = vunpack.c.l.b16 %v483
        %v1137 = vunpack.c.h.b16 %v483
        %v1138 = vunpack.c.l.b16 %v484
        %v1139 = vunpack.c.h.b16 %v484
        %v1140 = vunpack.c.l.b16 %v485
        %v1141 = vunpack.c.h.b16 %v485
        %v1142 = vunpack.c.l.b16 %v486
        %v1143 = vunpack.c.l.b16 %v487
        %v1144 = vunpack.c.h.b16 %v487
        %v1145 = vunpack.c.l.b16 %v488
        %v1146 = vunpack.c.h.b16 %v488
        %v1147 = vunpack.c.l.b16 %v489
        %v1148 = vunpack.c.h.b16 %v489
        %v1149 = vunpack.c.l.b16 %v490
        %v1150 = vunpack.c.h.b16 %v490
        %v1151 = vunpack.c.l.b16 %v491
        %v1152 = vunpack.c.l.b16 %v492
        %v1153 = vunpack.c.h.b16 %v492
        %v1154 = vunpack.c.l.b16 %v493
        %v1155 = vunpack.c.h.b16 %v493
        %v1156 = vunpack.c.l.b16 %v494
        %v1157 = vunpack.c.h.b16 %v494
        %v1158 = vunpack.c.l.b16 %v495
        %v1159 = vunpack.c.h.b16 %v495
        %v1160 = vunpack.c.l.b16 %v496
        %v1161 = vunpack.c.l.b16 %v497
        %v1162 = vunpack.c.h.b16 %v497
        %v1163 = vunpack.c.l.b16 %v498
        %v1164 = vunpack.c.h.b16 %v498
        %v1165 = vunpack.c.l.b16 %v499
        %v1166 = vunpack.c.h.b16 %v499
        %v1167 = vunpack.c.l.b16 %v500
        %v1168 = vunpack.c.h.b16 %v500
        %v1169 = vunpack.c.l.b16 %v501
        %v1170 = vunpack.c.l.b16 %v502
        %v1171 = vunpack.c.h.b16 %v502
        %v1172 = vunpack.c.l.b16 %v503
        %v1173 = vunpack.c.h.b16 %v503
        %v1174 = vunpack.c.l.b16 %v504
        %v1175 = vunpack.c.h.b16 %v504
        %v1176 = vunpack.c.l.b16 %v505
        %v1177 = vunpack.c.h.b16 %v505
        %v1178 = vunpack.c.l.b16 %v506
        %v1179 = vpack.c.b16 %v756, %v747
        %v1180 = vpack.c.b16 %v757, %v748
        %v1181 = vpack.c.b16 %v758, %v749
        %v1182 = vpack.c.b16 %v759, %v750
        %v1183 = vpack.c.b16 %v760, %v751
        %v1184 = vpack.c.b16 %v761, %v752
        %v1185 = vpack.c.b16 %v762, %v753
        %v1186 = vpack.c.b16 %v763, %v754
        %v1187 = vpack.c.b16 %v764, %v755
        %v1188 = vpack.c.b16 %v774, %v765
        %v1189 = vpack.c.b16 %v775, %v766
        %v1190 = vpack.c.b16 %v776, %v767
        %v1191 = vpack.c.b16 %v777, %v768
        %v1192 = vpack.c.b16 %v778, %v769
        %v1193 = vpack.c.b16 %v779, %v770
        %v1194 = vpack.c.b16 %v780, %v771
        %v1195 = vpack.c.b16 %v781, %v772
        %v1196 = vpack.c.b16 %v782, %v773
        %v1197 = vpack.c.b16 %v792, %v783
        %v1198 = vpack.c.b16 %v793, %v784
        %v1199 = vpack.c.b16 %v794, %v785
        %v1200 = vpack.c.b16 %v795, %v786
        %v1201 = vpack.c.b16 %v796, %v787
        %v1202 = vpack.c.b16 %v797, %v788
        %v1203 = vpack.c.b16 %v798, %v789
        %v1204 = vpack.c.b16 %v799, %v790
        %v1205 = vpack.c.b16 %v800, %v791
        %v1206 = vpack.c.b16 %v810, %v801
        %v1207 = vpack.c.b16 %v811, %v802
        %v1208 = vpack.c.b16 %v812, %v803
        %v1209 = vpack.c.b16 %v813, %v804
        %v1210 = vpack.c.b16 %v814, %v805
        %v1211 = vpack.c.b16 %v815, %v806
        %v1212 = vpack.c.b16 %v816, %v807
        %v1213 = vpack.c.b16 %v817, %v808
        %v1214 = vpack.c.b16 %v818, %v809
        %v1215 = vpack.c.b16 %v828, %v819
        %v1216 = vpack.c.b16 %v829, %v820
        %v1217 = vpack.c.b16 %v830, %v821
        %v1218 = vpack.c.b16 %v831, %v822
        %v1219 = vpack.c.b16 %v832, %v823
        %v1220 = vpack.c.b16 %v833, %v824
        %v1221 = vpack.c.b16 %v834, %v825
        %v1222 = vpack.c.b16 %v835, %v826
        %v1223 = vpack.c.b16 %v836, %v827
        %v1224 = vpack.c.b16 %v846, %v837
        %v1225 = vpack.c.b16 %v847, %v838
        %v1226 = vpack.c.b16 %v848, %v839
        %v1227 = vpack.c.b16 %v849, %v840
        %v1228 = vpack.c.b16 %v850, %v841
        %v1229 = vpack.c.b16 %v851, %v842
        %v1230 = vpack.c.b16 %v852, %v843
        %v1231 = vpack.c.b16 %v853, %v844
        %v1232 = vpack.c.b16 %v854, %v845
        %v1233 = vpack.c.b16 %v864, %v855
        %v1234 = vpack.c.b16 %v865, %v856
        %v1235 = vpack.c.b16 %v866, %v857
        %v1236 = vpack.c.b16 %v867, %v858
        %v1237 = vpack.c.b16 %v868, %v859
        %v1238 = vpack.c.b16 %v869, %v860
        %v1239 = vpack.c.b16 %v870, %v861
        %v1240 = vpack.c.b16 %v871, %v862
        %v1241 = vpack.c.b16 %v872, %v863
        %v1242 = vpack.c.b16 %v882, %v873
        %v1243 = vpack.c.b16 %v883, %v874
        %v1244 = vpack.c.b16 %v884, %v875
        %v1245 = vpack.c.b16 %v885, %v876
        %v1246 = vpack.c.b16 %v886, %v877
        %v1247 = vpack.c.b16 %v887, %v878
        %v1248 = vpack.c.b16 %v888, %v879
        %v1249 = vpack.c.b16 %v889, %v880
        %v1250 = vpack.c.b16 %v890, %v881
        %v1251 = vpack.c.b16 %v900, %v891
        %v1252 = vpack.c.b16 %v901, %v892
        %v1253 = vpack.c.b16 %v902, %v893
        %v1254 = vpack.c.b16 %v903, %v894
        %v1255 = vpack.c.b16 %v904, %v895
        %v1256 = vpack.c.b16 %v905, %v896
        %v1257 = vpack.c.b16 %v906, %v897
        %v1258 = vpack.c.b16 %v907, %v898
        %v1259 = vpack.c.b16 %v908, %v899
        %v1260 = vpack.c.b16 %v918, %v909
        %v1261 = vpack.c.b16 %v919, %v910
        %v1262 = vpack.c.b16 %v920, %v911
        %v1263 = vpack.c.b16 %v921, %v912
        %v1264 = vpack.c.b16 %v922, %v913
        %v1265 = vpack.c.b16 %v923, %v914
        %v1266 = vpack.c.b16 %v924, %v915
        %v1267 = vpack.c.b16 %v925, %v916
        %v1268 = vpack.c.b16 %v926, %v917
        %v1269 = vpack.c.b16 %v936, %v927
        %v1270 = vpack.c.b16 %v937, %v928
        %v1271 = vpack.c.b16 %v938, %v929
        %v1272 = vpack.c.b16 %v939, %v930
        %v1273 = vpack.c.b16 %v940, %v931
        %v1274 = vpack.c.b16 %v941, %v932
        %v1275 = vpack.c.b16 %v942, %v933
        %v1276 = vpack.c.b16 %v943, %v934
        %v1277 = vpack.c.b16 %v944, %v935
        %v1278 = vpack.c.b16 %v954, %v945
        %v1279 = vpack.c.b16 %v955, %v946
        %v1280 = vpack.c.b16 %v956, %v947
        %v1281 = vpack.c.b16 %v957, %v948
        %v1282 = vpack.c.b16 %v958, %v949
        %v1283 = vpack.c.b16 %v959, %v950
        %v1284 = vpack.c.b16 %v960, %v951
        %v1285 = vpack.c.b16 %v961, %v952
        %v1286 = vpack.c.b16 %v962, %v953
        %v1287 = vpack.c.b16 %v972, %v963
        %v1288 = vpack.c.b16 %v973, %v964
        %v1289 = vpack.c.b16 %v974, %v965
        %v1290 = vpack.c.b16 %v975, %v966
        %v1291 = vpack.c.b16 %v976, %v967
        %v1292 = vpack.c.b16 %v977, %v968
        %v1293 = vpack.c.b16 %v978, %v969
        %v1294 = vpack.c.b16 %v979, %v970
        %v1295 = vpack.c.b16 %v980, %v971
        %v1296 = vpack.c.b16 %v990, %v981
        %v1297 = vpack.c.b16 %v991, %v982
        %v1298 = vpack.c.b16 %v992, %v983
        %v1299 = vpack.c.b16 %v993, %v984
        %v1300 = vpack.c.b16 %v994, %v985
        %v1301 = vpack.c.b16 %v995, %v986
        %v1302 = vpack.c.b16 %v996, %v987
        %v1303 = vpack.c.b16 %v997, %v988
        %v1304 = vpack.c.b16 %v998, %v989
        %v1305 = vpack.c.b16 %v1008, %v999
        %v1306 = vpack.c.b16 %v1009, %v1000
        %v1307 = vpack.c.b16 %v1010, %v1001
        %v1308 = vpack.c.b16 %v1011, %v1002
        %v1309 = vpack.c.b16 %v1012, %v1003
        %v1310 = vpack.c.b16 %v1013, %v1004
        %v1311 = vpack.c.b16 %v1014, %v1005
        %v1312 = vpack.c.b16 %v1015, %v1006
        %v1313 = vpack.c.b16 %v1016, %v1007
        %v1314 = vpack.c.b16 %v1026, %v1017
        %v1315 = vpack.c.b16 %v1027, %v1018
        %v1316 = vpack.c.b16 %v1028, %v1019
        %v1317 = vpack.c.b16 %v1029, %v1020
        %v1318 = vpack.c.b16 %v1030, %v1021
        %v1319 = vpack.c.b16 %v1031, %v1022
        %v1320 = vpack.c.b16 %v1032, %v1023
        %v1321 = vpack.c.b16 %v1033, %v1024
        %v1322 = vpack.c.b16 %v1034, %v1025
        %v1323 = vpack.c.b16 %v1044, %v1035
        %v1324 = vpack.c.b16 %v1045, %v1036
        %v1325 = vpack.c.b16 %v1046, %v1037
        %v1326 = vpack.c.b16 %v1047, %v1038
        %v1327 = vpack.c.b16 %v1048, %v1039
        %v1328 = vpack.c.b16 %v1049, %v1040
        %v1329 = vpack.c.b16 %v1050, %v1041
        %v1330 = vpack.c.b16 %v1051, %v1042
        %v1331 = vpack.c.b16 %v1052, %v1043
        %v1332 = vpack.c.b16 %v1062, %v1053
        %v1333 = vpack.c.b16 %v1063, %v1054
        %v1334 = vpack.c.b16 %v1064, %v1055
        %v1335 = vpack.c.b16 %v1065, %v1056
        %v1336 = vpack.c.b16 %v1066, %v1057
        %v1337 = vpack.c.b16 %v1067, %v1058
        %v1338 = vpack.c.b16 %v1068, %v1059
        %v1339 = vpack.c.b16 %v1069, %v1060
        %v1340 = vpack.c.b16 %v1070, %v1061
        %v1341 = vpack.c.b16 %v1080, %v1071
        %v1342 = vpack.c.b16 %v1081, %v1072
        %v1343 = vpack.c.b16 %v1082, %v1073
        %v1344 = vpack.c.b16 %v1083, %v1074
        %v1345 = vpack.c.b16 %v1084, %v1075
        %v1346 = vpack.c.b16 %v1085, %v1076
        %v1347 = vpack.c.b16 %v1086, %v1077
        %v1348 = vpack.c.b16 %v1087, %v1078
        %v1349 = vpack.c.b16 %v1088, %v1079
        %v1350 = vpack.c.b16 %v1098, %v1089
        %v1351 = vpack.c.b16 %v1099, %v1090
        %v1352 = vpack.c.b16 %v1100, %v1091
        %v1353 = vpack.c.b16 %v1101, %v1092
        %v1354 = vpack.c.b16 %v1102, %v1093
        %v1355 = vpack.c.b16 %v1103, %v1094
        %v1356 = vpack.c.b16 %v1104, %v1095
        %v1357 = vpack.c.b16 %v1105, %v1096
        %v1358 = vpack.c.b16 %v1106, %v1097
        %v1359 = vpack.c.b16 %v1116, %v1107
        %v1360 = vpack.c.b16 %v1117, %v1108
        %v1361 = vpack.c.b16 %v1118, %v1109
        %v1362 = vpack.c.b16 %v1119, %v1110
        %v1363 = vpack.c.b16 %v1120, %v1111
        %v1364 = vpack.c.b16 %v1121, %v1112
        %v1365 = vpack.c.b16 %v1122, %v1113
        %v1366 = vpack.c.b16 %v1123, %v1114
        %v1367 = vpack.c.b16 %v1124, %v1115
        %v1368 = vpack.c.b16 %v1134, %v1125
        %v1369 = vpack.c.b16 %v1135, %v1126
        %v1370 = vpack.c.b16 %v1136, %v1127
        %v1371 = vpack.c.b16 %v1137, %v1128
        %v1372 = vpack.c.b16 %v1138, %v1129
        %v1373 = vpack.c.b16 %v1139, %v1130
        %v1374 = vpack.c.b16 %v1140, %v1131
        %v1375 = vpack.c.b16 %v1141, %v1132
        %v1376 = vpack.c.b16 %v1142, %v1133
        %v1377 = vpack.c.b16 %v1152, %v1143
        %v1378 = vpack.c.b16 %v1153, %v1144
        %v1379 = vpack.c.b16 %v1154, %v1145
        %v1380 = vpack.c.b16 %v1155, %v1146
        %v1381 = vpack.c.b16 %v1156, %v1147
        %v1382 = vpack.c.b16 %v1157, %v1148
        %v1383 = vpack.c.b16 %v1158, %v1149
        %v1384 = vpack.c.b16 %v1159, %v1150
        %v1385 = vpack.c.b16 %v1160, %v1151
        %v1386 = vpack.c.b16 %v1170, %v1161
        %v1387 = vpack.c.b16 %v1171, %v1162
        %v1388 = vpack.c.b16 %v1172, %v1163
        %v1389 = vpack.c.b16 %v1173, %v1164
        %v1390 = vpack.c.b16 %v1174, %v1165
        %v1391 = vpack.c.b16 %v1175, %v1166
        %v1392 = vpack.c.b16 %v1176, %v1167
        %v1393 = vpack.c.b16 %v1177, %v1168
        %v1394 = vpack.c.b16 %v1178, %v1169
        %1611 = vmatprep.subr.bf16.mxu0 %v1180
        %1612 = vmatpush1.bf16.msra.mxu0 %v1179
        %1613 = vmatprep.subr.bf16.mxu0 %v1189
        %1614 = vmatpush1.bf16.msra.mxu0 %v1188
        %1615 = vmatprep.subr.bf16.mxu0 %v1198
        %1616 = vmatpush1.bf16.msra.mxu0 %v1197
        %1617 = vmatprep.subr.bf16.mxu0 %v1207
        %1618 = vmatpush1.bf16.msra.mxu0 %v1206
        %1619 = vmatprep.subr.bf16.mxu0 %v1216
        %1620 = vmatpush1.bf16.msra.mxu0 %v1215
        %1621 = vmatprep.subr.bf16.mxu0 %v1225
        %1622 = vmatpush1.bf16.msra.mxu0 %v1224
        %1623 = vmatprep.subr.bf16.mxu0 %v1234
        %1624 = vmatpush1.bf16.msra.mxu0 %v1233
        %1625 = vmatprep.subr.bf16.mxu0 %v1243
        %1626 = vmatpush1.bf16.msra.mxu0 %v1242
        %1627 = vmatprep.subr.bf16.mxu0 %v1252
        %1628 = vmatpush1.bf16.msra.mxu0 %v1251
        %1629 = vmatprep.subr.bf16.mxu0 %v1261
        %1630 = vmatpush1.bf16.msra.mxu0 %v1260
        %1631 = vmatprep.subr.bf16.mxu0 %v1270
        %1632 = vmatpush1.bf16.msra.mxu0 %v1269
        %1633 = vmatprep.subr.bf16.mxu0 %v1279
        %1634 = vmatpush1.bf16.msra.mxu0 %v1278
        %1635 = vmatprep.subr.bf16.mxu0 %v1288
        %1636 = vmatpush1.bf16.msra.mxu0 %v1287
        %1637 = vmatprep.subr.bf16.mxu0 %v1297
        %1638 = vmatpush1.bf16.msra.mxu0 %v1296
        %1639 = vmatprep.subr.bf16.mxu0 %v1306
        %1640 = vmatpush1.bf16.msra.mxu0 %v1305
        %1641 = vmatprep.subr.bf16.mxu0 %v1315
        %1642 = vmatpush1.bf16.msra.mxu0 %v1314
        %1643 = vmatprep.mubr.bf16.mxu0 %v262
        %1644 = vmatmul.mubr.bf16.gmra.mrb[0].mxu0 %v261
        %v1645 = vpop.f32.mrb[0].mxu0
        %v1646 = vadd.f32 0.0, %v1645
        %v1647 = vpop.f32.mrb[0].mxu0
        %v1648 = vadd.f32 0.0, %v1647
        %v1649 = vpop.f32.mrb[0].mxu0
        %v1650 = vadd.f32 0.0, %v1649
        %v1651 = vpop.f32.mrb[0].mxu0
        %v1652 = vadd.f32 0.0, %v1651
        %1653 = vmatprep.mubr.bf16.mxu0 %v265
        %1654 = vmatmul.mubr.bf16.gmra.mrb[0].mxu0 %v264
        %v1655 = vpop.f32.mrb[0].mxu0
        %v1656 = vadd.f32 0.0, %v1655
        %v1657 = vpop.f32.mrb[0].mxu0
        %v1658 = vadd.f32 0.0, %v1657
        %v1659 = vpop.f32.mrb[0].mxu0
        %v1660 = vadd.f32 0.0, %v1659
        %v1661 = vpop.f32.mrb[0].mxu0
        %v1662 = vadd.f32 0.0, %v1661
        %1663 = vdwg.mxu0
        %1664 = vmatprep.subr.bf16.mxu0 %v1324
        %1665 = vmatpush1.bf16.msra.mxu0 %v1323
        %1666 = vmatprep.subr.bf16.mxu0 %v1333
        %1667 = vmatpush1.bf16.msra.mxu0 %v1332
        %1668 = vmatprep.subr.bf16.mxu0 %v1342
        %1669 = vmatpush1.bf16.msra.mxu0 %v1341
        %1670 = vmatprep.subr.bf16.mxu0 %v1351
        %1671 = vmatpush1.bf16.msra.mxu0 %v1350
        %1672 = vmatprep.subr.bf16.mxu0 %v1360
        %1673 = vmatpush1.bf16.msra.mxu0 %v1359
        %1674 = vmatprep.subr.bf16.mxu0 %v1369
        %1675 = vmatpush1.bf16.msra.mxu0 %v1368
        %1676 = vmatprep.subr.bf16.mxu0 %v1378
        %1677 = vmatpush1.bf16.msra.mxu0 %v1377
        %1678 = vmatprep.subr.bf16.mxu0 %v1387
        %1679 = vmatpush1.bf16.msra.mxu0 %v1386
        %1680 = vmatprep.subr.bf16.mxu0 0
        %1681 = vmatpush1.bf16.msra.mxu0 0
        %1682 = vmatprep.subr.bf16.mxu0 0
        %1683 = vmatpush1.bf16.msra.mxu0 0
        %1684 = vmatprep.subr.bf16.mxu0 0
        %1685 = vmatpush1.bf16.msra.mxu0 0
        %1686 = vmatprep.subr.bf16.mxu0 0
        %1687 = vmatpush1.bf16.msra.mxu0 0
        %1688 = vmatprep.subr.bf16.mxu0 0
        %1689 = vmatpush1.bf16.msra.mxu0 0
        %1690 = vmatprep.subr.bf16.mxu0 0
        %1691 = vmatpush1.bf16.msra.mxu0 0
        %1692 = vmatprep.subr.bf16.mxu0 0
        %1693 = vmatpush1.bf16.msra.mxu0 0
        %1694 = vmatprep.subr.bf16.mxu0 0
        %1695 = vmatpush1.bf16.msra.mxu0 0
        %1696 = vmatprep.mubr.bf16.mxu0 0
        %1697 = vmatmul.mubr.bf16.gmra.mrb[0].mxu0 %v263
        %v1698 = vpop.f32.mrb[0].mxu0
        %v1699 = vadd.f32 %v1646, %v1698
        %v1700 = vpop.f32.mrb[0].mxu0
        %v1701 = vadd.f32 %v1648, %v1700
        %v1702 = vpop.f32.mrb[0].mxu0
        %v1703 = vadd.f32 %v1650, %v1702
        %v1704 = vpop.f32.mrb[0].mxu0
        %v1705 = vadd.f32 %v1652, %v1704
        %1706 = vmatprep.mubr.bf16.mxu0 0
        %1707 = vmatmul.mubr.bf16.gmra.mrb[0].mxu0 %v266
        %v1708 = vpop.f32.mrb[0].mxu0
        %v1709 = vadd.f32 %v1656, %v1708
        %v1710 = vpop.f32.mrb[0].mxu0
        %v1711 = vadd.f32 %v1658, %v1710
        %v1712 = vpop.f32.mrb[0].mxu0
        %v1713 = vadd.f32 %v1660, %v1712
        %v1714 = vpop.f32.mrb[0].mxu0
        %v1715 = vadd.f32 %v1662, %v1714
        %1716 = vdwg.mxu0
        %1717 = vmatprep.subr.bf16.mxu0 %v1182
        %1718 = vmatpush1.bf16.msra.mxu0 %v1181
        %1719 = vmatprep.subr.bf16.mxu0 %v1191
        %1720 = vmatpush1.bf16.msra.mxu0 %v1190
        %1721 = vmatprep.subr.bf16.mxu0 %v1200
        %1722 = vmatpush1.bf16.msra.mxu0 %v1199
        %1723 = vmatprep.subr.bf16.mxu0 %v1209
        %1724 = vmatpush1.bf16.msra.mxu0 %v1208
        %1725 = vmatprep.subr.bf16.mxu0 %v1218
        %1726 = vmatpush1.bf16.msra.mxu0 %v1217
        %1727 = vmatprep.subr.bf16.mxu0 %v1227
        %1728 = vmatpush1.bf16.msra.mxu0 %v1226
        %1729 = vmatprep.subr.bf16.mxu0 %v1236
        %1730 = vmatpush1.bf16.msra.mxu0 %v1235
        %1731 = vmatprep.subr.bf16.mxu0 %v1245
        %1732 = vmatpush1.bf16.msra.mxu0 %v1244
        %1733 = vmatprep.subr.bf16.mxu0 %v1254
        %1734 = vmatpush1.bf16.msra.mxu0 %v1253
        %1735 = vmatprep.subr.bf16.mxu0 %v1263
        %1736 = vmatpush1.bf16.msra.mxu0 %v1262
        %1737 = vmatprep.subr.bf16.mxu0 %v1272
        %1738 = vmatpush1.bf16.msra.mxu0 %v1271
        %1739 = vmatprep.subr.bf16.mxu0 %v1281
        %1740 = vmatpush1.bf16.msra.mxu0 %v1280
        %1741 = vmatprep.subr.bf16.mxu0 %v1290
        %1742 = vmatpush1.bf16.msra.mxu0 %v1289
        %1743 = vmatprep.subr.bf16.mxu0 %v1299
        %1744 = vmatpush1.bf16.msra.mxu0 %v1298
        %1745 = vmatprep.subr.bf16.mxu0 %v1308
        %1746 = vmatpush1.bf16.msra.mxu0 %v1307
        %1747 = vmatprep.subr.bf16.mxu0 %v1317
        %1748 = vmatpush1.bf16.msra.mxu0 %v1316
        %1749 = vmatprep.mubr.bf16.mxu0 %v262
        %1750 = vmatmul.mubr.bf16.gmra.mrb[0].mxu0 %v261
        %v1751 = vpop.f32.mrb[0].mxu0
        %v1752 = vadd.f32 0.0, %v1751
        %v1753 = vpop.f32.mrb[0].mxu0
        %v1754 = vadd.f32 0.0, %v1753
        %v1755 = vpop.f32.mrb[0].mxu0
        %v1756 = vadd.f32 0.0, %v1755
        %v1757 = vpop.f32.mrb[0].mxu0
        %v1758 = vadd.f32 0.0, %v1757
        %1759 = vmatprep.mubr.bf16.mxu0 %v265
        %1760 = vmatmul.mubr.bf16.gmra.mrb[0].mxu0 %v264
        %v1761 = vpop.f32.mrb[0].mxu0
        %v1762 = vadd.f32 0.0, %v1761
        %v1763 = vpop.f32.mrb[0].mxu0
        %v1764 = vadd.f32 0.0, %v1763
        %v1765 = vpop.f32.mrb[0].mxu0
        %v1766 = vadd.f32 0.0, %v1765
        %v1767 = vpop.f32.mrb[0].mxu0
        %v1768 = vadd.f32 0.0, %v1767
        %1769 = vdwg.mxu0
        %1770 = vmatprep.subr.bf16.mxu0 %v1326
        %1771 = vmatpush1.bf16.msra.mxu0 %v1325
        %1772 = vmatprep.subr.bf16.mxu0 %v1335
        %1773 = vmatpush1.bf16.msra.mxu0 %v1334
        %1774 = vmatprep.subr.bf16.mxu0 %v1344
        %1775 = vmatpush1.bf16.msra.mxu0 %v1343
        %1776 = vmatprep.subr.bf16.mxu0 %v1353
        %1777 = vmatpush1.bf16.msra.mxu0 %v1352
        %1778 = vmatprep.subr.bf16.mxu0 %v1362
        %1779 = vmatpush1.bf16.msra.mxu0 %v1361
        %1780 = vmatprep.subr.bf16.mxu0 %v1371
        %1781 = vmatpush1.bf16.msra.mxu0 %v1370
        %1782 = vmatprep.subr.bf16.mxu0 %v1380
        %1783 = vmatpush1.bf16.msra.mxu0 %v1379
        %1784 = vmatprep.subr.bf16.mxu0 %v1389
        %1785 = vmatpush1.bf16.msra.mxu0 %v1388
        %1786 = vmatprep.subr.bf16.mxu0 0
        %1787 = vmatpush1.bf16.msra.mxu0 0
        %1788 = vmatprep.subr.bf16.mxu0 0
        %1789 = vmatpush1.bf16.msra.mxu0 0
        %1790 = vmatprep.subr.bf16.mxu0 0
        %1791 = vmatpush1.bf16.msra.mxu0 0
        %1792 = vmatprep.subr.bf16.mxu0 0
        %1793 = vmatpush1.bf16.msra.mxu0 0
        %1794 = vmatprep.subr.bf16.mxu0 0
        %1795 = vmatpush1.bf16.msra.mxu0 0
        %1796 = vmatprep.subr.bf16.mxu0 0
        %1797 = vmatpush1.bf16.msra.mxu0 0
        %1798 = vmatprep.subr.bf16.mxu0 0
        %1799 = vmatpush1.bf16.msra.mxu0 0
        %1800 = vmatprep.subr.bf16.mxu0 0
        %1801 = vmatpush1.bf16.msra.mxu0 0
        %1802 = vmatprep.mubr.bf16.mxu0 0
        %1803 = vmatmul.mubr.bf16.gmra.mrb[0].mxu0 %v263
        %v1804 = vpop.f32.mrb[0].mxu0
        %v1805 = vadd.f32 %v1752, %v1804
        %v1806 = vpop.f32.mrb[0].mxu0
        %v1807 = vadd.f32 %v1754, %v1806
        %v1808 = vpop.f32.mrb[0].mxu0
        %v1809 = vadd.f32 %v1756, %v1808
        %v1810 = vpop.f32.mrb[0].mxu0
        %v1811 = vadd.f32 %v1758, %v1810
        %1812 = vmatprep.mubr.bf16.mxu0 0
        %1813 = vmatmul.mubr.bf16.gmra.mrb[0].mxu0 %v266
        %v1814 = vpop.f32.mrb[0].mxu0
        %v1815 = vadd.f32 %v1762, %v1814
        %v1816 = vpop.f32.mrb[0].mxu0
        %v1817 = vadd.f32 %v1764, %v1816
        %v1818 = vpop.f32.mrb[0].mxu0
        %v1819 = vadd.f32 %v1766, %v1818
        %v1820 = vpop.f32.mrb[0].mxu0
        %v1821 = vadd.f32 %v1768, %v1820
        %1822 = vdwg.mxu0
        %1823 = vmatprep.subr.bf16.mxu0 %v1184
        %1824 = vmatpush1.bf16.msra.mxu0 %v1183
        %1825 = vmatprep.subr.bf16.mxu0 %v1193
        %1826 = vmatpush1.bf16.msra.mxu0 %v1192
        %1827 = vmatprep.subr.bf16.mxu0 %v1202
        %1828 = vmatpush1.bf16.msra.mxu0 %v1201
        %1829 = vmatprep.subr.bf16.mxu0 %v1211
        %1830 = vmatpush1.bf16.msra.mxu0 %v1210
        %1831 = vmatprep.subr.bf16.mxu0 %v1220
        %1832 = vmatpush1.bf16.msra.mxu0 %v1219
        %1833 = vmatprep.subr.bf16.mxu0 %v1229
        %1834 = vmatpush1.bf16.msra.mxu0 %v1228
        %1835 = vmatprep.subr.bf16.mxu0 %v1238
        %1836 = vmatpush1.bf16.msra.mxu0 %v1237
        %1837 = vmatprep.subr.bf16.mxu0 %v1247
        %1838 = vmatpush1.bf16.msra.mxu0 %v1246
        %1839 = vmatprep.subr.bf16.mxu0 %v1256
        %1840 = vmatpush1.bf16.msra.mxu0 %v1255
        %1841 = vmatprep.subr.bf16.mxu0 %v1265
        %1842 = vmatpush1.bf16.msra.mxu0 %v1264
        %1843 = vmatprep.subr.bf16.mxu0 %v1274
        %1844 = vmatpush1.bf16.msra.mxu0 %v1273
        %1845 = vmatprep.subr.bf16.mxu0 %v1283
        %1846 = vmatpush1.bf16.msra.mxu0 %v1282
        %1847 = vmatprep.subr.bf16.mxu0 %v1292
        %1848 = vmatpush1.bf16.msra.mxu0 %v1291
        %1849 = vmatprep.subr.bf16.mxu0 %v1301
        %1850 = vmatpush1.bf16.msra.mxu0 %v1300
        %1851 = vmatprep.subr.bf16.mxu0 %v1310
        %1852 = vmatpush1.bf16.msra.mxu0 %v1309
        %1853 = vmatprep.subr.bf16.mxu0 %v1319
        %1854 = vmatpush1.bf16.msra.mxu0 %v1318
        %1855 = vmatprep.mubr.bf16.mxu0 %v262
        %1856 = vmatmul.mubr.bf16.gmra.mrb[0].mxu0 %v261
        %v1857 = vpop.f32.mrb[0].mxu0
        %v1858 = vadd.f32 0.0, %v1857
        %v1859 = vpop.f32.mrb[0].mxu0
        %v1860 = vadd.f32 0.0, %v1859
        %v1861 = vpop.f32.mrb[0].mxu0
        %v1862 = vadd.f32 0.0, %v1861
        %v1863 = vpop.f32.mrb[0].mxu0
        %v1864 = vadd.f32 0.0, %v1863
        %1865 = vmatprep.mubr.bf16.mxu0 %v265
        %1866 = vmatmul.mubr.bf16.gmra.mrb[0].mxu0 %v264
        %v1867 = vpop.f32.mrb[0].mxu0
        %v1868 = vadd.f32 0.0, %v1867
        %v1869 = vpop.f32.mrb[0].mxu0
        %v1870 = vadd.f32 0.0, %v1869
        %v1871 = vpop.f32.mrb[0].mxu0
        %v1872 = vadd.f32 0.0, %v1871
        %v1873 = vpop.f32.mrb[0].mxu0
        %v1874 = vadd.f32 0.0, %v1873
        %1875 = vdwg.mxu0
        %1876 = vmatprep.subr.bf16.mxu0 %v1328
        %1877 = vmatpush1.bf16.msra.mxu0 %v1327
        %1878 = vmatprep.subr.bf16.mxu0 %v1337
        %1879 = vmatpush1.bf16.msra.mxu0 %v1336
        %1880 = vmatprep.subr.bf16.mxu0 %v1346
        %1881 = vmatpush1.bf16.msra.mxu0 %v1345
        %1882 = vmatprep.subr.bf16.mxu0 %v1355
        %1883 = vmatpush1.bf16.msra.mxu0 %v1354
        %1884 = vmatprep.subr.bf16.mxu0 %v1364
        %1885 = vmatpush1.bf16.msra.mxu0 %v1363
        %1886 = vmatprep.subr.bf16.mxu0 %v1373
        %1887 = vmatpush1.bf16.msra.mxu0 %v1372
        %1888 = vmatprep.subr.bf16.mxu0 %v1382
        %1889 = vmatpush1.bf16.msra.mxu0 %v1381
        %1890 = vmatprep.subr.bf16.mxu0 %v1391
        %1891 = vmatpush1.bf16.msra.mxu0 %v1390
        %1892 = vmatprep.subr.bf16.mxu0 0
        %1893 = vmatpush1.bf16.msra.mxu0 0
        %1894 = vmatprep.subr.bf16.mxu0 0
        %1895 = vmatpush1.bf16.msra.mxu0 0
        %1896 = vmatprep.subr.bf16.mxu0 0
        %1897 = vmatpush1.bf16.msra.mxu0 0
        %1898 = vmatprep.subr.bf16.mxu0 0
        %1899 = vmatpush1.bf16.msra.mxu0 0
        %1900 = vmatprep.subr.bf16.mxu0 0
        %1901 = vmatpush1.bf16.msra.mxu0 0
        %1902 = vmatprep.subr.bf16.mxu0 0
        %1903 = vmatpush1.bf16.msra.mxu0 0
        %1904 = vmatprep.subr.bf16.mxu0 0
        %1905 = vmatpush1.bf16.msra.mxu0 0
        %1906 = vmatprep.subr.bf16.mxu0 0
        %1907 = vmatpush1.bf16.msra.mxu0 0
        %1908 = vmatprep.mubr.bf16.mxu0 0
        %1909 = vmatmul.mubr.bf16.gmra.mrb[0].mxu0 %v263
        %v1910 = vpop.f32.mrb[0].mxu0
        %v1911 = vadd.f32 %v1858, %v1910
        %v1912 = vpop.f32.mrb[0].mxu0
        %v1913 = vadd.f32 %v1860, %v1912
        %v1914 = vpop.f32.mrb[0].mxu0
        %v1915 = vadd.f32 %v1862, %v1914
        %v1916 = vpop.f32.mrb[0].mxu0
        %v1917 = vadd.f32 %v1864, %v1916
        %1918 = vmatprep.mubr.bf16.mxu0 0
        %1919 = vmatmul.mubr.bf16.gmra.mrb[0].mxu0 %v266
        %v1920 = vpop.f32.mrb[0].mxu0
        %v1921 = vadd.f32 %v1868, %v1920
        %v1922 = vpop.f32.mrb[0].mxu0
        %v1923 = vadd.f32 %v1870, %v1922
        %v1924 = vpop.f32.mrb[0].mxu0
        %v1925 = vadd.f32 %v1872, %v1924
        %v1926 = vpop.f32.mrb[0].mxu0
        %v1927 = vadd.f32 %v1874, %v1926
        %1928 = vdwg.mxu0
        %1929 = vmatprep.subr.bf16.mxu0 %v1186
        %1930 = vmatpush1.bf16.msra.mxu0 %v1185
        %1931 = vmatprep.subr.bf16.mxu0 %v1195
        %1932 = vmatpush1.bf16.msra.mxu0 %v1194
        %1933 = vmatprep.subr.bf16.mxu0 %v1204
        %1934 = vmatpush1.bf16.msra.mxu0 %v1203
        %1935 = vmatprep.subr.bf16.mxu0 %v1213
        %1936 = vmatpush1.bf16.msra.mxu0 %v1212
        %1937 = vmatprep.subr.bf16.mxu0 %v1222
        %1938 = vmatpush1.bf16.msra.mxu0 %v1221
        %1939 = vmatprep.subr.bf16.mxu0 %v1231
        %1940 = vmatpush1.bf16.msra.mxu0 %v1230
        %1941 = vmatprep.subr.bf16.mxu0 %v1240
        %1942 = vmatpush1.bf16.msra.mxu0 %v1239
        %1943 = vmatprep.subr.bf16.mxu0 %v1249
        %1944 = vmatpush1.bf16.msra.mxu0 %v1248
        %1945 = vmatprep.subr.bf16.mxu0 %v1258
        %1946 = vmatpush1.bf16.msra.mxu0 %v1257
        %1947 = vmatprep.subr.bf16.mxu0 %v1267
        %1948 = vmatpush1.bf16.msra.mxu0 %v1266
        %1949 = vmatprep.subr.bf16.mxu0 %v1276
        %1950 = vmatpush1.bf16.msra.mxu0 %v1275
        %1951 = vmatprep.subr.bf16.mxu0 %v1285
        %1952 = vmatpush1.bf16.msra.mxu0 %v1284
        %1953 = vmatprep.subr.bf16.mxu0 %v1294
        %1954 = vmatpush1.bf16.msra.mxu0 %v1293
        %1955 = vmatprep.subr.bf16.mxu0 %v1303
        %1956 = vmatpush1.bf16.msra.mxu0 %v1302
        %1957 = vmatprep.subr.bf16.mxu0 %v1312
        %1958 = vmatpush1.bf16.msra.mxu0 %v1311
        %1959 = vmatprep.subr.bf16.mxu0 %v1321
        %1960 = vmatpush1.bf16.msra.mxu0 %v1320
        %1961 = vmatprep.mubr.bf16.mxu0 %v262
        %1962 = vmatmul.mubr.bf16.gmra.mrb[0].mxu0 %v261
        %v1963 = vpop.f32.mrb[0].mxu0
        %v1964 = vadd.f32 0.0, %v1963
        %v1965 = vpop.f32.mrb[0].mxu0
        %v1966 = vadd.f32 0.0, %v1965
        %v1967 = vpop.f32.mrb[0].mxu0
        %v1968 = vadd.f32 0.0, %v1967
        %v1969 = vpop.f32.mrb[0].mxu0
        %v1970 = vadd.f32 0.0, %v1969
        %1971 = vmatprep.mubr.bf16.mxu0 %v265
        %1972 = vmatmul.mubr.bf16.gmra.mrb[0].mxu0 %v264
        %v1973 = vpop.f32.mrb[0].mxu0
        %v1974 = vadd.f32 0.0, %v1973
        %v1975 = vpop.f32.mrb[0].mxu0
        %v1976 = vadd.f32 0.0, %v1975
        %v1977 = vpop.f32.mrb[0].mxu0
        %v1978 = vadd.f32 0.0, %v1977
        %v1979 = vpop.f32.mrb[0].mxu0
        %v1980 = vadd.f32 0.0, %v1979
        %1981 = vdwg.mxu0
        %1982 = vmatprep.subr.bf16.mxu0 %v1330
        %1983 = vmatpush1.bf16.msra.mxu0 %v1329
        %1984 = vmatprep.subr.bf16.mxu0 %v1339
        %1985 = vmatpush1.bf16.msra.mxu0 %v1338
        %1986 = vmatprep.subr.bf16.mxu0 %v1348
        %1987 = vmatpush1.bf16.msra.mxu0 %v1347
        %1988 = vmatprep.subr.bf16.mxu0 %v1357
        %1989 = vmatpush1.bf16.msra.mxu0 %v1356
        %1990 = vmatprep.subr.bf16.mxu0 %v1366
        %1991 = vmatpush1.bf16.msra.mxu0 %v1365
        %1992 = vmatprep.subr.bf16.mxu0 %v1375
        %1993 = vmatpush1.bf16.msra.mxu0 %v1374
        %1994 = vmatprep.subr.bf16.mxu0 %v1384
        %1995 = vmatpush1.bf16.msra.mxu0 %v1383
        %1996 = vmatprep.subr.bf16.mxu0 %v1393
        %1997 = vmatpush1.bf16.msra.mxu0 %v1392
        %1998 = vmatprep.subr.bf16.mxu0 0
        %1999 = vmatpush1.bf16.msra.mxu0 0
        %2000 = vmatprep.subr.bf16.mxu0 0
        %2001 = vmatpush1.bf16.msra.mxu0 0
        %2002 = vmatprep.subr.bf16.mxu0 0
        %2003 = vmatpush1.bf16.msra.mxu0 0
        %2004 = vmatprep.subr.bf16.mxu0 0
        %2005 = vmatpush1.bf16.msra.mxu0 0
        %2006 = vmatprep.subr.bf16.mxu0 0
        %2007 = vmatpush1.bf16.msra.mxu0 0
        %2008 = vmatprep.subr.bf16.mxu0 0
        %2009 = vmatpush1.bf16.msra.mxu0 0
        %2010 = vmatprep.subr.bf16.mxu0 0
        %2011 = vmatpush1.bf16.msra.mxu0 0
        %2012 = vmatprep.subr.bf16.mxu0 0
        %2013 = vmatpush1.bf16.msra.mxu0 0
        %2014 = vmatprep.mubr.bf16.mxu0 0
        %2015 = vmatmul.mubr.bf16.gmra.mrb[0].mxu0 %v263
        %v2016 = vpop.f32.mrb[0].mxu0
        %v2017 = vadd.f32 %v1964, %v2016
        %v2018 = vpop.f32.mrb[0].mxu0
        %v2019 = vadd.f32 %v1966, %v2018
        %v2020 = vpop.f32.mrb[0].mxu0
        %v2021 = vadd.f32 %v1968, %v2020
        %v2022 = vpop.f32.mrb[0].mxu0
        %v2023 = vadd.f32 %v1970, %v2022
        %2024 = vmatprep.mubr.bf16.mxu0 0
        %2025 = vmatmul.mubr.bf16.gmra.mrb[0].mxu0 %v266
        %v2026 = vpop.f32.mrb[0].mxu0
        %v2027 = vadd.f32 %v1974, %v2026
        %v2028 = vpop.f32.mrb[0].mxu0
        %v2029 = vadd.f32 %v1976, %v2028
        %v2030 = vpop.f32.mrb[0].mxu0
        %v2031 = vadd.f32 %v1978, %v2030
        %v2032 = vpop.f32.mrb[0].mxu0
        %v2033 = vadd.f32 %v1980, %v2032
        %2034 = vdwg.mxu0
        %2035 = vmatprep.subr.bf16.mxu0 0
        %2036 = vmatpush1.bf16.msra.mxu0 %v1187
        %2037 = vmatprep.subr.bf16.mxu0 0
        %2038 = vmatpush1.bf16.msra.mxu0 %v1196
        %2039 = vmatprep.subr.bf16.mxu0 0
        %2040 = vmatpush1.bf16.msra.mxu0 %v1205
        %2041 = vmatprep.subr.bf16.mxu0 0
        %2042 = vmatpush1.bf16.msra.mxu0 %v1214
        %2043 = vmatprep.subr.bf16.mxu0 0
        %2044 = vmatpush1.bf16.msra.mxu0 %v1223
        %2045 = vmatprep.subr.bf16.mxu0 0
        %2046 = vmatpush1.bf16.msra.mxu0 %v1232
        %2047 = vmatprep.subr.bf16.mxu0 0
        %2048 = vmatpush1.bf16.msra.mxu0 %v1241
        %2049 = vmatprep.subr.bf16.mxu0 0
        %2050 = vmatpush1.bf16.msra.mxu0 %v1250
        %2051 = vmatprep.subr.bf16.mxu0 0
        %2052 = vmatpush1.bf16.msra.mxu0 %v1259
        %2053 = vmatprep.subr.bf16.mxu0 0
        %2054 = vmatpush1.bf16.msra.mxu0 %v1268
        %2055 = vmatprep.subr.bf16.mxu0 0
        %2056 = vmatpush1.bf16.msra.mxu0 %v1277
        %2057 = vmatprep.subr.bf16.mxu0 0
        %2058 = vmatpush1.bf16.msra.mxu0 %v1286
        %2059 = vmatprep.subr.bf16.mxu0 0
        %2060 = vmatpush1.bf16.msra.mxu0 %v1295
        %2061 = vmatprep.subr.bf16.mxu0 0
        %2062 = vmatpush1.bf16.msra.mxu0 %v1304
        %2063 = vmatprep.subr.bf16.mxu0 0
        %2064 = vmatpush1.bf16.msra.mxu0 %v1313
        %2065 = vmatprep.subr.bf16.mxu0 0
        %2066 = vmatpush1.bf16.msra.mxu0 %v1322
        %2067 = vmatprep.mubr.bf16.mxu0 %v262
        %2068 = vmatmul.mubr.bf16.gmra.mrb[0].mxu0 %v261
        %v2069 = vpop.f32.mrb[0].mxu0
        %v2070 = vadd.f32 0.0, %v2069
        %v2071 = vpop.f32.mrb[0].mxu0
        %v2072 = vpop.f32.mrb[0].mxu0
        %v2073 = vadd.f32 0.0, %v2072
        %v2074 = vpop.f32.mrb[0].mxu0
        %2075 = vmatprep.mubr.bf16.mxu0 %v265
        %2076 = vmatmul.mubr.bf16.gmra.mrb[0].mxu0 %v264
        %v2077 = vpop.f32.mrb[0].mxu0
        %v2078 = vadd.f32 0.0, %v2077
        %v2079 = vpop.f32.mrb[0].mxu0
        %v2080 = vpop.f32.mrb[0].mxu0
        %v2081 = vadd.f32 0.0, %v2080
        %v2082 = vpop.f32.mrb[0].mxu0
        %2083 = vdwg.mxu0
        %2084 = vmatprep.subr.bf16.mxu0 0
        %2085 = vmatpush1.bf16.msra.mxu0 %v1331
        %2086 = vmatprep.subr.bf16.mxu0 0
        %2087 = vmatpush1.bf16.msra.mxu0 %v1340
        %2088 = vmatprep.subr.bf16.mxu0 0
        %2089 = vmatpush1.bf16.msra.mxu0 %v1349
        %2090 = vmatprep.subr.bf16.mxu0 0
        %2091 = vmatpush1.bf16.msra.mxu0 %v1358
        %2092 = vmatprep.subr.bf16.mxu0 0
        %2093 = vmatpush1.bf16.msra.mxu0 %v1367
        %2094 = vmatprep.subr.bf16.mxu0 0
        %2095 = vmatpush1.bf16.msra.mxu0 %v1376
        %2096 = vmatprep.subr.bf16.mxu0 0
        %2097 = vmatpush1.bf16.msra.mxu0 %v1385
        %2098 = vmatprep.subr.bf16.mxu0 0
        %2099 = vmatpush1.bf16.msra.mxu0 %v1394
        %2100 = vmatprep.subr.bf16.mxu0 0
        %2101 = vmatpush1.bf16.msra.mxu0 0
        %2102 = vmatprep.subr.bf16.mxu0 0
        %2103 = vmatpush1.bf16.msra.mxu0 0
        %2104 = vmatprep.subr.bf16.mxu0 0
        %2105 = vmatpush1.bf16.msra.mxu0 0
        %2106 = vmatprep.subr.bf16.mxu0 0
        %2107 = vmatpush1.bf16.msra.mxu0 0
        %2108 = vmatprep.subr.bf16.mxu0 0
        %2109 = vmatpush1.bf16.msra.mxu0 0
        %2110 = vmatprep.subr.bf16.mxu0 0
        %2111 = vmatpush1.bf16.msra.mxu0 0
        %2112 = vmatprep.subr.bf16.mxu0 0
        %2113 = vmatpush1.bf16.msra.mxu0 0
        %2114 = vmatprep.subr.bf16.mxu0 0
        %2115 = vmatpush1.bf16.msra.mxu0 0
        %2116 = vmatprep.mubr.bf16.mxu0 0
        %2117 = vmatmul.mubr.bf16.gmra.mrb[0].mxu0 %v263
        %v2118 = vpop.f32.mrb[0].mxu0
        %v2119 = vadd.f32 %v2070, %v2118
        %v2120 = vpop.f32.mrb[0].mxu0
        %v2121 = vpop.f32.mrb[0].mxu0
        %v2122 = vadd.f32 %v2073, %v2121
        %v2123 = vpop.f32.mrb[0].mxu0
        %2124 = vmatprep.mubr.bf16.mxu0 0
        %2125 = vmatmul.mubr.bf16.gmra.mrb[0].mxu0 %v266
        %v2126 = vpop.f32.mrb[0].mxu0
        %v2127 = vadd.f32 %v2078, %v2126
        %v2128 = vpop.f32.mrb[0].mxu0
        %v2129 = vpop.f32.mrb[0].mxu0
        %v2130 = vadd.f32 %v2081, %v2129
        %v2131 = vpop.f32.mrb[0].mxu0
        %2132 = vdwg.mxu0
        %v2133 = vpack.c.bf16 %v1703, %v1699
        %v2134 = vpack.c.bf16 %v1705, %v1701
        %v2135 = vpack.c.bf16 %v1809, %v1805
        %v2136 = vpack.c.bf16 %v1811, %v1807
        %v2137 = vpack.c.bf16 %v1915, %v1911
        %v2138 = vpack.c.bf16 %v1917, %v1913
        %v2139 = vpack.c.bf16 %v2021, %v2017
        %v2140 = vpack.c.bf16 %v2023, %v2019
        %v2141 = vpack.c.bf16 %v2122, %v2119
        %v2142 = vpack.c.bf16 %v1713, %v1709
        %v2143 = vpack.c.bf16 %v1715, %v1711
        %v2144 = vpack.c.bf16 %v1819, %v1815
        %v2145 = vpack.c.bf16 %v1821, %v1817
        %v2146 = vpack.c.bf16 %v1925, %v1921
        %v2147 = vpack.c.bf16 %v1927, %v1923
        %v2148 = vpack.c.bf16 %v2031, %v2027
        %v2149 = vpack.c.bf16 %v2033, %v2029
        %v2150 = vpack.c.bf16 %v2130, %v2127
        %v2151 = vlaneseq
        %v2152 = vshrl.u32 %v2151, 7
        %v2153 = vadd.s32 %v2152, 8
        %v2154 = vlaneseq
        %v2155 = vand.u32 %v2154, 127
        %vm2156 = vcmp.le.s32.totalorder %v2155, %v2152
        %vm2157 = vcmp.le.s32.totalorder %v2155, %v2153
        %vm2158 = vcmask 523264
        %v2160 = vsel %vm2158, %v2133, 0
        %v2163 = vsel %vm2158, %v2136, 0
        %2165 = vmatprep.subr.bf16.mxu0 0
        %2166 = vmatpush1.bf16.xpose.msra.mxu0 %v2163
        %2167 = vmatprep.subr.bf16.mxu0 0
        %2168 = vmatpush1.bf16.xpose.msra.mxu0 0
        %2169 = vmatprep.subr.bf16.mxu0 0
        %2170 = vmatpush1.bf16.xpose.msra.mxu0 0
        %2171 = vmatprep.subr.bf16.mxu0 0
        %2172 = vmatpush1.bf16.xpose.msra.mxu0 0
        %2173 = vmatprep.subr.bf16.mxu0 0
        %2174 = vmatpush1.bf16.xpose.msra.mxu0 0
        %2175 = vmatprep.subr.bf16.mxu0 0
        %2176 = vmatpush1.bf16.xpose.msra.mxu0 0
        %2177 = vmatprep.subr.bf16.mxu0 0
        %2178 = vmatpush1.bf16.xpose.msra.mxu0 0
        %2179 = vmatprep.subr.bf16.mxu0 0
        %2180 = vmatpush1.bf16.xpose.msra.mxu0 0
        %2181 = vmatprep.subr.bf16.mxu0 0
        %2182 = vmatpush1.bf16.xpose.msra.mxu0 0
        %2183 = vmatprep.subr.bf16.mxu0 0
        %2184 = vmatpush1.bf16.xpose.msra.mxu0 0
        %2185 = vmatprep.subr.bf16.mxu0 0
        %2186 = vmatpush1.bf16.xpose.msra.mxu0 0
        %2187 = vmatprep.subr.bf16.mxu0 0
        %2188 = vmatpush1.bf16.xpose.msra.mxu0 0
        %2189 = vmatprep.subr.bf16.mxu0 0
        %2190 = vmatpush1.bf16.xpose.msra.mxu0 0
        %2191 = vmatprep.subr.bf16.mxu0 0
        %2192 = vmatpush1.bf16.xpose.msra.mxu0 0
        %2193 = vmatprep.subr.bf16.mxu0 0
        %2194 = vmatpush1.bf16.xpose.msra.mxu0 0
        %2195 = vmatprep.subr.bf16.mxu0 0
        %2196 = vmatpush1.bf16.xpose.msra.mxu0 0
        %2197 = vmatprep.mubr.bf16.mxu0 0
        %2198 = vmatmul.mubr.bf16.gmra.mrb[0].mxu0 %v2160
        %v2199 = vpop.f32.mrb[0].mxu0
        %v2200 = vadd.f32 0.0, %v2199
        %v2201 = vpop.f32.mrb[0].mxu0
        %v2202 = vpop.f32.mrb[0].mxu0
        %v2203 = vadd.f32 0.0, %v2202
        %v2204 = vpop.f32.mrb[0].mxu0
        %2205 = vdwg.mxu0
        %v2207 = vsel %vm2158, %v2142, 0
        %v2210 = vsel %vm2158, %v2145, 0
        %2212 = vmatprep.subr.bf16.mxu0 0
        %2213 = vmatpush1.bf16.xpose.msra.mxu0 %v2210
        %2214 = vmatprep.subr.bf16.mxu0 0
        %2215 = vmatpush1.bf16.xpose.msra.mxu0 0
        %2216 = vmatprep.subr.bf16.mxu0 0
        %2217 = vmatpush1.bf16.xpose.msra.mxu0 0
        %2218 = vmatprep.subr.bf16.mxu0 0
        %2219 = vmatpush1.bf16.xpose.msra.mxu0 0
        %2220 = vmatprep.subr.bf16.mxu0 0
        %2221 = vmatpush1.bf16.xpose.msra.mxu0 0
        %2222 = vmatprep.subr.bf16.mxu0 0
        %2223 = vmatpush1.bf16.xpose.msra.mxu0 0
        %2224 = vmatprep.subr.bf16.mxu0 0
        %2225 = vmatpush1.bf16.xpose.msra.mxu0 0
        %2226 = vmatprep.subr.bf16.mxu0 0
        %2227 = vmatpush1.bf16.xpose.msra.mxu0 0
        %2228 = vmatprep.subr.bf16.mxu0 0
        %2229 = vmatpush1.bf16.xpose.msra.mxu0 0
        %2230 = vmatprep.subr.bf16.mxu0 0
        %2231 = vmatpush1.bf16.xpose.msra.mxu0 0
        %2232 = vmatprep.subr.bf16.mxu0 0
        %2233 = vmatpush1.bf16.xpose.msra.mxu0 0
        %2234 = vmatprep.subr.bf16.mxu0 0
        %2235 = vmatpush1.bf16.xpose.msra.mxu0 0
        %2236 = vmatprep.subr.bf16.mxu0 0
        %2237 = vmatpush1.bf16.xpose.msra.mxu0 0
        %2238 = vmatprep.subr.bf16.mxu0 0
        %2239 = vmatpush1.bf16.xpose.msra.mxu0 0
        %2240 = vmatprep.subr.bf16.mxu0 0
        %2241 = vmatpush1.bf16.xpose.msra.mxu0 0
        %2242 = vmatprep.subr.bf16.mxu0 0
        %2243 = vmatpush1.bf16.xpose.msra.mxu0 0
        %2244 = vmatprep.mubr.bf16.mxu0 0
        %2245 = vmatmul.mubr.bf16.gmra.mrb[0].mxu0 %v2207
        %v2246 = vpop.f32.mrb[0].mxu0
        %v2247 = vadd.f32 0.0, %v2246
        %v2248 = vpop.f32.mrb[0].mxu0
        %v2249 = vpop.f32.mrb[0].mxu0
        %v2250 = vadd.f32 0.0, %v2249
        %v2251 = vpop.f32.mrb[0].mxu0
        %2252 = vdwg.mxu0
        %v2253 = vsel %vm2156, 1, 0
        %v2254 = vsel %vm2157, 1, 0
        %vm2255 = vcmp.eq.s32.totalorder %v2253, 1
        %vm2256 = vcmp.eq.s32.totalorder %v2254, 1
        %v2257 = vsel %vm2255, %v2200, -1e+30
        %v2258 = vsel %vm2256, %v2203, -1e+30
        %v2259 = vsel %vm2255, %v2247, -1e+30
        %v2260 = vsel %vm2256, %v2250, -1e+30
        %vm2261 = vcmask 130048
        %v2262 = vsel %vm2261, %v2257, -inf
        %2263 = vmax.xlane.f32.xlu0 %v2262
        %v2264 = vpop.xlane.xlu0 %2263
        %v2265 = vsel %vm2261, %v2258, -inf
        %2266 = vmax.xlane.f32.xlu0 %v2265
        %v2267 = vpop.xlane.xlu0 %2266
        %v2268 = vsel %vm2261, %v2259, -inf
        %2269 = vmax.xlane.f32.xlu0 %v2268
        %v2270 = vpop.xlane.xlu0 %2269
        %v2271 = vsel %vm2261, %v2260, -inf
        %2272 = vmax.xlane.f32.xlu0 %v2271
        %v2273 = vpop.xlane.xlu0 %2272
        %v2274 = vsub.f32 %v2257, %v2264
        %v2275 = vsub.f32 %v2258, %v2267
        %v2276 = vsub.f32 %v2259, %v2270
        %v2277 = vsub.f32 %v2260, %v2273
        %v2278 = vmul.f32 %v2274, 1.442695
        %v2279 = vpow.pop %v2278
        %v2280 = vmul.f32 %v2275, 1.442695
        %v2281 = vpow.pop %v2280
        %v2282 = vmul.f32 %v2276, 1.442695
        %v2283 = vpow.pop %v2282
        %v2284 = vmul.f32 %v2277, 1.442695
        %v2285 = vpow.pop %v2284
        %v2286 = vsel %vm2261, %v2279, 0.0
        %2287 = vadd.xlane.f32.xlu0 %v2286
        %v2288 = vpop.xlane.xlu0 %2287
        %v2289 = vsel %vm2261, %v2281, 0.0
        %2290 = vadd.xlane.f32.xlu0 %v2289
        %v2291 = vpop.xlane.xlu0 %2290
        %v2292 = vsel %vm2261, %v2283, 0.0
        %2293 = vadd.xlane.f32.xlu0 %v2292
        %v2294 = vpop.xlane.xlu0 %2293
        %v2295 = vsel %vm2261, %v2285, 0.0
        %2296 = vadd.xlane.f32.xlu0 %v2295
        %v2297 = vpop.xlane.xlu0 %2296
        %v2298 = vpack.c.bf16 %v2281, %v2279
        %v2299 = vpack.c.bf16 %v2285, %v2283
        %v2301 = vsel %vm2261, %v2298, 0
        %2303 = vmatprep.subr.bf16.mxu0 0
        %2304 = vmatpush1.bf16.msra.mxu0 %v2139
        %2305 = vmatprep.subr.bf16.mxu0 0
        %2306 = vmatpush1.bf16.msra.mxu0 0
        %2307 = vmatprep.subr.bf16.mxu0 0
        %2308 = vmatpush1.bf16.msra.mxu0 0
        %2309 = vmatprep.subr.bf16.mxu0 0
        %2310 = vmatpush1.bf16.msra.mxu0 0
        %2311 = vmatprep.subr.bf16.mxu0 0
        %2312 = vmatpush1.bf16.msra.mxu0 0
        %2313 = vmatprep.subr.bf16.mxu0 0
        %2314 = vmatpush1.bf16.msra.mxu0 0
        %2315 = vmatprep.subr.bf16.mxu0 0
        %2316 = vmatpush1.bf16.msra.mxu0 0
        %2317 = vmatprep.subr.bf16.mxu0 0
        %2318 = vmatpush1.bf16.msra.mxu0 0
        %2319 = vmatprep.subr.bf16.mxu0 0
        %2320 = vmatpush1.bf16.msra.mxu0 0
        %2321 = vmatprep.subr.bf16.mxu0 0
        %2322 = vmatpush1.bf16.msra.mxu0 0
        %2323 = vmatprep.subr.bf16.mxu0 0
        %2324 = vmatpush1.bf16.msra.mxu0 0
        %2325 = vmatprep.subr.bf16.mxu0 0
        %2326 = vmatpush1.bf16.msra.mxu0 0
        %2327 = vmatprep.subr.bf16.mxu0 0
        %2328 = vmatpush1.bf16.msra.mxu0 0
        %2329 = vmatprep.subr.bf16.mxu0 0
        %2330 = vmatpush1.bf16.msra.mxu0 0
        %2331 = vmatprep.subr.bf16.mxu0 0
        %2332 = vmatpush1.bf16.msra.mxu0 0
        %2333 = vmatprep.subr.bf16.mxu0 0
        %2334 = vmatpush1.bf16.msra.mxu0 0
        %2335 = vmatprep.mubr.bf16.mxu0 0
        %2336 = vmatmul.mubr.bf16.gmra.mrb[0].mxu0 %v2301
        %v2337 = vpop.f32.mrb[0].mxu0
        %v2338 = vadd.f32 0.0, %v2337
        %v2339 = vpop.f32.mrb[0].mxu0
        %v2340 = vpop.f32.mrb[0].mxu0
        %v2341 = vadd.f32 0.0, %v2340
        %v2342 = vpop.f32.mrb[0].mxu0
        %2343 = vdwg.mxu0
        %v2345 = vsel %vm2261, %v2299, 0
        %2347 = vmatprep.subr.bf16.mxu0 0
        %2348 = vmatpush1.bf16.msra.mxu0 %v2148
        %2349 = vmatprep.subr.bf16.mxu0 0
        %2350 = vmatpush1.bf16.msra.mxu0 0
        %2351 = vmatprep.subr.bf16.mxu0 0
        %2352 = vmatpush1.bf16.msra.mxu0 0
        %2353 = vmatprep.subr.bf16.mxu0 0
        %2354 = vmatpush1.bf16.msra.mxu0 0
        %2355 = vmatprep.subr.bf16.mxu0 0
        %2356 = vmatpush1.bf16.msra.mxu0 0
        %2357 = vmatprep.subr.bf16.mxu0 0
        %2358 = vmatpush1.bf16.msra.mxu0 0
        %2359 = vmatprep.subr.bf16.mxu0 0
        %2360 = vmatpush1.bf16.msra.mxu0 0
        %2361 = vmatprep.subr.bf16.mxu0 0
        %2362 = vmatpush1.bf16.msra.mxu0 0
        %2363 = vmatprep.subr.bf16.mxu0 0
        %2364 = vmatpush1.bf16.msra.mxu0 0
        %2365 = vmatprep.subr.bf16.mxu0 0
        %2366 = vmatpush1.bf16.msra.mxu0 0
        %2367 = vmatprep.subr.bf16.mxu0 0
        %2368 = vmatpush1.bf16.msra.mxu0 0
        %2369 = vmatprep.subr.bf16.mxu0 0
        %2370 = vmatpush1.bf16.msra.mxu0 0
        %2371 = vmatprep.subr.bf16.mxu0 0
        %2372 = vmatpush1.bf16.msra.mxu0 0
        %2373 = vmatprep.subr.bf16.mxu0 0
        %2374 = vmatpush1.bf16.msra.mxu0 0
        %2375 = vmatprep.subr.bf16.mxu0 0
        %2376 = vmatpush1.bf16.msra.mxu0 0
        %2377 = vmatprep.subr.bf16.mxu0 0
        %2378 = vmatpush1.bf16.msra.mxu0 0
        %2379 = vmatprep.mubr.bf16.mxu0 0
        %2380 = vmatmul.mubr.bf16.gmra.mrb[0].mxu0 %v2345
        %v2381 = vpop.f32.mrb[0].mxu0
        %v2382 = vadd.f32 0.0, %v2381
        %v2383 = vpop.f32.mrb[0].mxu0
        %v2384 = vpop.f32.mrb[0].mxu0
        %v2385 = vadd.f32 0.0, %v2384
        %v2386 = vpop.f32.mrb[0].mxu0
        %2387 = vdwg.mxu0
        %v2388 = vrcp.pop %v2288
        %v2389 = vrcp.pop %v2291
        %v2390 = vrcp.pop %v2294
        %v2391 = vrcp.pop %v2297
        %v2392 = vmul.f32 %v2338, %v2388
        %v2393 = vmul.f32 %v2341, %v2389
        %v2394 = vmul.f32 %v2382, %v2390
        %v2395 = vmul.f32 %v2385, %v2391
        %v2396 = vpack.c.bf16 %v2393, %v2392
        %v2397 = vpack.c.bf16 %v2395, %v2394
        %2399 = vrot.lane.b32.xlu0 %v2133, 64
        %v2400 = vpop.permute.xlu0 %2399
        %2402 = vrot.lane.b32.xlu0 %v2136, 64
        %v2403 = vpop.permute.xlu0 %2402
        %v2405 = vsel %vm2158, %v2400, 0
        %v2408 = vsel %vm2158, %v2403, 0
        %2410 = vmatprep.subr.bf16.mxu0 0
        %2411 = vmatpush1.bf16.xpose.msra.mxu0 %v2408
        %2412 = vmatprep.subr.bf16.mxu0 0
        %2413 = vmatpush1.bf16.xpose.msra.mxu0 0
        %2414 = vmatprep.subr.bf16.mxu0 0
        %2415 = vmatpush1.bf16.xpose.msra.mxu0 0
        %2416 = vmatprep.subr.bf16.mxu0 0
        %2417 = vmatpush1.bf16.xpose.msra.mxu0 0
        %2418 = vmatprep.subr.bf16.mxu0 0
        %2419 = vmatpush1.bf16.xpose.msra.mxu0 0
        %2420 = vmatprep.subr.bf16.mxu0 0
        %2421 = vmatpush1.bf16.xpose.msra.mxu0 0
        %2422 = vmatprep.subr.bf16.mxu0 0
        %2423 = vmatpush1.bf16.xpose.msra.mxu0 0
        %2424 = vmatprep.subr.bf16.mxu0 0
        %2425 = vmatpush1.bf16.xpose.msra.mxu0 0
        %2426 = vmatprep.subr.bf16.mxu0 0
        %2427 = vmatpush1.bf16.xpose.msra.mxu0 0
        %2428 = vmatprep.subr.bf16.mxu0 0
        %2429 = vmatpush1.bf16.xpose.msra.mxu0 0
        %2430 = vmatprep.subr.bf16.mxu0 0
        %2431 = vmatpush1.bf16.xpose.msra.mxu0 0
        %2432 = vmatprep.subr.bf16.mxu0 0
        %2433 = vmatpush1.bf16.xpose.msra.mxu0 0
        %2434 = vmatprep.subr.bf16.mxu0 0
        %2435 = vmatpush1.bf16.xpose.msra.mxu0 0
        %2436 = vmatprep.subr.bf16.mxu0 0
        %2437 = vmatpush1.bf16.xpose.msra.mxu0 0
        %2438 = vmatprep.subr.bf16.mxu0 0
        %2439 = vmatpush1.bf16.xpose.msra.mxu0 0
        %2440 = vmatprep.subr.bf16.mxu0 0
        %2441 = vmatpush1.bf16.xpose.msra.mxu0 0
        %2442 = vmatprep.mubr.bf16.mxu0 0
        %2443 = vmatmul.mubr.bf16.gmra.mrb[0].mxu0 %v2405
        %v2444 = vpop.f32.mrb[0].mxu0
        %v2445 = vadd.f32 0.0, %v2444
        %v2446 = vpop.f32.mrb[0].mxu0
        %v2447 = vpop.f32.mrb[0].mxu0
        %v2448 = vadd.f32 0.0, %v2447
        %v2449 = vpop.f32.mrb[0].mxu0
        %2450 = vdwg.mxu0
        %2452 = vrot.lane.b32.xlu0 %v2142, 64
        %v2453 = vpop.permute.xlu0 %2452
        %2455 = vrot.lane.b32.xlu0 %v2145, 64
        %v2456 = vpop.permute.xlu0 %2455
        %v2458 = vsel %vm2158, %v2453, 0
        %v2461 = vsel %vm2158, %v2456, 0
        %2463 = vmatprep.subr.bf16.mxu0 0
        %2464 = vmatpush1.bf16.xpose.msra.mxu0 %v2461
        %2465 = vmatprep.subr.bf16.mxu0 0
        %2466 = vmatpush1.bf16.xpose.msra.mxu0 0
        %2467 = vmatprep.subr.bf16.mxu0 0
        %2468 = vmatpush1.bf16.xpose.msra.mxu0 0
        %2469 = vmatprep.subr.bf16.mxu0 0
        %2470 = vmatpush1.bf16.xpose.msra.mxu0 0
        %2471 = vmatprep.subr.bf16.mxu0 0
        %2472 = vmatpush1.bf16.xpose.msra.mxu0 0
        %2473 = vmatprep.subr.bf16.mxu0 0
        %2474 = vmatpush1.bf16.xpose.msra.mxu0 0
        %2475 = vmatprep.subr.bf16.mxu0 0
        %2476 = vmatpush1.bf16.xpose.msra.mxu0 0
        %2477 = vmatprep.subr.bf16.mxu0 0
        %2478 = vmatpush1.bf16.xpose.msra.mxu0 0
        %2479 = vmatprep.subr.bf16.mxu0 0
        %2480 = vmatpush1.bf16.xpose.msra.mxu0 0
        %2481 = vmatprep.subr.bf16.mxu0 0
        %2482 = vmatpush1.bf16.xpose.msra.mxu0 0
        %2483 = vmatprep.subr.bf16.mxu0 0
        %2484 = vmatpush1.bf16.xpose.msra.mxu0 0
        %2485 = vmatprep.subr.bf16.mxu0 0
        %2486 = vmatpush1.bf16.xpose.msra.mxu0 0
        %2487 = vmatprep.subr.bf16.mxu0 0
        %2488 = vmatpush1.bf16.xpose.msra.mxu0 0
        %2489 = vmatprep.subr.bf16.mxu0 0
        %2490 = vmatpush1.bf16.xpose.msra.mxu0 0
        %2491 = vmatprep.subr.bf16.mxu0 0
        %2492 = vmatpush1.bf16.xpose.msra.mxu0 0
        %2493 = vmatprep.subr.bf16.mxu0 0
        %2494 = vmatpush1.bf16.xpose.msra.mxu0 0
        %2495 = vmatprep.mubr.bf16.mxu0 0
        %2496 = vmatmul.mubr.bf16.gmra.mrb[0].mxu0 %v2458
        %v2497 = vpop.f32.mrb[0].mxu0
        %v2498 = vadd.f32 0.0, %v2497
        %v2499 = vpop.f32.mrb[0].mxu0
        %v2500 = vpop.f32.mrb[0].mxu0
        %v2501 = vadd.f32 0.0, %v2500
        %v2502 = vpop.f32.mrb[0].mxu0
        %2503 = vdwg.mxu0
        %v2504 = vsel %vm2255, %v2445, -1e+30
        %v2505 = vsel %vm2256, %v2448, -1e+30
        %v2506 = vsel %vm2255, %v2498, -1e+30
        %v2507 = vsel %vm2256, %v2501, -1e+30
        %v2508 = vsel %vm2261, %v2504, -inf
        %2509 = vmax.xlane.f32.xlu0 %v2508
        %v2510 = vpop.xlane.xlu0 %2509
        %v2511 = vsel %vm2261, %v2505, -inf
        %2512 = vmax.xlane.f32.xlu0 %v2511
        %v2513 = vpop.xlane.xlu0 %2512
        %v2514 = vsel %vm2261, %v2506, -inf
        %2515 = vmax.xlane.f32.xlu0 %v2514
        %v2516 = vpop.xlane.xlu0 %2515
        %v2517 = vsel %vm2261, %v2507, -inf
        %2518 = vmax.xlane.f32.xlu0 %v2517
        %v2519 = vpop.xlane.xlu0 %2518
        %v2520 = vsub.f32 %v2504, %v2510
        %v2521 = vsub.f32 %v2505, %v2513
        %v2522 = vsub.f32 %v2506, %v2516
        %v2523 = vsub.f32 %v2507, %v2519
        %v2524 = vmul.f32 %v2520, 1.442695
        %v2525 = vpow.pop %v2524
        %v2526 = vmul.f32 %v2521, 1.442695
        %v2527 = vpow.pop %v2526
        %v2528 = vmul.f32 %v2522, 1.442695
        %v2529 = vpow.pop %v2528
        %v2530 = vmul.f32 %v2523, 1.442695
        %v2531 = vpow.pop %v2530
        %v2532 = vsel %vm2261, %v2525, 0.0
        %2533 = vadd.xlane.f32.xlu0 %v2532
        %v2534 = vpop.xlane.xlu0 %2533
        %v2535 = vsel %vm2261, %v2527, 0.0
        %2536 = vadd.xlane.f32.xlu0 %v2535
        %v2537 = vpop.xlane.xlu0 %2536
        %v2538 = vsel %vm2261, %v2529, 0.0
        %2539 = vadd.xlane.f32.xlu0 %v2538
        %v2540 = vpop.xlane.xlu0 %2539
        %v2541 = vsel %vm2261, %v2531, 0.0
        %2542 = vadd.xlane.f32.xlu0 %v2541
        %v2543 = vpop.xlane.xlu0 %2542
        %v2544 = vpack.c.bf16 %v2527, %v2525
        %v2545 = vpack.c.bf16 %v2531, %v2529
        %2547 = vrot.lane.b32.xlu0 %v2139, 64
        %v2548 = vpop.permute.xlu0 %2547
        %v2551 = vsel %vm2261, %v2544, 0
        %2553 = vmatprep.subr.bf16.mxu0 0
        %2554 = vmatpush1.bf16.msra.mxu0 %v2548
        %2555 = vmatprep.subr.bf16.mxu0 0
        %2556 = vmatpush1.bf16.msra.mxu0 0
        %2557 = vmatprep.subr.bf16.mxu0 0
        %2558 = vmatpush1.bf16.msra.mxu0 0
        %2559 = vmatprep.subr.bf16.mxu0 0
        %2560 = vmatpush1.bf16.msra.mxu0 0
        %2561 = vmatprep.subr.bf16.mxu0 0
        %2562 = vmatpush1.bf16.msra.mxu0 0
        %2563 = vmatprep.subr.bf16.mxu0 0
        %2564 = vmatpush1.bf16.msra.mxu0 0
        %2565 = vmatprep.subr.bf16.mxu0 0
        %2566 = vmatpush1.bf16.msra.mxu0 0
        %2567 = vmatprep.subr.bf16.mxu0 0
        %2568 = vmatpush1.bf16.msra.mxu0 0
        %2569 = vmatprep.subr.bf16.mxu0 0
        %2570 = vmatpush1.bf16.msra.mxu0 0
        %2571 = vmatprep.subr.bf16.mxu0 0
        %2572 = vmatpush1.bf16.msra.mxu0 0
        %2573 = vmatprep.subr.bf16.mxu0 0
        %2574 = vmatpush1.bf16.msra.mxu0 0
        %2575 = vmatprep.subr.bf16.mxu0 0
        %2576 = vmatpush1.bf16.msra.mxu0 0
        %2577 = vmatprep.subr.bf16.mxu0 0
        %2578 = vmatpush1.bf16.msra.mxu0 0
        %2579 = vmatprep.subr.bf16.mxu0 0
        %2580 = vmatpush1.bf16.msra.mxu0 0
        %2581 = vmatprep.subr.bf16.mxu0 0
        %2582 = vmatpush1.bf16.msra.mxu0 0
        %2583 = vmatprep.subr.bf16.mxu0 0
        %2584 = vmatpush1.bf16.msra.mxu0 0
        %2585 = vmatprep.mubr.bf16.mxu0 0
        %2586 = vmatmul.mubr.bf16.gmra.mrb[0].mxu0 %v2551
        %v2587 = vpop.f32.mrb[0].mxu0
        %v2588 = vadd.f32 0.0, %v2587
        %v2589 = vpop.f32.mrb[0].mxu0
        %v2590 = vpop.f32.mrb[0].mxu0
        %v2591 = vadd.f32 0.0, %v2590
        %v2592 = vpop.f32.mrb[0].mxu0
        %2593 = vdwg.mxu0
        %2595 = vrot.lane.b32.xlu0 %v2148, 64
        %v2596 = vpop.permute.xlu0 %2595
        %v2599 = vsel %vm2261, %v2545, 0
        %2601 = vmatprep.subr.bf16.mxu0 0
        %2602 = vmatpush1.bf16.msra.mxu0 %v2596
        %2603 = vmatprep.subr.bf16.mxu0 0
        %2604 = vmatpush1.bf16.msra.mxu0 0
        %2605 = vmatprep.subr.bf16.mxu0 0
        %2606 = vmatpush1.bf16.msra.mxu0 0
        %2607 = vmatprep.subr.bf16.mxu0 0
        %2608 = vmatpush1.bf16.msra.mxu0 0
        %2609 = vmatprep.subr.bf16.mxu0 0
        %2610 = vmatpush1.bf16.msra.mxu0 0
        %2611 = vmatprep.subr.bf16.mxu0 0
        %2612 = vmatpush1.bf16.msra.mxu0 0
        %2613 = vmatprep.subr.bf16.mxu0 0
        %2614 = vmatpush1.bf16.msra.mxu0 0
        %2615 = vmatprep.subr.bf16.mxu0 0
        %2616 = vmatpush1.bf16.msra.mxu0 0
        %2617 = vmatprep.subr.bf16.mxu0 0
        %2618 = vmatpush1.bf16.msra.mxu0 0
        %2619 = vmatprep.subr.bf16.mxu0 0
        %2620 = vmatpush1.bf16.msra.mxu0 0
        %2621 = vmatprep.subr.bf16.mxu0 0
        %2622 = vmatpush1.bf16.msra.mxu0 0
        %2623 = vmatprep.subr.bf16.mxu0 0
        %2624 = vmatpush1.bf16.msra.mxu0 0
        %2625 = vmatprep.subr.bf16.mxu0 0
        %2626 = vmatpush1.bf16.msra.mxu0 0
        %2627 = vmatprep.subr.bf16.mxu0 0
        %2628 = vmatpush1.bf16.msra.mxu0 0
        %2629 = vmatprep.subr.bf16.mxu0 0
        %2630 = vmatpush1.bf16.msra.mxu0 0
        %2631 = vmatprep.subr.bf16.mxu0 0
        %2632 = vmatpush1.bf16.msra.mxu0 0
        %2633 = vmatprep.mubr.bf16.mxu0 0
        %2634 = vmatmul.mubr.bf16.gmra.mrb[0].mxu0 %v2599
        %v2635 = vpop.f32.mrb[0].mxu0
        %v2636 = vadd.f32 0.0, %v2635
        %v2637 = vpop.f32.mrb[0].mxu0
        %v2638 = vpop.f32.mrb[0].mxu0
        %v2639 = vadd.f32 0.0, %v2638
        %v2640 = vpop.f32.mrb[0].mxu0
        %2641 = vdwg.mxu0
        %v2642 = vrcp.pop %v2534
        %v2643 = vrcp.pop %v2537
        %v2644 = vrcp.pop %v2540
        %v2645 = vrcp.pop %v2543
        %v2646 = vmul.f32 %v2588, %v2642
        %v2647 = vmul.f32 %v2591, %v2643
        %v2648 = vmul.f32 %v2636, %v2644
        %v2649 = vmul.f32 %v2639, %v2645
        %v2650 = vpack.c.bf16 %v2647, %v2646
        %v2651 = vpack.c.bf16 %v2649, %v2648
        %v2653 = vsel %vm2158, %v2134, 0
        %v2656 = vsel %vm2158, %v2137, 0
        %2658 = vmatprep.subr.bf16.mxu0 0
        %2659 = vmatpush1.bf16.xpose.msra.mxu0 %v2656
        %2660 = vmatprep.subr.bf16.mxu0 0
        %2661 = vmatpush1.bf16.xpose.msra.mxu0 0
        %2662 = vmatprep.subr.bf16.mxu0 0
        %2663 = vmatpush1.bf16.xpose.msra.mxu0 0
        %2664 = vmatprep.subr.bf16.mxu0 0
        %2665 = vmatpush1.bf16.xpose.msra.mxu0 0
        %2666 = vmatprep.subr.bf16.mxu0 0
        %2667 = vmatpush1.bf16.xpose.msra.mxu0 0
        %2668 = vmatprep.subr.bf16.mxu0 0
        %2669 = vmatpush1.bf16.xpose.msra.mxu0 0
        %2670 = vmatprep.subr.bf16.mxu0 0
        %2671 = vmatpush1.bf16.xpose.msra.mxu0 0
        %2672 = vmatprep.subr.bf16.mxu0 0
        %2673 = vmatpush1.bf16.xpose.msra.mxu0 0
        %2674 = vmatprep.subr.bf16.mxu0 0
        %2675 = vmatpush1.bf16.xpose.msra.mxu0 0
        %2676 = vmatprep.subr.bf16.mxu0 0
        %2677 = vmatpush1.bf16.xpose.msra.mxu0 0
        %2678 = vmatprep.subr.bf16.mxu0 0
        %2679 = vmatpush1.bf16.xpose.msra.mxu0 0
        %2680 = vmatprep.subr.bf16.mxu0 0
        %2681 = vmatpush1.bf16.xpose.msra.mxu0 0
        %2682 = vmatprep.subr.bf16.mxu0 0
        %2683 = vmatpush1.bf16.xpose.msra.mxu0 0
        %2684 = vmatprep.subr.bf16.mxu0 0
        %2685 = vmatpush1.bf16.xpose.msra.mxu0 0
        %2686 = vmatprep.subr.bf16.mxu0 0
        %2687 = vmatpush1.bf16.xpose.msra.mxu0 0
        %2688 = vmatprep.subr.bf16.mxu0 0
        %2689 = vmatpush1.bf16.xpose.msra.mxu0 0
        %2690 = vmatprep.mubr.bf16.mxu0 0
        %2691 = vmatmul.mubr.bf16.gmra.mrb[0].mxu0 %v2653
        %v2692 = vpop.f32.mrb[0].mxu0
        %v2693 = vadd.f32 0.0, %v2692
        %v2694 = vpop.f32.mrb[0].mxu0
        %v2695 = vpop.f32.mrb[0].mxu0
        %v2696 = vadd.f32 0.0, %v2695
        %v2697 = vpop.f32.mrb[0].mxu0
        %2698 = vdwg.mxu0
        %v2700 = vsel %vm2158, %v2143, 0
        %v2703 = vsel %vm2158, %v2146, 0
        %2705 = vmatprep.subr.bf16.mxu0 0
        %2706 = vmatpush1.bf16.xpose.msra.mxu0 %v2703
        %2707 = vmatprep.subr.bf16.mxu0 0
        %2708 = vmatpush1.bf16.xpose.msra.mxu0 0
        %2709 = vmatprep.subr.bf16.mxu0 0
        %2710 = vmatpush1.bf16.xpose.msra.mxu0 0
        %2711 = vmatprep.subr.bf16.mxu0 0
        %2712 = vmatpush1.bf16.xpose.msra.mxu0 0
        %2713 = vmatprep.subr.bf16.mxu0 0
        %2714 = vmatpush1.bf16.xpose.msra.mxu0 0
        %2715 = vmatprep.subr.bf16.mxu0 0
        %2716 = vmatpush1.bf16.xpose.msra.mxu0 0
        %2717 = vmatprep.subr.bf16.mxu0 0
        %2718 = vmatpush1.bf16.xpose.msra.mxu0 0
        %2719 = vmatprep.subr.bf16.mxu0 0
        %2720 = vmatpush1.bf16.xpose.msra.mxu0 0
        %2721 = vmatprep.subr.bf16.mxu0 0
        %2722 = vmatpush1.bf16.xpose.msra.mxu0 0
        %2723 = vmatprep.subr.bf16.mxu0 0
        %2724 = vmatpush1.bf16.xpose.msra.mxu0 0
        %2725 = vmatprep.subr.bf16.mxu0 0
        %2726 = vmatpush1.bf16.xpose.msra.mxu0 0
        %2727 = vmatprep.subr.bf16.mxu0 0
        %2728 = vmatpush1.bf16.xpose.msra.mxu0 0
        %2729 = vmatprep.subr.bf16.mxu0 0
        %2730 = vmatpush1.bf16.xpose.msra.mxu0 0
        %2731 = vmatprep.subr.bf16.mxu0 0
        %2732 = vmatpush1.bf16.xpose.msra.mxu0 0
        %2733 = vmatprep.subr.bf16.mxu0 0
        %2734 = vmatpush1.bf16.xpose.msra.mxu0 0
        %2735 = vmatprep.subr.bf16.mxu0 0
        %2736 = vmatpush1.bf16.xpose.msra.mxu0 0
        %2737 = vmatprep.mubr.bf16.mxu0 0
        %2738 = vmatmul.mubr.bf16.gmra.mrb[0].mxu0 %v2700
        %v2739 = vpop.f32.mrb[0].mxu0
        %v2740 = vadd.f32 0.0, %v2739
        %v2741 = vpop.f32.mrb[0].mxu0
        %v2742 = vpop.f32.mrb[0].mxu0
        %v2743 = vadd.f32 0.0, %v2742
        %v2744 = vpop.f32.mrb[0].mxu0
        %2745 = vdwg.mxu0
        %v2746 = vsel %vm2255, %v2693, -1e+30
        %v2747 = vsel %vm2256, %v2696, -1e+30
        %v2748 = vsel %vm2255, %v2740, -1e+30
        %v2749 = vsel %vm2256, %v2743, -1e+30
        %v2750 = vsel %vm2261, %v2746, -inf
        %2751 = vmax.xlane.f32.xlu0 %v2750
        %v2752 = vpop.xlane.xlu0 %2751
        %v2753 = vsel %vm2261, %v2747, -inf
        %2754 = vmax.xlane.f32.xlu0 %v2753
        %v2755 = vpop.xlane.xlu0 %2754
        %v2756 = vsel %vm2261, %v2748, -inf
        %2757 = vmax.xlane.f32.xlu0 %v2756
        %v2758 = vpop.xlane.xlu0 %2757
        %v2759 = vsel %vm2261, %v2749, -inf
        %2760 = vmax.xlane.f32.xlu0 %v2759
        %v2761 = vpop.xlane.xlu0 %2760
        %v2762 = vsub.f32 %v2746, %v2752
        %v2763 = vsub.f32 %v2747, %v2755
        %v2764 = vsub.f32 %v2748, %v2758
        %v2765 = vsub.f32 %v2749, %v2761
        %v2766 = vmul.f32 %v2762, 1.442695
        %v2767 = vpow.pop %v2766
        %v2768 = vmul.f32 %v2763, 1.442695
        %v2769 = vpow.pop %v2768
        %v2770 = vmul.f32 %v2764, 1.442695
        %v2771 = vpow.pop %v2770
        %v2772 = vmul.f32 %v2765, 1.442695
        %v2773 = vpow.pop %v2772
        %v2774 = vsel %vm2261, %v2767, 0.0
        %2775 = vadd.xlane.f32.xlu0 %v2774
        %v2776 = vpop.xlane.xlu0 %2775
        %v2777 = vsel %vm2261, %v2769, 0.0
        %2778 = vadd.xlane.f32.xlu0 %v2777
        %v2779 = vpop.xlane.xlu0 %2778
        %v2780 = vsel %vm2261, %v2771, 0.0
        %2781 = vadd.xlane.f32.xlu0 %v2780
        %v2782 = vpop.xlane.xlu0 %2781
        %v2783 = vsel %vm2261, %v2773, 0.0
        %2784 = vadd.xlane.f32.xlu0 %v2783
        %v2785 = vpop.xlane.xlu0 %2784
        %v2786 = vpack.c.bf16 %v2769, %v2767
        %v2787 = vpack.c.bf16 %v2773, %v2771
        %v2789 = vsel %vm2261, %v2786, 0
        %2791 = vmatprep.subr.bf16.mxu0 0
        %2792 = vmatpush1.bf16.msra.mxu0 %v2140
        %2793 = vmatprep.subr.bf16.mxu0 0
        %2794 = vmatpush1.bf16.msra.mxu0 0
        %2795 = vmatprep.subr.bf16.mxu0 0
        %2796 = vmatpush1.bf16.msra.mxu0 0
        %2797 = vmatprep.subr.bf16.mxu0 0
        %2798 = vmatpush1.bf16.msra.mxu0 0
        %2799 = vmatprep.subr.bf16.mxu0 0
        %2800 = vmatpush1.bf16.msra.mxu0 0
        %2801 = vmatprep.subr.bf16.mxu0 0
        %2802 = vmatpush1.bf16.msra.mxu0 0
        %2803 = vmatprep.subr.bf16.mxu0 0
        %2804 = vmatpush1.bf16.msra.mxu0 0
        %2805 = vmatprep.subr.bf16.mxu0 0
        %2806 = vmatpush1.bf16.msra.mxu0 0
        %2807 = vmatprep.subr.bf16.mxu0 0
        %2808 = vmatpush1.bf16.msra.mxu0 0
        %2809 = vmatprep.subr.bf16.mxu0 0
        %2810 = vmatpush1.bf16.msra.mxu0 0
        %2811 = vmatprep.subr.bf16.mxu0 0
        %2812 = vmatpush1.bf16.msra.mxu0 0
        %2813 = vmatprep.subr.bf16.mxu0 0
        %2814 = vmatpush1.bf16.msra.mxu0 0
        %2815 = vmatprep.subr.bf16.mxu0 0
        %2816 = vmatpush1.bf16.msra.mxu0 0
        %2817 = vmatprep.subr.bf16.mxu0 0
        %2818 = vmatpush1.bf16.msra.mxu0 0
        %2819 = vmatprep.subr.bf16.mxu0 0
        %2820 = vmatpush1.bf16.msra.mxu0 0
        %2821 = vmatprep.subr.bf16.mxu0 0
        %2822 = vmatpush1.bf16.msra.mxu0 0
        %2823 = vmatprep.mubr.bf16.mxu0 0
        %2824 = vmatmul.mubr.bf16.gmra.mrb[0].mxu0 %v2789
        %v2825 = vpop.f32.mrb[0].mxu0
        %v2826 = vadd.f32 0.0, %v2825
        %v2827 = vpop.f32.mrb[0].mxu0
        %v2828 = vpop.f32.mrb[0].mxu0
        %v2829 = vadd.f32 0.0, %v2828
        %v2830 = vpop.f32.mrb[0].mxu0
        %2831 = vdwg.mxu0
        %v2833 = vsel %vm2261, %v2787, 0
        %2835 = vmatprep.subr.bf16.mxu0 0
        %2836 = vmatpush1.bf16.msra.mxu0 %v2149
        %2837 = vmatprep.subr.bf16.mxu0 0
        %2838 = vmatpush1.bf16.msra.mxu0 0
        %2839 = vmatprep.subr.bf16.mxu0 0
        %2840 = vmatpush1.bf16.msra.mxu0 0
        %2841 = vmatprep.subr.bf16.mxu0 0
        %2842 = vmatpush1.bf16.msra.mxu0 0
        %2843 = vmatprep.subr.bf16.mxu0 0
        %2844 = vmatpush1.bf16.msra.mxu0 0
        %2845 = vmatprep.subr.bf16.mxu0 0
        %2846 = vmatpush1.bf16.msra.mxu0 0
        %2847 = vmatprep.subr.bf16.mxu0 0
        %2848 = vmatpush1.bf16.msra.mxu0 0
        %2849 = vmatprep.subr.bf16.mxu0 0
        %2850 = vmatpush1.bf16.msra.mxu0 0
        %2851 = vmatprep.subr.bf16.mxu0 0
        %2852 = vmatpush1.bf16.msra.mxu0 0
        %2853 = vmatprep.subr.bf16.mxu0 0
        %2854 = vmatpush1.bf16.msra.mxu0 0
        %2855 = vmatprep.subr.bf16.mxu0 0
        %2856 = vmatpush1.bf16.msra.mxu0 0
        %2857 = vmatprep.subr.bf16.mxu0 0
        %2858 = vmatpush1.bf16.msra.mxu0 0
        %2859 = vmatprep.subr.bf16.mxu0 0
        %2860 = vmatpush1.bf16.msra.mxu0 0
        %2861 = vmatprep.subr.bf16.mxu0 0
        %2862 = vmatpush1.bf16.msra.mxu0 0
        %2863 = vmatprep.subr.bf16.mxu0 0
        %2864 = vmatpush1.bf16.msra.mxu0 0
        %2865 = vmatprep.subr.bf16.mxu0 0
        %2866 = vmatpush1.bf16.msra.mxu0 0
        %2867 = vmatprep.mubr.bf16.mxu0 0
        %2868 = vmatmul.mubr.bf16.gmra.mrb[0].mxu0 %v2833
        %v2869 = vpop.f32.mrb[0].mxu0
        %v2870 = vadd.f32 0.0, %v2869
        %v2871 = vpop.f32.mrb[0].mxu0
        %v2872 = vpop.f32.mrb[0].mxu0
        %v2873 = vadd.f32 0.0, %v2872
        %v2874 = vpop.f32.mrb[0].mxu0
        %2875 = vdwg.mxu0
        %v2876 = vrcp.pop %v2776
        %v2877 = vrcp.pop %v2779
        %v2878 = vrcp.pop %v2782
        %v2879 = vrcp.pop %v2785
        %v2880 = vmul.f32 %v2826, %v2876
        %v2881 = vmul.f32 %v2829, %v2877
        %v2882 = vmul.f32 %v2870, %v2878
        %v2883 = vmul.f32 %v2873, %v2879
        %v2884 = vpack.c.bf16 %v2881, %v2880
        %v2885 = vpack.c.bf16 %v2883, %v2882
        %2887 = vrot.lane.b32.xlu0 %v2134, 64
        %v2888 = vpop.permute.xlu0 %2887
        %2890 = vrot.lane.b32.xlu0 %v2137, 64
        %v2891 = vpop.permute.xlu0 %2890
        %v2893 = vsel %vm2158, %v2888, 0
        %v2896 = vsel %vm2158, %v2891, 0
        %2898 = vmatprep.subr.bf16.mxu0 0
        %2899 = vmatpush1.bf16.xpose.msra.mxu0 %v2896
        %2900 = vmatprep.subr.bf16.mxu0 0
        %2901 = vmatpush1.bf16.xpose.msra.mxu0 0
        %2902 = vmatprep.subr.bf16.mxu0 0
        %2903 = vmatpush1.bf16.xpose.msra.mxu0 0
        %2904 = vmatprep.subr.bf16.mxu0 0
        %2905 = vmatpush1.bf16.xpose.msra.mxu0 0
        %2906 = vmatprep.subr.bf16.mxu0 0
        %2907 = vmatpush1.bf16.xpose.msra.mxu0 0
        %2908 = vmatprep.subr.bf16.mxu0 0
        %2909 = vmatpush1.bf16.xpose.msra.mxu0 0
        %2910 = vmatprep.subr.bf16.mxu0 0
        %2911 = vmatpush1.bf16.xpose.msra.mxu0 0
        %2912 = vmatprep.subr.bf16.mxu0 0
        %2913 = vmatpush1.bf16.xpose.msra.mxu0 0
        %2914 = vmatprep.subr.bf16.mxu0 0
        %2915 = vmatpush1.bf16.xpose.msra.mxu0 0
        %2916 = vmatprep.subr.bf16.mxu0 0
        %2917 = vmatpush1.bf16.xpose.msra.mxu0 0
        %2918 = vmatprep.subr.bf16.mxu0 0
        %2919 = vmatpush1.bf16.xpose.msra.mxu0 0
        %2920 = vmatprep.subr.bf16.mxu0 0
        %2921 = vmatpush1.bf16.xpose.msra.mxu0 0
        %2922 = vmatprep.subr.bf16.mxu0 0
        %2923 = vmatpush1.bf16.xpose.msra.mxu0 0
        %2924 = vmatprep.subr.bf16.mxu0 0
        %2925 = vmatpush1.bf16.xpose.msra.mxu0 0
        %2926 = vmatprep.subr.bf16.mxu0 0
        %2927 = vmatpush1.bf16.xpose.msra.mxu0 0
        %2928 = vmatprep.subr.bf16.mxu0 0
        %2929 = vmatpush1.bf16.xpose.msra.mxu0 0
        %2930 = vmatprep.mubr.bf16.mxu0 0
        %2931 = vmatmul.mubr.bf16.gmra.mrb[0].mxu0 %v2893
        %v2932 = vpop.f32.mrb[0].mxu0
        %v2933 = vadd.f32 0.0, %v2932
        %v2934 = vpop.f32.mrb[0].mxu0
        %v2935 = vpop.f32.mrb[0].mxu0
        %v2936 = vadd.f32 0.0, %v2935
        %v2937 = vpop.f32.mrb[0].mxu0
        %2938 = vdwg.mxu0
        %2940 = vrot.lane.b32.xlu0 %v2143, 64
        %v2941 = vpop.permute.xlu0 %2940
        %2943 = vrot.lane.b32.xlu0 %v2146, 64
        %v2944 = vpop.permute.xlu0 %2943
        %v2946 = vsel %vm2158, %v2941, 0
        %v2949 = vsel %vm2158, %v2944, 0
        %2951 = vmatprep.subr.bf16.mxu0 0
        %2952 = vmatpush1.bf16.xpose.msra.mxu0 %v2949
        %2953 = vmatprep.subr.bf16.mxu0 0
        %2954 = vmatpush1.bf16.xpose.msra.mxu0 0
        %2955 = vmatprep.subr.bf16.mxu0 0
        %2956 = vmatpush1.bf16.xpose.msra.mxu0 0
        %2957 = vmatprep.subr.bf16.mxu0 0
        %2958 = vmatpush1.bf16.xpose.msra.mxu0 0
        %2959 = vmatprep.subr.bf16.mxu0 0
        %2960 = vmatpush1.bf16.xpose.msra.mxu0 0
        %2961 = vmatprep.subr.bf16.mxu0 0
        %2962 = vmatpush1.bf16.xpose.msra.mxu0 0
        %2963 = vmatprep.subr.bf16.mxu0 0
        %2964 = vmatpush1.bf16.xpose.msra.mxu0 0
        %2965 = vmatprep.subr.bf16.mxu0 0
        %2966 = vmatpush1.bf16.xpose.msra.mxu0 0
        %2967 = vmatprep.subr.bf16.mxu0 0
        %2968 = vmatpush1.bf16.xpose.msra.mxu0 0
        %2969 = vmatprep.subr.bf16.mxu0 0
        %2970 = vmatpush1.bf16.xpose.msra.mxu0 0
        %2971 = vmatprep.subr.bf16.mxu0 0
        %2972 = vmatpush1.bf16.xpose.msra.mxu0 0
        %2973 = vmatprep.subr.bf16.mxu0 0
        %2974 = vmatpush1.bf16.xpose.msra.mxu0 0
        %2975 = vmatprep.subr.bf16.mxu0 0
        %2976 = vmatpush1.bf16.xpose.msra.mxu0 0
        %2977 = vmatprep.subr.bf16.mxu0 0
        %2978 = vmatpush1.bf16.xpose.msra.mxu0 0
        %2979 = vmatprep.subr.bf16.mxu0 0
        %2980 = vmatpush1.bf16.xpose.msra.mxu0 0
        %2981 = vmatprep.subr.bf16.mxu0 0
        %2982 = vmatpush1.bf16.xpose.msra.mxu0 0
        %2983 = vmatprep.mubr.bf16.mxu0 0
        %2984 = vmatmul.mubr.bf16.gmra.mrb[0].mxu0 %v2946
        %v2985 = vpop.f32.mrb[0].mxu0
        %v2986 = vadd.f32 0.0, %v2985
        %v2987 = vpop.f32.mrb[0].mxu0
        %v2988 = vpop.f32.mrb[0].mxu0
        %v2989 = vadd.f32 0.0, %v2988
        %v2990 = vpop.f32.mrb[0].mxu0
        %2991 = vdwg.mxu0
        %v2992 = vsel %vm2255, %v2933, -1e+30
        %v2993 = vsel %vm2256, %v2936, -1e+30
        %v2994 = vsel %vm2255, %v2986, -1e+30
        %v2995 = vsel %vm2256, %v2989, -1e+30
        %v2996 = vsel %vm2261, %v2992, -inf
        %2997 = vmax.xlane.f32.xlu0 %v2996
        %v2998 = vpop.xlane.xlu0 %2997
        %v2999 = vsel %vm2261, %v2993, -inf
        %3000 = vmax.xlane.f32.xlu0 %v2999
        %v3001 = vpop.xlane.xlu0 %3000
        %v3002 = vsel %vm2261, %v2994, -inf
        %3003 = vmax.xlane.f32.xlu0 %v3002
        %v3004 = vpop.xlane.xlu0 %3003
        %v3005 = vsel %vm2261, %v2995, -inf
        %3006 = vmax.xlane.f32.xlu0 %v3005
        %v3007 = vpop.xlane.xlu0 %3006
        %v3008 = vsub.f32 %v2992, %v2998
        %v3009 = vsub.f32 %v2993, %v3001
        %v3010 = vsub.f32 %v2994, %v3004
        %v3011 = vsub.f32 %v2995, %v3007
        %v3012 = vmul.f32 %v3008, 1.442695
        %v3013 = vpow.pop %v3012
        %v3014 = vmul.f32 %v3009, 1.442695
        %v3015 = vpow.pop %v3014
        %v3016 = vmul.f32 %v3010, 1.442695
        %v3017 = vpow.pop %v3016
        %v3018 = vmul.f32 %v3011, 1.442695
        %v3019 = vpow.pop %v3018
        %v3020 = vsel %vm2261, %v3013, 0.0
        %3021 = vadd.xlane.f32.xlu0 %v3020
        %v3022 = vpop.xlane.xlu0 %3021
        %v3023 = vsel %vm2261, %v3015, 0.0
        %3024 = vadd.xlane.f32.xlu0 %v3023
        %v3025 = vpop.xlane.xlu0 %3024
        %v3026 = vsel %vm2261, %v3017, 0.0
        %3027 = vadd.xlane.f32.xlu0 %v3026
        %v3028 = vpop.xlane.xlu0 %3027
        %v3029 = vsel %vm2261, %v3019, 0.0
        %3030 = vadd.xlane.f32.xlu0 %v3029
        %v3031 = vpop.xlane.xlu0 %3030
        %v3032 = vpack.c.bf16 %v3015, %v3013
        %v3033 = vpack.c.bf16 %v3019, %v3017
        %3035 = vrot.lane.b32.xlu0 %v2140, 64
        %v3036 = vpop.permute.xlu0 %3035
        %v3039 = vsel %vm2261, %v3032, 0
        %3041 = vmatprep.subr.bf16.mxu0 0
        %3042 = vmatpush1.bf16.msra.mxu0 %v3036
        %3043 = vmatprep.subr.bf16.mxu0 0
        %3044 = vmatpush1.bf16.msra.mxu0 0
        %3045 = vmatprep.subr.bf16.mxu0 0
        %3046 = vmatpush1.bf16.msra.mxu0 0
        %3047 = vmatprep.subr.bf16.mxu0 0
        %3048 = vmatpush1.bf16.msra.mxu0 0
        %3049 = vmatprep.subr.bf16.mxu0 0
        %3050 = vmatpush1.bf16.msra.mxu0 0
        %3051 = vmatprep.subr.bf16.mxu0 0
        %3052 = vmatpush1.bf16.msra.mxu0 0
        %3053 = vmatprep.subr.bf16.mxu0 0
        %3054 = vmatpush1.bf16.msra.mxu0 0
        %3055 = vmatprep.subr.bf16.mxu0 0
        %3056 = vmatpush1.bf16.msra.mxu0 0
        %3057 = vmatprep.subr.bf16.mxu0 0
        %3058 = vmatpush1.bf16.msra.mxu0 0
        %3059 = vmatprep.subr.bf16.mxu0 0
        %3060 = vmatpush1.bf16.msra.mxu0 0
        %3061 = vmatprep.subr.bf16.mxu0 0
        %3062 = vmatpush1.bf16.msra.mxu0 0
        %3063 = vmatprep.subr.bf16.mxu0 0
        %3064 = vmatpush1.bf16.msra.mxu0 0
        %3065 = vmatprep.subr.bf16.mxu0 0
        %3066 = vmatpush1.bf16.msra.mxu0 0
        %3067 = vmatprep.subr.bf16.mxu0 0
        %3068 = vmatpush1.bf16.msra.mxu0 0
        %3069 = vmatprep.subr.bf16.mxu0 0
        %3070 = vmatpush1.bf16.msra.mxu0 0
        %3071 = vmatprep.subr.bf16.mxu0 0
        %3072 = vmatpush1.bf16.msra.mxu0 0
        %3073 = vmatprep.mubr.bf16.mxu0 0
        %3074 = vmatmul.mubr.bf16.gmra.mrb[0].mxu0 %v3039
        %v3075 = vpop.f32.mrb[0].mxu0
        %v3076 = vadd.f32 0.0, %v3075
        %v3077 = vpop.f32.mrb[0].mxu0
        %v3078 = vpop.f32.mrb[0].mxu0
        %v3079 = vadd.f32 0.0, %v3078
        %v3080 = vpop.f32.mrb[0].mxu0
        %3081 = vdwg.mxu0
        %3083 = vrot.lane.b32.xlu0 %v2149, 64
        %v3084 = vpop.permute.xlu0 %3083
        %v3087 = vsel %vm2261, %v3033, 0
        %3089 = vmatprep.subr.bf16.mxu0 0
        %3090 = vmatpush1.bf16.msra.mxu0 %v3084
        %3091 = vmatprep.subr.bf16.mxu0 0
        %3092 = vmatpush1.bf16.msra.mxu0 0
        %3093 = vmatprep.subr.bf16.mxu0 0
        %3094 = vmatpush1.bf16.msra.mxu0 0
        %3095 = vmatprep.subr.bf16.mxu0 0
        %3096 = vmatpush1.bf16.msra.mxu0 0
        %3097 = vmatprep.subr.bf16.mxu0 0
        %3098 = vmatpush1.bf16.msra.mxu0 0
        %3099 = vmatprep.subr.bf16.mxu0 0
        %3100 = vmatpush1.bf16.msra.mxu0 0
        %3101 = vmatprep.subr.bf16.mxu0 0
        %3102 = vmatpush1.bf16.msra.mxu0 0
        %3103 = vmatprep.subr.bf16.mxu0 0
        %3104 = vmatpush1.bf16.msra.mxu0 0
        %3105 = vmatprep.subr.bf16.mxu0 0
        %3106 = vmatpush1.bf16.msra.mxu0 0
        %3107 = vmatprep.subr.bf16.mxu0 0
        %3108 = vmatpush1.bf16.msra.mxu0 0
        %3109 = vmatprep.subr.bf16.mxu0 0
        %3110 = vmatpush1.bf16.msra.mxu0 0
        %3111 = vmatprep.subr.bf16.mxu0 0
        %3112 = vmatpush1.bf16.msra.mxu0 0
        %3113 = vmatprep.subr.bf16.mxu0 0
        %3114 = vmatpush1.bf16.msra.mxu0 0
        %3115 = vmatprep.subr.bf16.mxu0 0
        %3116 = vmatpush1.bf16.msra.mxu0 0
        %3117 = vmatprep.subr.bf16.mxu0 0
        %3118 = vmatpush1.bf16.msra.mxu0 0
        %3119 = vmatprep.subr.bf16.mxu0 0
        %3120 = vmatpush1.bf16.msra.mxu0 0
        %3121 = vmatprep.mubr.bf16.mxu0 0
        %3122 = vmatmul.mubr.bf16.gmra.mrb[0].mxu0 %v3087
        %v3123 = vpop.f32.mrb[0].mxu0
        %v3124 = vadd.f32 0.0, %v3123
        %v3125 = vpop.f32.mrb[0].mxu0
        %v3126 = vpop.f32.mrb[0].mxu0
        %v3127 = vadd.f32 0.0, %v3126
        %v3128 = vpop.f32.mrb[0].mxu0
        %3129 = vdwg.mxu0
        %v3130 = vrcp.pop %v3022
        %v3131 = vrcp.pop %v3025
        %v3132 = vrcp.pop %v3028
        %v3133 = vrcp.pop %v3031
        %v3134 = vmul.f32 %v3076, %v3130
        %v3135 = vmul.f32 %v3079, %v3131
        %v3136 = vmul.f32 %v3124, %v3132
        %v3137 = vmul.f32 %v3127, %v3133
        %v3138 = vpack.c.bf16 %v3135, %v3134
        %v3139 = vpack.c.bf16 %v3137, %v3136
        %v3141 = vsel %vm2158, %v2135, 0
        %v3144 = vsel %vm2158, %v2138, 0
        %3146 = vmatprep.subr.bf16.mxu0 0
        %3147 = vmatpush1.bf16.xpose.msra.mxu0 %v3144
        %3148 = vmatprep.subr.bf16.mxu0 0
        %3149 = vmatpush1.bf16.xpose.msra.mxu0 0
        %3150 = vmatprep.subr.bf16.mxu0 0
        %3151 = vmatpush1.bf16.xpose.msra.mxu0 0
        %3152 = vmatprep.subr.bf16.mxu0 0
        %3153 = vmatpush1.bf16.xpose.msra.mxu0 0
        %3154 = vmatprep.subr.bf16.mxu0 0
        %3155 = vmatpush1.bf16.xpose.msra.mxu0 0
        %3156 = vmatprep.subr.bf16.mxu0 0
        %3157 = vmatpush1.bf16.xpose.msra.mxu0 0
        %3158 = vmatprep.subr.bf16.mxu0 0
        %3159 = vmatpush1.bf16.xpose.msra.mxu0 0
        %3160 = vmatprep.subr.bf16.mxu0 0
        %3161 = vmatpush1.bf16.xpose.msra.mxu0 0
        %3162 = vmatprep.subr.bf16.mxu0 0
        %3163 = vmatpush1.bf16.xpose.msra.mxu0 0
        %3164 = vmatprep.subr.bf16.mxu0 0
        %3165 = vmatpush1.bf16.xpose.msra.mxu0 0
        %3166 = vmatprep.subr.bf16.mxu0 0
        %3167 = vmatpush1.bf16.xpose.msra.mxu0 0
        %3168 = vmatprep.subr.bf16.mxu0 0
        %3169 = vmatpush1.bf16.xpose.msra.mxu0 0
        %3170 = vmatprep.subr.bf16.mxu0 0
        %3171 = vmatpush1.bf16.xpose.msra.mxu0 0
        %3172 = vmatprep.subr.bf16.mxu0 0
        %3173 = vmatpush1.bf16.xpose.msra.mxu0 0
        %3174 = vmatprep.subr.bf16.mxu0 0
        %3175 = vmatpush1.bf16.xpose.msra.mxu0 0
        %3176 = vmatprep.subr.bf16.mxu0 0
        %3177 = vmatpush1.bf16.xpose.msra.mxu0 0
        %3178 = vmatprep.mubr.bf16.mxu0 0
        %3179 = vmatmul.mubr.bf16.gmra.mrb[0].mxu0 %v3141
        %v3180 = vpop.f32.mrb[0].mxu0
        %v3181 = vadd.f32 0.0, %v3180
        %v3182 = vpop.f32.mrb[0].mxu0
        %v3183 = vpop.f32.mrb[0].mxu0
        %v3184 = vadd.f32 0.0, %v3183
        %v3185 = vpop.f32.mrb[0].mxu0
        %3186 = vdwg.mxu0
        %v3188 = vsel %vm2158, %v2144, 0
        %v3191 = vsel %vm2158, %v2147, 0
        %3193 = vmatprep.subr.bf16.mxu0 0
        %3194 = vmatpush1.bf16.xpose.msra.mxu0 %v3191
        %3195 = vmatprep.subr.bf16.mxu0 0
        %3196 = vmatpush1.bf16.xpose.msra.mxu0 0
        %3197 = vmatprep.subr.bf16.mxu0 0
        %3198 = vmatpush1.bf16.xpose.msra.mxu0 0
        %3199 = vmatprep.subr.bf16.mxu0 0
        %3200 = vmatpush1.bf16.xpose.msra.mxu0 0
        %3201 = vmatprep.subr.bf16.mxu0 0
        %3202 = vmatpush1.bf16.xpose.msra.mxu0 0
        %3203 = vmatprep.subr.bf16.mxu0 0
        %3204 = vmatpush1.bf16.xpose.msra.mxu0 0
        %3205 = vmatprep.subr.bf16.mxu0 0
        %3206 = vmatpush1.bf16.xpose.msra.mxu0 0
        %3207 = vmatprep.subr.bf16.mxu0 0
        %3208 = vmatpush1.bf16.xpose.msra.mxu0 0
        %3209 = vmatprep.subr.bf16.mxu0 0
        %3210 = vmatpush1.bf16.xpose.msra.mxu0 0
        %3211 = vmatprep.subr.bf16.mxu0 0
        %3212 = vmatpush1.bf16.xpose.msra.mxu0 0
        %3213 = vmatprep.subr.bf16.mxu0 0
        %3214 = vmatpush1.bf16.xpose.msra.mxu0 0
        %3215 = vmatprep.subr.bf16.mxu0 0
        %3216 = vmatpush1.bf16.xpose.msra.mxu0 0
        %3217 = vmatprep.subr.bf16.mxu0 0
        %3218 = vmatpush1.bf16.xpose.msra.mxu0 0
        %3219 = vmatprep.subr.bf16.mxu0 0
        %3220 = vmatpush1.bf16.xpose.msra.mxu0 0
        %3221 = vmatprep.subr.bf16.mxu0 0
        %3222 = vmatpush1.bf16.xpose.msra.mxu0 0
        %3223 = vmatprep.subr.bf16.mxu0 0
        %3224 = vmatpush1.bf16.xpose.msra.mxu0 0
        %3225 = vmatprep.mubr.bf16.mxu0 0
        %3226 = vmatmul.mubr.bf16.gmra.mrb[0].mxu0 %v3188
        %v3227 = vpop.f32.mrb[0].mxu0
        %v3228 = vadd.f32 0.0, %v3227
        %v3229 = vpop.f32.mrb[0].mxu0
        %v3230 = vpop.f32.mrb[0].mxu0
        %v3231 = vadd.f32 0.0, %v3230
        %v3232 = vpop.f32.mrb[0].mxu0
        %3233 = vdwg.mxu0
        %v3234 = vsel %vm2255, %v3181, -1e+30
        %v3235 = vsel %vm2256, %v3184, -1e+30
        %v3236 = vsel %vm2255, %v3228, -1e+30
        %v3237 = vsel %vm2256, %v3231, -1e+30
        %v3238 = vsel %vm2261, %v3234, -inf
        %3239 = vmax.xlane.f32.xlu0 %v3238
        %v3240 = vpop.xlane.xlu0 %3239
        %v3241 = vsel %vm2261, %v3235, -inf
        %3242 = vmax.xlane.f32.xlu0 %v3241
        %v3243 = vpop.xlane.xlu0 %3242
        %v3244 = vsel %vm2261, %v3236, -inf
        %3245 = vmax.xlane.f32.xlu0 %v3244
        %v3246 = vpop.xlane.xlu0 %3245
        %v3247 = vsel %vm2261, %v3237, -inf
        %3248 = vmax.xlane.f32.xlu0 %v3247
        %v3249 = vpop.xlane.xlu0 %3248
        %v3250 = vsub.f32 %v3234, %v3240
        %v3251 = vsub.f32 %v3235, %v3243
        %v3252 = vsub.f32 %v3236, %v3246
        %v3253 = vsub.f32 %v3237, %v3249
        %v3254 = vmul.f32 %v3250, 1.442695
        %v3255 = vpow.pop %v3254
        %v3256 = vmul.f32 %v3251, 1.442695
        %v3257 = vpow.pop %v3256
        %v3258 = vmul.f32 %v3252, 1.442695
        %v3259 = vpow.pop %v3258
        %v3260 = vmul.f32 %v3253, 1.442695
        %v3261 = vpow.pop %v3260
        %v3262 = vsel %vm2261, %v3255, 0.0
        %3263 = vadd.xlane.f32.xlu0 %v3262
        %v3264 = vpop.xlane.xlu0 %3263
        %v3265 = vsel %vm2261, %v3257, 0.0
        %3266 = vadd.xlane.f32.xlu0 %v3265
        %v3267 = vpop.xlane.xlu0 %3266
        %v3268 = vsel %vm2261, %v3259, 0.0
        %3269 = vadd.xlane.f32.xlu0 %v3268
        %v3270 = vpop.xlane.xlu0 %3269
        %v3271 = vsel %vm2261, %v3261, 0.0
        %3272 = vadd.xlane.f32.xlu0 %v3271
        %v3273 = vpop.xlane.xlu0 %3272
        %v3274 = vpack.c.bf16 %v3257, %v3255
        %v3275 = vpack.c.bf16 %v3261, %v3259
        %v3277 = vsel %vm2261, %v3274, 0
        %3279 = vmatprep.subr.bf16.mxu0 0
        %3280 = vmatpush1.bf16.msra.mxu0 %v2141
        %3281 = vmatprep.subr.bf16.mxu0 0
        %3282 = vmatpush1.bf16.msra.mxu0 0
        %3283 = vmatprep.subr.bf16.mxu0 0
        %3284 = vmatpush1.bf16.msra.mxu0 0
        %3285 = vmatprep.subr.bf16.mxu0 0
        %3286 = vmatpush1.bf16.msra.mxu0 0
        %3287 = vmatprep.subr.bf16.mxu0 0
        %3288 = vmatpush1.bf16.msra.mxu0 0
        %3289 = vmatprep.subr.bf16.mxu0 0
        %3290 = vmatpush1.bf16.msra.mxu0 0
        %3291 = vmatprep.subr.bf16.mxu0 0
        %3292 = vmatpush1.bf16.msra.mxu0 0
        %3293 = vmatprep.subr.bf16.mxu0 0
        %3294 = vmatpush1.bf16.msra.mxu0 0
        %3295 = vmatprep.subr.bf16.mxu0 0
        %3296 = vmatpush1.bf16.msra.mxu0 0
        %3297 = vmatprep.subr.bf16.mxu0 0
        %3298 = vmatpush1.bf16.msra.mxu0 0
        %3299 = vmatprep.subr.bf16.mxu0 0
        %3300 = vmatpush1.bf16.msra.mxu0 0
        %3301 = vmatprep.subr.bf16.mxu0 0
        %3302 = vmatpush1.bf16.msra.mxu0 0
        %3303 = vmatprep.subr.bf16.mxu0 0
        %3304 = vmatpush1.bf16.msra.mxu0 0
        %3305 = vmatprep.subr.bf16.mxu0 0
        %3306 = vmatpush1.bf16.msra.mxu0 0
        %3307 = vmatprep.subr.bf16.mxu0 0
        %3308 = vmatpush1.bf16.msra.mxu0 0
        %3309 = vmatprep.subr.bf16.mxu0 0
        %3310 = vmatpush1.bf16.msra.mxu0 0
        %3311 = vmatprep.mubr.bf16.mxu0 0
        %3312 = vmatmul.mubr.bf16.gmra.mrb[0].mxu0 %v3277
        %v3313 = vpop.f32.mrb[0].mxu0
        %v3314 = vadd.f32 0.0, %v3313
        %v3315 = vpop.f32.mrb[0].mxu0
        %v3316 = vpop.f32.mrb[0].mxu0
        %v3317 = vadd.f32 0.0, %v3316
        %v3318 = vpop.f32.mrb[0].mxu0
        %3319 = vdwg.mxu0
        %v3321 = vsel %vm2261, %v3275, 0
        %3323 = vmatprep.subr.bf16.mxu0 0
        %3324 = vmatpush1.bf16.msra.mxu0 %v2150
        %3325 = vmatprep.subr.bf16.mxu0 0
        %3326 = vmatpush1.bf16.msra.mxu0 0
        %3327 = vmatprep.subr.bf16.mxu0 0
        %3328 = vmatpush1.bf16.msra.mxu0 0
        %3329 = vmatprep.subr.bf16.mxu0 0
        %3330 = vmatpush1.bf16.msra.mxu0 0
        %3331 = vmatprep.subr.bf16.mxu0 0
        %3332 = vmatpush1.bf16.msra.mxu0 0
        %3333 = vmatprep.subr.bf16.mxu0 0
        %3334 = vmatpush1.bf16.msra.mxu0 0
        %3335 = vmatprep.subr.bf16.mxu0 0
        %3336 = vmatpush1.bf16.msra.mxu0 0
        %3337 = vmatprep.subr.bf16.mxu0 0
        %3338 = vmatpush1.bf16.msra.mxu0 0
        %3339 = vmatprep.subr.bf16.mxu0 0
        %3340 = vmatpush1.bf16.msra.mxu0 0
        %3341 = vmatprep.subr.bf16.mxu0 0
        %3342 = vmatpush1.bf16.msra.mxu0 0
        %3343 = vmatprep.subr.bf16.mxu0 0
        %3344 = vmatpush1.bf16.msra.mxu0 0
        %3345 = vmatprep.subr.bf16.mxu0 0
        %3346 = vmatpush1.bf16.msra.mxu0 0
        %3347 = vmatprep.subr.bf16.mxu0 0
        %3348 = vmatpush1.bf16.msra.mxu0 0
        %3349 = vmatprep.subr.bf16.mxu0 0
        %3350 = vmatpush1.bf16.msra.mxu0 0
        %3351 = vmatprep.subr.bf16.mxu0 0
        %3352 = vmatpush1.bf16.msra.mxu0 0
        %3353 = vmatprep.subr.bf16.mxu0 0
        %3354 = vmatpush1.bf16.msra.mxu0 0
        %3355 = vmatprep.mubr.bf16.mxu0 0
        %3356 = vmatmul.mubr.bf16.gmra.mrb[0].mxu0 %v3321
        %v3357 = vpop.f32.mrb[0].mxu0
        %v3358 = vadd.f32 0.0, %v3357
        %v3359 = vpop.f32.mrb[0].mxu0
        %v3360 = vpop.f32.mrb[0].mxu0
        %v3361 = vadd.f32 0.0, %v3360
        %v3362 = vpop.f32.mrb[0].mxu0
        %3363 = vdwg.mxu0
        %v3364 = vrcp.pop %v3264
        %v3365 = vrcp.pop %v3267
        %v3366 = vrcp.pop %v3270
        %v3367 = vrcp.pop %v3273
        %v3368 = vmul.f32 %v3314, %v3364
        %v3369 = vmul.f32 %v3317, %v3365
        %v3370 = vmul.f32 %v3358, %v3366
        %v3371 = vmul.f32 %v3361, %v3367
        %v3372 = vpack.c.bf16 %v3369, %v3368
        %v3373 = vpack.c.bf16 %v3371, %v3370
        %3375 = vrot.lane.b32.xlu0 %v2135, 64
        %v3376 = vpop.permute.xlu0 %3375
        %3378 = vrot.lane.b32.xlu0 %v2138, 64
        %v3379 = vpop.permute.xlu0 %3378
        %v3381 = vsel %vm2158, %v3376, 0
        %v3384 = vsel %vm2158, %v3379, 0
        %3386 = vmatprep.subr.bf16.mxu0 0
        %3387 = vmatpush1.bf16.xpose.msra.mxu0 %v3384
        %3388 = vmatprep.subr.bf16.mxu0 0
        %3389 = vmatpush1.bf16.xpose.msra.mxu0 0
        %3390 = vmatprep.subr.bf16.mxu0 0
        %3391 = vmatpush1.bf16.xpose.msra.mxu0 0
        %3392 = vmatprep.subr.bf16.mxu0 0
        %3393 = vmatpush1.bf16.xpose.msra.mxu0 0
        %3394 = vmatprep.subr.bf16.mxu0 0
        %3395 = vmatpush1.bf16.xpose.msra.mxu0 0
        %3396 = vmatprep.subr.bf16.mxu0 0
        %3397 = vmatpush1.bf16.xpose.msra.mxu0 0
        %3398 = vmatprep.subr.bf16.mxu0 0
        %3399 = vmatpush1.bf16.xpose.msra.mxu0 0
        %3400 = vmatprep.subr.bf16.mxu0 0
        %3401 = vmatpush1.bf16.xpose.msra.mxu0 0
        %3402 = vmatprep.subr.bf16.mxu0 0
        %3403 = vmatpush1.bf16.xpose.msra.mxu0 0
        %3404 = vmatprep.subr.bf16.mxu0 0
        %3405 = vmatpush1.bf16.xpose.msra.mxu0 0
        %3406 = vmatprep.subr.bf16.mxu0 0
        %3407 = vmatpush1.bf16.xpose.msra.mxu0 0
        %3408 = vmatprep.subr.bf16.mxu0 0
        %3409 = vmatpush1.bf16.xpose.msra.mxu0 0
        %3410 = vmatprep.subr.bf16.mxu0 0
        %3411 = vmatpush1.bf16.xpose.msra.mxu0 0
        %3412 = vmatprep.subr.bf16.mxu0 0
        %3413 = vmatpush1.bf16.xpose.msra.mxu0 0
        %3414 = vmatprep.subr.bf16.mxu0 0
        %3415 = vmatpush1.bf16.xpose.msra.mxu0 0
        %3416 = vmatprep.subr.bf16.mxu0 0
        %3417 = vmatpush1.bf16.xpose.msra.mxu0 0
        %3418 = vmatprep.mubr.bf16.mxu0 0
        %3419 = vmatmul.mubr.bf16.gmra.mrb[0].mxu0 %v3381
        %v3420 = vpop.f32.mrb[0].mxu0
        %v3421 = vadd.f32 0.0, %v3420
        %v3422 = vpop.f32.mrb[0].mxu0
        %v3423 = vpop.f32.mrb[0].mxu0
        %v3424 = vadd.f32 0.0, %v3423
        %v3425 = vpop.f32.mrb[0].mxu0
        %3426 = vdwg.mxu0
        %3428 = vrot.lane.b32.xlu0 %v2144, 64
        %v3429 = vpop.permute.xlu0 %3428
        %3431 = vrot.lane.b32.xlu0 %v2147, 64
        %v3432 = vpop.permute.xlu0 %3431
        %v3434 = vsel %vm2158, %v3429, 0
        %v3437 = vsel %vm2158, %v3432, 0
        %3439 = vmatprep.subr.bf16.mxu0 0
        %3440 = vmatpush1.bf16.xpose.msra.mxu0 %v3437
        %3441 = vmatprep.subr.bf16.mxu0 0
        %3442 = vmatpush1.bf16.xpose.msra.mxu0 0
        %3443 = vmatprep.subr.bf16.mxu0 0
        %3444 = vmatpush1.bf16.xpose.msra.mxu0 0
        %3445 = vmatprep.subr.bf16.mxu0 0
        %3446 = vmatpush1.bf16.xpose.msra.mxu0 0
        %3447 = vmatprep.subr.bf16.mxu0 0
        %3448 = vmatpush1.bf16.xpose.msra.mxu0 0
        %3449 = vmatprep.subr.bf16.mxu0 0
        %3450 = vmatpush1.bf16.xpose.msra.mxu0 0
        %3451 = vmatprep.subr.bf16.mxu0 0
        %3452 = vmatpush1.bf16.xpose.msra.mxu0 0
        %3453 = vmatprep.subr.bf16.mxu0 0
        %3454 = vmatpush1.bf16.xpose.msra.mxu0 0
        %3455 = vmatprep.subr.bf16.mxu0 0
        %3456 = vmatpush1.bf16.xpose.msra.mxu0 0
        %3457 = vmatprep.subr.bf16.mxu0 0
        %3458 = vmatpush1.bf16.xpose.msra.mxu0 0
        %3459 = vmatprep.subr.bf16.mxu0 0
        %3460 = vmatpush1.bf16.xpose.msra.mxu0 0
        %3461 = vmatprep.subr.bf16.mxu0 0
        %3462 = vmatpush1.bf16.xpose.msra.mxu0 0
        %3463 = vmatprep.subr.bf16.mxu0 0
        %3464 = vmatpush1.bf16.xpose.msra.mxu0 0
        %3465 = vmatprep.subr.bf16.mxu0 0
        %3466 = vmatpush1.bf16.xpose.msra.mxu0 0
        %3467 = vmatprep.subr.bf16.mxu0 0
        %3468 = vmatpush1.bf16.xpose.msra.mxu0 0
        %3469 = vmatprep.subr.bf16.mxu0 0
        %3470 = vmatpush1.bf16.xpose.msra.mxu0 0
        %3471 = vmatprep.mubr.bf16.mxu0 0
        %3472 = vmatmul.mubr.bf16.gmra.mrb[0].mxu0 %v3434
        %v3473 = vpop.f32.mrb[0].mxu0
        %v3474 = vadd.f32 0.0, %v3473
        %v3475 = vpop.f32.mrb[0].mxu0
        %v3476 = vpop.f32.mrb[0].mxu0
        %v3477 = vadd.f32 0.0, %v3476
        %v3478 = vpop.f32.mrb[0].mxu0
        %3479 = vdwg.mxu0
        %v3480 = vsel %vm2255, %v3421, -1e+30
        %v3481 = vsel %vm2256, %v3424, -1e+30
        %v3482 = vsel %vm2255, %v3474, -1e+30
        %v3483 = vsel %vm2256, %v3477, -1e+30
        %v3484 = vsel %vm2261, %v3480, -inf
        %3485 = vmax.xlane.f32.xlu0 %v3484
        %v3486 = vpop.xlane.xlu0 %3485
        %v3487 = vsel %vm2261, %v3481, -inf
        %3488 = vmax.xlane.f32.xlu0 %v3487
        %v3489 = vpop.xlane.xlu0 %3488
        %v3490 = vsel %vm2261, %v3482, -inf
        %3491 = vmax.xlane.f32.xlu0 %v3490
        %v3492 = vpop.xlane.xlu0 %3491
        %v3493 = vsel %vm2261, %v3483, -inf
        %3494 = vmax.xlane.f32.xlu0 %v3493
        %v3495 = vpop.xlane.xlu0 %3494
        %v3496 = vsub.f32 %v3480, %v3486
        %v3497 = vsub.f32 %v3481, %v3489
        %v3498 = vsub.f32 %v3482, %v3492
        %v3499 = vsub.f32 %v3483, %v3495
        %v3500 = vmul.f32 %v3496, 1.442695
        %v3501 = vpow.pop %v3500
        %v3502 = vmul.f32 %v3497, 1.442695
        %v3503 = vpow.pop %v3502
        %v3504 = vmul.f32 %v3498, 1.442695
        %v3505 = vpow.pop %v3504
        %v3506 = vmul.f32 %v3499, 1.442695
        %v3507 = vpow.pop %v3506
        %v3508 = vsel %vm2261, %v3501, 0.0
        %3509 = vadd.xlane.f32.xlu0 %v3508
        %v3510 = vpop.xlane.xlu0 %3509
        %v3511 = vsel %vm2261, %v3503, 0.0
        %3512 = vadd.xlane.f32.xlu0 %v3511
        %v3513 = vpop.xlane.xlu0 %3512
        %v3514 = vsel %vm2261, %v3505, 0.0
        %3515 = vadd.xlane.f32.xlu0 %v3514
        %v3516 = vpop.xlane.xlu0 %3515
        %v3517 = vsel %vm2261, %v3507, 0.0
        %3518 = vadd.xlane.f32.xlu0 %v3517
        %v3519 = vpop.xlane.xlu0 %3518
        %v3520 = vpack.c.bf16 %v3503, %v3501
        %v3521 = vpack.c.bf16 %v3507, %v3505
        %3523 = vrot.lane.b32.xlu0 %v2141, 64
        %v3524 = vpop.permute.xlu0 %3523
        %v3527 = vsel %vm2261, %v3520, 0
        %3529 = vmatprep.subr.bf16.mxu0 0
        %3530 = vmatpush1.bf16.msra.mxu0 %v3524
        %3531 = vmatprep.subr.bf16.mxu0 0
        %3532 = vmatpush1.bf16.msra.mxu0 0
        %3533 = vmatprep.subr.bf16.mxu0 0
        %3534 = vmatpush1.bf16.msra.mxu0 0
        %3535 = vmatprep.subr.bf16.mxu0 0
        %3536 = vmatpush1.bf16.msra.mxu0 0
        %3537 = vmatprep.subr.bf16.mxu0 0
        %3538 = vmatpush1.bf16.msra.mxu0 0
        %3539 = vmatprep.subr.bf16.mxu0 0
        %3540 = vmatpush1.bf16.msra.mxu0 0
        %3541 = vmatprep.subr.bf16.mxu0 0
        %3542 = vmatpush1.bf16.msra.mxu0 0
        %3543 = vmatprep.subr.bf16.mxu0 0
        %3544 = vmatpush1.bf16.msra.mxu0 0
        %3545 = vmatprep.subr.bf16.mxu0 0
        %3546 = vmatpush1.bf16.msra.mxu0 0
        %3547 = vmatprep.subr.bf16.mxu0 0
        %3548 = vmatpush1.bf16.msra.mxu0 0
        %3549 = vmatprep.subr.bf16.mxu0 0
        %3550 = vmatpush1.bf16.msra.mxu0 0
        %3551 = vmatprep.subr.bf16.mxu0 0
        %3552 = vmatpush1.bf16.msra.mxu0 0
        %3553 = vmatprep.subr.bf16.mxu0 0
        %3554 = vmatpush1.bf16.msra.mxu0 0
        %3555 = vmatprep.subr.bf16.mxu0 0
        %3556 = vmatpush1.bf16.msra.mxu0 0
        %3557 = vmatprep.subr.bf16.mxu0 0
        %3558 = vmatpush1.bf16.msra.mxu0 0
        %3559 = vmatprep.subr.bf16.mxu0 0
        %3560 = vmatpush1.bf16.msra.mxu0 0
        %3561 = vmatprep.mubr.bf16.mxu0 0
        %3562 = vmatmul.mubr.bf16.gmra.mrb[0].mxu0 %v3527
        %v3563 = vpop.f32.mrb[0].mxu0
        %v3564 = vadd.f32 0.0, %v3563
        %v3565 = vpop.f32.mrb[0].mxu0
        %v3566 = vpop.f32.mrb[0].mxu0
        %v3567 = vadd.f32 0.0, %v3566
        %v3568 = vpop.f32.mrb[0].mxu0
        %3569 = vdwg.mxu0
        %3571 = vrot.lane.b32.xlu0 %v2150, 64
        %v3572 = vpop.permute.xlu0 %3571
        %v3575 = vsel %vm2261, %v3521, 0
        %3577 = vmatprep.subr.bf16.mxu0 0
        %3578 = vmatpush1.bf16.msra.mxu0 %v3572
        %3579 = vmatprep.subr.bf16.mxu0 0
        %3580 = vmatpush1.bf16.msra.mxu0 0
        %3581 = vmatprep.subr.bf16.mxu0 0
        %3582 = vmatpush1.bf16.msra.mxu0 0
        %3583 = vmatprep.subr.bf16.mxu0 0
        %3584 = vmatpush1.bf16.msra.mxu0 0
        %3585 = vmatprep.subr.bf16.mxu0 0
        %3586 = vmatpush1.bf16.msra.mxu0 0
        %3587 = vmatprep.subr.bf16.mxu0 0
        %3588 = vmatpush1.bf16.msra.mxu0 0
        %3589 = vmatprep.subr.bf16.mxu0 0
        %3590 = vmatpush1.bf16.msra.mxu0 0
        %3591 = vmatprep.subr.bf16.mxu0 0
        %3592 = vmatpush1.bf16.msra.mxu0 0
        %3593 = vmatprep.subr.bf16.mxu0 0
        %3594 = vmatpush1.bf16.msra.mxu0 0
        %3595 = vmatprep.subr.bf16.mxu0 0
        %3596 = vmatpush1.bf16.msra.mxu0 0
        %3597 = vmatprep.subr.bf16.mxu0 0
        %3598 = vmatpush1.bf16.msra.mxu0 0
        %3599 = vmatprep.subr.bf16.mxu0 0
        %3600 = vmatpush1.bf16.msra.mxu0 0
        %3601 = vmatprep.subr.bf16.mxu0 0
        %3602 = vmatpush1.bf16.msra.mxu0 0
        %3603 = vmatprep.subr.bf16.mxu0 0
        %3604 = vmatpush1.bf16.msra.mxu0 0
        %3605 = vmatprep.subr.bf16.mxu0 0
        %3606 = vmatpush1.bf16.msra.mxu0 0
        %3607 = vmatprep.subr.bf16.mxu0 0
        %3608 = vmatpush1.bf16.msra.mxu0 0
        %3609 = vmatprep.mubr.bf16.mxu0 0
        %3610 = vmatmul.mubr.bf16.gmra.mrb[0].mxu0 %v3575
        %v3611 = vpop.f32.mrb[0].mxu0
        %v3612 = vadd.f32 0.0, %v3611
        %v3613 = vpop.f32.mrb[0].mxu0
        %v3614 = vpop.f32.mrb[0].mxu0
        %v3615 = vadd.f32 0.0, %v3614
        %v3616 = vpop.f32.mrb[0].mxu0
        %3617 = vdwg.mxu0
        %v3618 = vrcp.pop %v3510
        %v3619 = vrcp.pop %v3513
        %v3620 = vrcp.pop %v3516
        %v3621 = vrcp.pop %v3519
        %v3622 = vmul.f32 %v3564, %v3618
        %v3623 = vmul.f32 %v3567, %v3619
        %v3624 = vmul.f32 %v3612, %v3620
        %v3625 = vmul.f32 %v3615, %v3621
        %v3626 = vpack.c.bf16 %v3623, %v3622
        %v3627 = vpack.c.bf16 %v3625, %v3624
        %3630 = vrot.lane.b32.xlu0 %v2650, 64
        %v3631 = vpop.permute.xlu0 %3630
        %3632 = vrot.lane.b32.xlu0 %v2651, 64
        %v3633 = vpop.permute.xlu0 %3632
        %3636 = vrot.lane.b32.xlu0 %v3138, 64
        %v3637 = vpop.permute.xlu0 %3636
        %3638 = vrot.lane.b32.xlu0 %v3139, 64
        %v3639 = vpop.permute.xlu0 %3638
        %3642 = vrot.lane.b32.xlu0 %v3626, 64
        %v3643 = vpop.permute.xlu0 %3642
        %3644 = vrot.lane.b32.xlu0 %v3627, 64
        %v3645 = vpop.permute.xlu0 %3644
        %v3648 = vsel %vm2158, %v2396, %v3631
        %v3652 = vsel %vm2158, %v2397, %v3633
        %v3656 = vsel %vm2158, %v2884, %v3637
        %v3660 = vsel %vm2158, %v2885, %v3639
        %v3664 = vsel %vm2158, %v3372, %v3643
        %v3668 = vsel %vm2158, %v3373, %v3645
        %v3670 = vld [vmem:[#allocation7] sm:$0xff]
        %v3671 = vld [vmem:[#allocation7 + $0x8] sm:$0xf]
        %v3672 = vld [vmem:[#allocation7 + $0xc] sm:$0xff]
        %v3673 = vld [vmem:[#allocation7 + $0x14] sm:$0xf]
        %v3674 = vld [vmem:[#allocation7 + $0x18] sm:$0xff]
        %v3675 = vld [vmem:[#allocation7 + $0x20] sm:$0xf]
        %v3676 = vld [vmem:[#allocation7 + $0x24] sm:$0xff]
        %v3677 = vld [vmem:[#allocation7 + $0x2c] sm:$0xf]
        %v3678 = vld [vmem:[#allocation7 + $0x30] sm:$0xff]
        %v3679 = vld [vmem:[#allocation7 + $0x38] sm:$0xf]
        %v3680 = vld [vmem:[#allocation7 + $0x3c] sm:$0xff]
        %v3681 = vld [vmem:[#allocation7 + $0x44] sm:$0xf]
        %v3682 = vld [vmem:[#allocation7 + $0x48] sm:$0xff]
        %v3683 = vld [vmem:[#allocation7 + $0x50] sm:$0xf]
        %v3684 = vld [vmem:[#allocation7 + $0x54] sm:$0xff]
        %v3685 = vld [vmem:[#allocation7 + $0x5c] sm:$0xf]
        %v3686 = vld [vmem:[#allocation7 + $0x60] sm:$0xff]
        %v3687 = vld [vmem:[#allocation7 + $0x68] sm:$0xf]
        %v3688 = vld [vmem:[#allocation7 + $0x6c] sm:$0xff]
        %v3689 = vld [vmem:[#allocation7 + $0x74] sm:$0xf]
        %v3690 = vld [vmem:[#allocation7 + $0x78] sm:$0xff]
        %v3691 = vld [vmem:[#allocation7 + $0x80] sm:$0xf]
        %v3692 = vld [vmem:[#allocation7 + $0x84] sm:$0xff]
        %v3693 = vld [vmem:[#allocation7 + $0x8c] sm:$0xf]
        %v3694 = vld [vmem:[#allocation7 + $0x90] sm:$0xff]
        %v3695 = vld [vmem:[#allocation7 + $0x98] sm:$0xf]
        %v3696 = vld [vmem:[#allocation7 + $0x9c] sm:$0xff]
        %v3697 = vld [vmem:[#allocation7 + $0xa4] sm:$0xf]
        %v3698 = vld [vmem:[#allocation7 + $0xa8] sm:$0xff]
        %v3699 = vld [vmem:[#allocation7 + $0xb0] sm:$0xf]
        %v3700 = vld [vmem:[#allocation7 + $0xb4] sm:$0xff]
        %v3701 = vld [vmem:[#allocation7 + $0xbc] sm:$0xf]
        %v3702 = vld [vmem:[#allocation7 + $0xc0] sm:$0xff]
        %v3703 = vld [vmem:[#allocation7 + $0xc8] sm:$0xf]
        %v3704 = vld [vmem:[#allocation7 + $0xcc] sm:$0xff]
        %v3705 = vld [vmem:[#allocation7 + $0xd4] sm:$0xf]
        %v3706 = vld [vmem:[#allocation7 + $0xd8] sm:$0xff]
        %v3707 = vld [vmem:[#allocation7 + $0xe0] sm:$0xf]
        %v3708 = vld [vmem:[#allocation7 + $0xe4] sm:$0xff]
        %v3709 = vld [vmem:[#allocation7 + $0xec] sm:$0xf]
        %v3710 = vld [vmem:[#allocation7 + $0xf0] sm:$0xff]
        %v3711 = vld [vmem:[#allocation7 + $0xf8] sm:$0xf]
        %v3712 = vld [vmem:[#allocation7 + $0xfc] sm:$0xff]
        %v3713 = vld [vmem:[#allocation7 + $0x104] sm:$0xf]
        %v3714 = vld [vmem:[#allocation7 + $0x108] sm:$0xff]
        %v3715 = vld [vmem:[#allocation7 + $0x110] sm:$0xf]
        %v3716 = vld [vmem:[#allocation7 + $0x114] sm:$0xff]
        %v3717 = vld [vmem:[#allocation7 + $0x11c] sm:$0xf]
        %v3718 = vld [vmem:[#allocation7 + $0x120] sm:$0xff]
        %v3719 = vld [vmem:[#allocation7 + $0x128] sm:$0xf]
        %v3720 = vld [vmem:[#allocation7 + $0x12c] sm:$0xff]
        %v3721 = vld [vmem:[#allocation7 + $0x134] sm:$0xf]
        %v3722 = vld [vmem:[#allocation7 + $0x138] sm:$0xff]
        %v3723 = vld [vmem:[#allocation7 + $0x140] sm:$0xf]
        %v3724 = vld [vmem:[#allocation7 + $0x144] sm:$0xff]
        %v3725 = vld [vmem:[#allocation7 + $0x14c] sm:$0xf]
        %v3726 = vld [vmem:[#allocation7 + $0x150] sm:$0xff]
        %v3727 = vld [vmem:[#allocation7 + $0x158] sm:$0xf]
        %v3728 = vld [vmem:[#allocation7 + $0x15c] sm:$0xff]
        %v3729 = vld [vmem:[#allocation7 + $0x164] sm:$0xf]
        %v3730 = vld [vmem:[#allocation7 + $0x168] sm:$0xff]
        %v3731 = vld [vmem:[#allocation7 + $0x170] sm:$0xf]
        %v3732 = vld [vmem:[#allocation7 + $0x174] sm:$0xff]
        %v3733 = vld [vmem:[#allocation7 + $0x17c] sm:$0xf]
        %v3734 = vld [vmem:[#allocation7 + $0x180] sm:$0xff]
        %v3735 = vld [vmem:[#allocation7 + $0x188] sm:$0xf]
        %v3736 = vld [vmem:[#allocation7 + $0x18c] sm:$0xff]
        %v3737 = vld [vmem:[#allocation7 + $0x194] sm:$0xf]
        %v3738 = vld [vmem:[#allocation7 + $0x198] sm:$0xff]
        %v3739 = vld [vmem:[#allocation7 + $0x1a0] sm:$0xf]
        %v3740 = vld [vmem:[#allocation7 + $0x1a4] sm:$0xff]
        %v3741 = vld [vmem:[#allocation7 + $0x1ac] sm:$0xf]
        %v3742 = vld [vmem:[#allocation7 + $0x1b0] sm:$0xff]
        %v3743 = vld [vmem:[#allocation7 + $0x1b8] sm:$0xf]
        %v3744 = vld [vmem:[#allocation7 + $0x1bc] sm:$0xff]
        %v3745 = vld [vmem:[#allocation7 + $0x1c4] sm:$0xf]
        %v3746 = vld [vmem:[#allocation7 + $0x1c8] sm:$0xff]
        %v3747 = vld [vmem:[#allocation7 + $0x1d0] sm:$0xf]
        %v3748 = vld [vmem:[#allocation7 + $0x1d4] sm:$0xff]
        %v3749 = vld [vmem:[#allocation7 + $0x1dc] sm:$0xf]
        %v3750 = vld [vmem:[#allocation7 + $0x1e0] sm:$0xff]
        %v3751 = vld [vmem:[#allocation7 + $0x1e8] sm:$0xf]
        %v3752 = vld [vmem:[#allocation7 + $0x1ec] sm:$0xff]
        %v3753 = vld [vmem:[#allocation7 + $0x1f4] sm:$0xf]
        %v3754 = vld [vmem:[#allocation7 + $0x1f8] sm:$0xff]
        %v3755 = vld [vmem:[#allocation7 + $0x200] sm:$0xf]
        %v3756 = vld [vmem:[#allocation7 + $0x204] sm:$0xff]
        %v3757 = vld [vmem:[#allocation7 + $0x20c] sm:$0xf]
        %v3758 = vld [vmem:[#allocation7 + $0x210] sm:$0xff]
        %v3759 = vld [vmem:[#allocation7 + $0x218] sm:$0xf]
        %v3760 = vld [vmem:[#allocation7 + $0x21c] sm:$0xff]
        %v3761 = vld [vmem:[#allocation7 + $0x224] sm:$0xf]
        %v3762 = vld [vmem:[#allocation7 + $0x228] sm:$0xff]
        %v3763 = vld [vmem:[#allocation7 + $0x230] sm:$0xf]
        %v3764 = vld [vmem:[#allocation7 + $0x234] sm:$0xff]
        %v3765 = vld [vmem:[#allocation7 + $0x23c] sm:$0xf]
        %v3766 = vld [vmem:[%s3] sm:$0x7]
        %v3768 = vlaneseq
        %v3769 = vshrl.u32 %v3768, 7
        %v3770 = vsub.s32 0, %v3769
        %v3771 = vrot.slane %v3766, %v3770
        %v3772 = vlaneseq
        %v3773 = vshrl.u32 %v3772, 7
        %v3774 = vsub.s32 1, %v3773
        %v3775 = vrot.slane %v3766, %v3774
        %v3776 = vlaneseq
        %v3777 = vshrl.u32 %v3776, 7
        %v3778 = vsub.s32 2, %v3777
        %v3779 = vrot.slane %v3766, %v3778
        %v3879 = vunpack.c.l.b16 %v3670
        %v3880 = vunpack.c.h.b16 %v3670
        %v3881 = vunpack.c.l.b16 %v3671
        %v3882 = vunpack.c.l.b16 %v3672
        %v3883 = vunpack.c.h.b16 %v3672
        %v3884 = vunpack.c.l.b16 %v3673
        %v3885 = vunpack.c.l.b16 %v3674
        %v3886 = vunpack.c.h.b16 %v3674
        %v3887 = vunpack.c.l.b16 %v3675
        %v3888 = vunpack.c.l.b16 %v3676
        %v3889 = vunpack.c.h.b16 %v3676
        %v3890 = vunpack.c.l.b16 %v3677
        %v3891 = vunpack.c.l.b16 %v3678
        %v3892 = vunpack.c.h.b16 %v3678
        %v3893 = vunpack.c.l.b16 %v3679
        %v3894 = vunpack.c.l.b16 %v3680
        %v3895 = vunpack.c.h.b16 %v3680
        %v3896 = vunpack.c.l.b16 %v3681
        %v3897 = vunpack.c.l.b16 %v3682
        %v3898 = vunpack.c.h.b16 %v3682
        %v3899 = vunpack.c.l.b16 %v3683
        %v3900 = vunpack.c.l.b16 %v3684
        %v3901 = vunpack.c.h.b16 %v3684
        %v3902 = vunpack.c.l.b16 %v3685
        %v3903 = vunpack.c.l.b16 %v3686
        %v3904 = vunpack.c.h.b16 %v3686
        %v3905 = vunpack.c.l.b16 %v3687
        %v3906 = vunpack.c.l.b16 %v3688
        %v3907 = vunpack.c.h.b16 %v3688
        %v3908 = vunpack.c.l.b16 %v3689
        %v3909 = vunpack.c.l.b16 %v3690
        %v3910 = vunpack.c.h.b16 %v3690
        %v3911 = vunpack.c.l.b16 %v3691
        %v3912 = vunpack.c.l.b16 %v3692
        %v3913 = vunpack.c.h.b16 %v3692
        %v3914 = vunpack.c.l.b16 %v3693
        %v3915 = vunpack.c.l.b16 %v3694
        %v3916 = vunpack.c.h.b16 %v3694
        %v3917 = vunpack.c.l.b16 %v3695
        %v3918 = vunpack.c.l.b16 %v3696
        %v3919 = vunpack.c.h.b16 %v3696
        %v3920 = vunpack.c.l.b16 %v3697
        %v3921 = vunpack.c.l.b16 %v3698
        %v3922 = vunpack.c.h.b16 %v3698
        %v3923 = vunpack.c.l.b16 %v3699
        %v3924 = vunpack.c.l.b16 %v3700
        %v3925 = vunpack.c.h.b16 %v3700
        %v3926 = vunpack.c.l.b16 %v3701
        %v3927 = vunpack.c.l.b16 %v3702
        %v3928 = vunpack.c.h.b16 %v3702
        %v3929 = vunpack.c.l.b16 %v3703
        %v3930 = vunpack.c.l.b16 %v3704
        %v3931 = vunpack.c.h.b16 %v3704
        %v3932 = vunpack.c.l.b16 %v3705
        %v3933 = vunpack.c.l.b16 %v3706
        %v3934 = vunpack.c.h.b16 %v3706
        %v3935 = vunpack.c.l.b16 %v3707
        %v3936 = vunpack.c.l.b16 %v3708
        %v3937 = vunpack.c.h.b16 %v3708
        %v3938 = vunpack.c.l.b16 %v3709
        %v3939 = vunpack.c.l.b16 %v3710
        %v3940 = vunpack.c.h.b16 %v3710
        %v3941 = vunpack.c.l.b16 %v3711
        %v3942 = vunpack.c.l.b16 %v3712
        %v3943 = vunpack.c.h.b16 %v3712
        %v3944 = vunpack.c.l.b16 %v3713
        %v3945 = vunpack.c.l.b16 %v3714
        %v3946 = vunpack.c.h.b16 %v3714
        %v3947 = vunpack.c.l.b16 %v3715
        %v3948 = vunpack.c.l.b16 %v3716
        %v3949 = vunpack.c.h.b16 %v3716
        %v3950 = vunpack.c.l.b16 %v3717
        %v3951 = vunpack.c.l.b16 %v3718
        %v3952 = vunpack.c.h.b16 %v3718
        %v3953 = vunpack.c.l.b16 %v3719
        %v3954 = vunpack.c.l.b16 %v3720
        %v3955 = vunpack.c.h.b16 %v3720
        %v3956 = vunpack.c.l.b16 %v3721
        %v3957 = vunpack.c.l.b16 %v3722
        %v3958 = vunpack.c.h.b16 %v3722
        %v3959 = vunpack.c.l.b16 %v3723
        %v3960 = vunpack.c.l.b16 %v3724
        %v3961 = vunpack.c.h.b16 %v3724
        %v3962 = vunpack.c.l.b16 %v3725
        %v3963 = vunpack.c.l.b16 %v3726
        %v3964 = vunpack.c.h.b16 %v3726
        %v3965 = vunpack.c.l.b16 %v3727
        %v3966 = vunpack.c.l.b16 %v3728
        %v3967 = vunpack.c.h.b16 %v3728
        %v3968 = vunpack.c.l.b16 %v3729
        %v3969 = vunpack.c.l.b16 %v3730
        %v3970 = vunpack.c.h.b16 %v3730
        %v3971 = vunpack.c.l.b16 %v3731
        %v3972 = vunpack.c.l.b16 %v3732
        %v3973 = vunpack.c.h.b16 %v3732
        %v3974 = vunpack.c.l.b16 %v3733
        %v3975 = vunpack.c.l.b16 %v3734
        %v3976 = vunpack.c.h.b16 %v3734
        %v3977 = vunpack.c.l.b16 %v3735
        %v3978 = vunpack.c.l.b16 %v3736
        %v3979 = vunpack.c.h.b16 %v3736
        %v3980 = vunpack.c.l.b16 %v3737
        %v3981 = vunpack.c.l.b16 %v3738
        %v3982 = vunpack.c.h.b16 %v3738
        %v3983 = vunpack.c.l.b16 %v3739
        %v3984 = vunpack.c.l.b16 %v3740
        %v3985 = vunpack.c.h.b16 %v3740
        %v3986 = vunpack.c.l.b16 %v3741
        %v3987 = vunpack.c.l.b16 %v3742
        %v3988 = vunpack.c.h.b16 %v3742
        %v3989 = vunpack.c.l.b16 %v3743
        %v3990 = vunpack.c.l.b16 %v3744
        %v3991 = vunpack.c.h.b16 %v3744
        %v3992 = vunpack.c.l.b16 %v3745
        %v3993 = vunpack.c.l.b16 %v3746
        %v3994 = vunpack.c.h.b16 %v3746
        %v3995 = vunpack.c.l.b16 %v3747
        %v3996 = vunpack.c.l.b16 %v3748
        %v3997 = vunpack.c.h.b16 %v3748
        %v3998 = vunpack.c.l.b16 %v3749
        %v3999 = vunpack.c.l.b16 %v3750
        %v4000 = vunpack.c.h.b16 %v3750
        %v4001 = vunpack.c.l.b16 %v3751
        %v4002 = vunpack.c.l.b16 %v3752
        %v4003 = vunpack.c.h.b16 %v3752
        %v4004 = vunpack.c.l.b16 %v3753
        %v4005 = vunpack.c.l.b16 %v3754
        %v4006 = vunpack.c.h.b16 %v3754
        %v4007 = vunpack.c.l.b16 %v3755
        %v4008 = vunpack.c.l.b16 %v3756
        %v4009 = vunpack.c.h.b16 %v3756
        %v4010 = vunpack.c.l.b16 %v3757
        %v4011 = vunpack.c.l.b16 %v3758
        %v4012 = vunpack.c.h.b16 %v3758
        %v4013 = vunpack.c.l.b16 %v3759
        %v4014 = vunpack.c.l.b16 %v3760
        %v4015 = vunpack.c.h.b16 %v3760
        %v4016 = vunpack.c.l.b16 %v3761
        %v4017 = vunpack.c.l.b16 %v3762
        %v4018 = vunpack.c.h.b16 %v3762
        %v4019 = vunpack.c.l.b16 %v3763
        %v4020 = vunpack.c.l.b16 %v3764
        %v4021 = vunpack.c.h.b16 %v3764
        %v4022 = vunpack.c.l.b16 %v3765
        %v4023 = vpack.c.b16 %v3882, %v3879
        %v4024 = vpack.c.b16 %v3883, %v3880
        %v4025 = vpack.c.b16 %v3884, %v3881
        %v4026 = vpack.c.b16 %v3888, %v3885
        %v4027 = vpack.c.b16 %v3889, %v3886
        %v4028 = vpack.c.b16 %v3890, %v3887
        %v4029 = vpack.c.b16 %v3894, %v3891
        %v4030 = vpack.c.b16 %v3895, %v3892
        %v4031 = vpack.c.b16 %v3896, %v3893
        %v4032 = vpack.c.b16 %v3900, %v3897
        %v4033 = vpack.c.b16 %v3901, %v3898
        %v4034 = vpack.c.b16 %v3902, %v3899
        %v4035 = vpack.c.b16 %v3906, %v3903
        %v4036 = vpack.c.b16 %v3907, %v3904
        %v4037 = vpack.c.b16 %v3908, %v3905
        %v4038 = vpack.c.b16 %v3912, %v3909
        %v4039 = vpack.c.b16 %v3913, %v3910
        %v4040 = vpack.c.b16 %v3914, %v3911
        %v4041 = vpack.c.b16 %v3918, %v3915
        %v4042 = vpack.c.b16 %v3919, %v3916
        %v4043 = vpack.c.b16 %v3920, %v3917
        %v4044 = vpack.c.b16 %v3924, %v3921
        %v4045 = vpack.c.b16 %v3925, %v3922
        %v4046 = vpack.c.b16 %v3926, %v3923
        %v4047 = vpack.c.b16 %v3930, %v3927
        %v4048 = vpack.c.b16 %v3931, %v3928
        %v4049 = vpack.c.b16 %v3932, %v3929
        %v4050 = vpack.c.b16 %v3936, %v3933
        %v4051 = vpack.c.b16 %v3937, %v3934
        %v4052 = vpack.c.b16 %v3938, %v3935
        %v4053 = vpack.c.b16 %v3942, %v3939
        %v4054 = vpack.c.b16 %v3943, %v3940
        %v4055 = vpack.c.b16 %v3944, %v3941
        %v4056 = vpack.c.b16 %v3948, %v3945
        %v4057 = vpack.c.b16 %v3949, %v3946
        %v4058 = vpack.c.b16 %v3950, %v3947
        %v4059 = vpack.c.b16 %v3954, %v3951
        %v4060 = vpack.c.b16 %v3955, %v3952
        %v4061 = vpack.c.b16 %v3956, %v3953
        %v4062 = vpack.c.b16 %v3960, %v3957
        %v4063 = vpack.c.b16 %v3961, %v3958
        %v4064 = vpack.c.b16 %v3962, %v3959
        %v4065 = vpack.c.b16 %v3966, %v3963
        %v4066 = vpack.c.b16 %v3967, %v3964
        %v4067 = vpack.c.b16 %v3968, %v3965
        %v4068 = vpack.c.b16 %v3972, %v3969
        %v4069 = vpack.c.b16 %v3973, %v3970
        %v4070 = vpack.c.b16 %v3974, %v3971
        %v4071 = vpack.c.b16 %v3978, %v3975
        %v4072 = vpack.c.b16 %v3979, %v3976
        %v4073 = vpack.c.b16 %v3980, %v3977
        %v4074 = vpack.c.b16 %v3984, %v3981
        %v4075 = vpack.c.b16 %v3985, %v3982
        %v4076 = vpack.c.b16 %v3986, %v3983
        %v4077 = vpack.c.b16 %v3990, %v3987
        %v4078 = vpack.c.b16 %v3991, %v3988
        %v4079 = vpack.c.b16 %v3992, %v3989
        %v4080 = vpack.c.b16 %v3996, %v3993
        %v4081 = vpack.c.b16 %v3997, %v3994
        %v4082 = vpack.c.b16 %v3998, %v3995
        %v4083 = vpack.c.b16 %v4002, %v3999
        %v4084 = vpack.c.b16 %v4003, %v4000
        %v4085 = vpack.c.b16 %v4004, %v4001
        %v4086 = vpack.c.b16 %v4008, %v4005
        %v4087 = vpack.c.b16 %v4009, %v4006
        %v4088 = vpack.c.b16 %v4010, %v4007
        %v4089 = vpack.c.b16 %v4014, %v4011
        %v4090 = vpack.c.b16 %v4015, %v4012
        %v4091 = vpack.c.b16 %v4016, %v4013
        %v4092 = vpack.c.b16 %v4020, %v4017
        %v4093 = vpack.c.b16 %v4021, %v4018
        %v4094 = vpack.c.b16 %v4022, %v4019
        %4167 = vmatprep.subr.bf16.mxu0 %v4024
        %4168 = vmatpush1.bf16.msra.mxu0 %v4023
        %4169 = vmatprep.subr.bf16.mxu0 %v4027
        %4170 = vmatpush1.bf16.msra.mxu0 %v4026
        %4171 = vmatprep.subr.bf16.mxu0 %v4030
        %4172 = vmatpush1.bf16.msra.mxu0 %v4029
        %4173 = vmatprep.subr.bf16.mxu0 %v4033
        %4174 = vmatpush1.bf16.msra.mxu0 %v4032
        %4175 = vmatprep.subr.bf16.mxu0 %v4036
        %4176 = vmatpush1.bf16.msra.mxu0 %v4035
        %4177 = vmatprep.subr.bf16.mxu0 %v4039
        %4178 = vmatpush1.bf16.msra.mxu0 %v4038
        %4179 = vmatprep.subr.bf16.mxu0 %v4042
        %4180 = vmatpush1.bf16.msra.mxu0 %v4041
        %4181 = vmatprep.subr.bf16.mxu0 %v4045
        %4182 = vmatpush1.bf16.msra.mxu0 %v4044
        %4183 = vmatprep.subr.bf16.mxu0 %v4048
        %4184 = vmatpush1.bf16.msra.mxu0 %v4047
        %4185 = vmatprep.subr.bf16.mxu0 %v4051
        %4186 = vmatpush1.bf16.msra.mxu0 %v4050
        %4187 = vmatprep.subr.bf16.mxu0 %v4054
        %4188 = vmatpush1.bf16.msra.mxu0 %v4053
        %4189 = vmatprep.subr.bf16.mxu0 %v4057
        %4190 = vmatpush1.bf16.msra.mxu0 %v4056
        %4191 = vmatprep.subr.bf16.mxu0 %v4060
        %4192 = vmatpush1.bf16.msra.mxu0 %v4059
        %4193 = vmatprep.subr.bf16.mxu0 %v4063
        %4194 = vmatpush1.bf16.msra.mxu0 %v4062
        %4195 = vmatprep.subr.bf16.mxu0 %v4066
        %4196 = vmatpush1.bf16.msra.mxu0 %v4065
        %4197 = vmatprep.subr.bf16.mxu0 %v4069
        %4198 = vmatpush1.bf16.msra.mxu0 %v4068
        %4199 = vmatprep.mubr.bf16.mxu0 %v3656
        %4200 = vmatmul.mubr.bf16.gmra.mrb[0].mxu0 %v3648
        %v4201 = vpop.f32.mrb[0].mxu0
        %v4202 = vadd.f32 %v3771, %v4201
        %v4203 = vpop.f32.mrb[0].mxu0
        %v4204 = vadd.f32 %v3775, %v4203
        %v4205 = vpop.f32.mrb[0].mxu0
        %v4206 = vadd.f32 %v3771, %v4205
        %v4207 = vpop.f32.mrb[0].mxu0
        %v4208 = vadd.f32 %v3775, %v4207
        %4209 = vmatprep.mubr.bf16.mxu0 %v3660
        %4210 = vmatmul.mubr.bf16.gmra.mrb[0].mxu0 %v3652
        %v4211 = vpop.f32.mrb[0].mxu0
        %v4212 = vadd.f32 %v3771, %v4211
        %v4213 = vpop.f32.mrb[0].mxu0
        %v4214 = vadd.f32 %v3775, %v4213
        %v4215 = vpop.f32.mrb[0].mxu0
        %v4216 = vadd.f32 %v3771, %v4215
        %v4217 = vpop.f32.mrb[0].mxu0
        %v4218 = vadd.f32 %v3775, %v4217
        %4219 = vdwg.mxu0
        %4220 = vmatprep.subr.bf16.mxu0 %v4072
        %4221 = vmatpush1.bf16.msra.mxu0 %v4071
        %4222 = vmatprep.subr.bf16.mxu0 %v4075
        %4223 = vmatpush1.bf16.msra.mxu0 %v4074
        %4224 = vmatprep.subr.bf16.mxu0 %v4078
        %4225 = vmatpush1.bf16.msra.mxu0 %v4077
        %4226 = vmatprep.subr.bf16.mxu0 %v4081
        %4227 = vmatpush1.bf16.msra.mxu0 %v4080
        %4228 = vmatprep.subr.bf16.mxu0 %v4084
        %4229 = vmatpush1.bf16.msra.mxu0 %v4083
        %4230 = vmatprep.subr.bf16.mxu0 %v4087
        %4231 = vmatpush1.bf16.msra.mxu0 %v4086
        %4232 = vmatprep.subr.bf16.mxu0 %v4090
        %4233 = vmatpush1.bf16.msra.mxu0 %v4089
        %4234 = vmatprep.subr.bf16.mxu0 %v4093
        %4235 = vmatpush1.bf16.msra.mxu0 %v4092
        %4236 = vmatprep.subr.bf16.mxu0 0
        %4237 = vmatpush1.bf16.msra.mxu0 0
        %4238 = vmatprep.subr.bf16.mxu0 0
        %4239 = vmatpush1.bf16.msra.mxu0 0
        %4240 = vmatprep.subr.bf16.mxu0 0
        %4241 = vmatpush1.bf16.msra.mxu0 0
        %4242 = vmatprep.subr.bf16.mxu0 0
        %4243 = vmatpush1.bf16.msra.mxu0 0
        %4244 = vmatprep.subr.bf16.mxu0 0
        %4245 = vmatpush1.bf16.msra.mxu0 0
        %4246 = vmatprep.subr.bf16.mxu0 0
        %4247 = vmatpush1.bf16.msra.mxu0 0
        %4248 = vmatprep.subr.bf16.mxu0 0
        %4249 = vmatpush1.bf16.msra.mxu0 0
        %4250 = vmatprep.subr.bf16.mxu0 0
        %4251 = vmatpush1.bf16.msra.mxu0 0
        %4252 = vmatprep.mubr.bf16.mxu0 0
        %4253 = vmatmul.mubr.bf16.gmra.mrb[0].mxu0 %v3664
        %v4254 = vpop.f32.mrb[0].mxu0
        %v4255 = vadd.f32 %v4202, %v4254
        %v4256 = vpop.f32.mrb[0].mxu0
        %v4257 = vadd.f32 %v4204, %v4256
        %v4258 = vpop.f32.mrb[0].mxu0
        %v4259 = vadd.f32 %v4206, %v4258
        %v4260 = vpop.f32.mrb[0].mxu0
        %v4261 = vadd.f32 %v4208, %v4260
        %4262 = vmatprep.mubr.bf16.mxu0 0
        %4263 = vmatmul.mubr.bf16.gmra.mrb[0].mxu0 %v3668
        %v4264 = vpop.f32.mrb[0].mxu0
        %v4265 = vadd.f32 %v4212, %v4264
        %v4266 = vpop.f32.mrb[0].mxu0
        %v4267 = vadd.f32 %v4214, %v4266
        %v4268 = vpop.f32.mrb[0].mxu0
        %v4269 = vadd.f32 %v4216, %v4268
        %v4270 = vpop.f32.mrb[0].mxu0
        %v4271 = vadd.f32 %v4218, %v4270
        %4272 = vdwg.mxu0
        %4273 = vmatprep.subr.bf16.mxu0 0
        %4274 = vmatpush1.bf16.msra.mxu0 %v4025
        %4275 = vmatprep.subr.bf16.mxu0 0
        %4276 = vmatpush1.bf16.msra.mxu0 %v4028
        %4277 = vmatprep.subr.bf16.mxu0 0
        %4278 = vmatpush1.bf16.msra.mxu0 %v4031
        %4279 = vmatprep.subr.bf16.mxu0 0
        %4280 = vmatpush1.bf16.msra.mxu0 %v4034
        %4281 = vmatprep.subr.bf16.mxu0 0
        %4282 = vmatpush1.bf16.msra.mxu0 %v4037
        %4283 = vmatprep.subr.bf16.mxu0 0
        %4284 = vmatpush1.bf16.msra.mxu0 %v4040
        %4285 = vmatprep.subr.bf16.mxu0 0
        %4286 = vmatpush1.bf16.msra.mxu0 %v4043
        %4287 = vmatprep.subr.bf16.mxu0 0
        %4288 = vmatpush1.bf16.msra.mxu0 %v4046
        %4289 = vmatprep.subr.bf16.mxu0 0
        %4290 = vmatpush1.bf16.msra.mxu0 %v4049
        %4291 = vmatprep.subr.bf16.mxu0 0
        %4292 = vmatpush1.bf16.msra.mxu0 %v4052
        %4293 = vmatprep.subr.bf16.mxu0 0
        %4294 = vmatpush1.bf16.msra.mxu0 %v4055
        %4295 = vmatprep.subr.bf16.mxu0 0
        %4296 = vmatpush1.bf16.msra.mxu0 %v4058
        %4297 = vmatprep.subr.bf16.mxu0 0
        %4298 = vmatpush1.bf16.msra.mxu0 %v4061
        %4299 = vmatprep.subr.bf16.mxu0 0
        %4300 = vmatpush1.bf16.msra.mxu0 %v4064
        %4301 = vmatprep.subr.bf16.mxu0 0
        %4302 = vmatpush1.bf16.msra.mxu0 %v4067
        %4303 = vmatprep.subr.bf16.mxu0 0
        %4304 = vmatpush1.bf16.msra.mxu0 %v4070
        %4305 = vmatprep.mubr.bf16.mxu0 %v3656
        %4306 = vmatmul.mubr.bf16.gmra.mrb[0].mxu0 %v3648
        %v4307 = vpop.f32.mrb[0].mxu0
        %v4308 = vadd.f32 %v3779, %v4307
        %v4309 = vpop.f32.mrb[0].mxu0
        %v4310 = vpop.f32.mrb[0].mxu0
        %v4311 = vadd.f32 %v3779, %v4310
        %v4312 = vpop.f32.mrb[0].mxu0
        %4313 = vmatprep.mubr.bf16.mxu0 %v3660
        %4314 = vmatmul.mubr.bf16.gmra.mrb[0].mxu0 %v3652
        %v4315 = vpop.f32.mrb[0].mxu0
        %v4316 = vadd.f32 %v3779, %v4315
        %v4317 = vpop.f32.mrb[0].mxu0
        %v4318 = vpop.f32.mrb[0].mxu0
        %v4319 = vadd.f32 %v3779, %v4318
        %v4320 = vpop.f32.mrb[0].mxu0
        %4321 = vdwg.mxu0
        %4322 = vmatprep.subr.bf16.mxu0 0
        %4323 = vmatpush1.bf16.msra.mxu0 %v4073
        %4324 = vmatprep.subr.bf16.mxu0 0
        %4325 = vmatpush1.bf16.msra.mxu0 %v4076
        %4326 = vmatprep.subr.bf16.mxu0 0
        %4327 = vmatpush1.bf16.msra.mxu0 %v4079
        %4328 = vmatprep.subr.bf16.mxu0 0
        %4329 = vmatpush1.bf16.msra.mxu0 %v4082
        %4330 = vmatprep.subr.bf16.mxu0 0
        %4331 = vmatpush1.bf16.msra.mxu0 %v4085
        %4332 = vmatprep.subr.bf16.mxu0 0
        %4333 = vmatpush1.bf16.msra.mxu0 %v4088
        %4334 = vmatprep.subr.bf16.mxu0 0
        %4335 = vmatpush1.bf16.msra.mxu0 %v4091
        %4336 = vmatprep.subr.bf16.mxu0 0
        %4337 = vmatpush1.bf16.msra.mxu0 %v4094
        %4338 = vmatprep.subr.bf16.mxu0 0
        %4339 = vmatpush1.bf16.msra.mxu0 0
        %4340 = vmatprep.subr.bf16.mxu0 0
        %4341 = vmatpush1.bf16.msra.mxu0 0
        %4342 = vmatprep.subr.bf16.mxu0 0
        %4343 = vmatpush1.bf16.msra.mxu0 0
        %4344 = vmatprep.subr.bf16.mxu0 0
        %4345 = vmatpush1.bf16.msra.mxu0 0
        %4346 = vmatprep.subr.bf16.mxu0 0
        %4347 = vmatpush1.bf16.msra.mxu0 0
        %4348 = vmatprep.subr.bf16.mxu0 0
        %4349 = vmatpush1.bf16.msra.mxu0 0
        %4350 = vmatprep.subr.bf16.mxu0 0
        %4351 = vmatpush1.bf16.msra.mxu0 0
        %4352 = vmatprep.subr.bf16.mxu0 0
        %4353 = vmatpush1.bf16.msra.mxu0 0
        %4354 = vmatprep.mubr.bf16.mxu0 0
        %4355 = vmatmul.mubr.bf16.gmra.mrb[0].mxu0 %v3664
        %v4356 = vpop.f32.mrb[0].mxu0
        %v4357 = vadd.f32 %v4308, %v4356
        %v4358 = vpop.f32.mrb[0].mxu0
        %v4359 = vpop.f32.mrb[0].mxu0
        %v4360 = vadd.f32 %v4311, %v4359
        %v4361 = vpop.f32.mrb[0].mxu0
        %4362 = vmatprep.mubr.bf16.mxu0 0
        %4363 = vmatmul.mubr.bf16.gmra.mrb[0].mxu0 %v3668
        %v4364 = vpop.f32.mrb[0].mxu0
        %v4365 = vadd.f32 %v4316, %v4364
        %v4366 = vpop.f32.mrb[0].mxu0
        %v4367 = vpop.f32.mrb[0].mxu0
        %v4368 = vadd.f32 %v4319, %v4367
        %v4369 = vpop.f32.mrb[0].mxu0
        %4370 = vdwg.mxu0
        %4371 = vst [vmem:[%s245] sm:$0xff] %v4255
        %4372 = vst [vmem:[%s245 + $0x8] sm:$0xff] %v4257
        %4373 = vst [vmem:[%s245 + $0x10] sm:$0xff] %v4357
        %4374 = vst [vmem:[%s245 + $0x18] sm:$0xff] %v4259
        %4375 = vst [vmem:[%s245 + $0x20] sm:$0xff] %v4261
        %4376 = vst [vmem:[%s245 + $0x28] sm:$0xff] %v4360
        %4377 = vst [vmem:[%s245 + $0x30] sm:$0xff] %v4265
        %4378 = vst [vmem:[%s245 + $0x38] sm:$0xff] %v4267
        %4379 = vst [vmem:[%s245 + $0x40] sm:$0xff] %v4365
        %4380 = vst [vmem:[%s245 + $0x48] sm:$0xff] %v4269
        %4381 = vst [vmem:[%s245 + $0x50] sm:$0xff] %v4271
        %4382 = vst [vmem:[%s245 + $0x58] sm:$0xff] %v4368
        %s4383 = sand.u32 %s119, 1
        %s4384 = scalar_lea.sflag [#allocation4], %s4383
        %s4385 = sand.u32 %s119, 1
        %s4386 = smul.addr %s4385, 96
        %s4387 = scalar_lea.vmem [#allocation8], %s4386
        // Predicated region
        $region49: #{tpu_custom_call.1} parent=35 // pred_check
          %p4388 = pneg %p129
        $region50: #{tpu_custom_call.1} parent=35 // pred_check_branch
          %4390 = sbr.rel (%p4388) target = $region52
        $region51: #{tpu_custom_call.1} parent=35 // pred_region
          %s4391 = smul.u32 2, %s22
          %s4393 = ssub.s32 1536, 1536
          %4394 = vsyncadd %s4384, %s4393
          %s4395 = smul.addr %s4391, 6
          %s4396 = smul.addr %s4395, 128
          %s4397 = scalar_lea.hbm %s4, %s4396
          %s4398 = sshll.u32 %s4387, 4
          %s4399 = int_to_ptr.vmem [resolvable:$true] %s4398
          %4404 = dma.vmem_to_hbm [thread:$0]  %s4399, 1536, %s4397, %s4384, 384, 384, 24
        $region52: #{tpu_custom_call.1} parent=35 // pred_fallthru
          _
      $region36: #{tpu_custom_call.1} parent=5 // pred_fallthru
        _
      %p4405 = scmp.le.s32.totalorder 2, %s17
      // Predicated region
      $region53: #{tpu_custom_call.1} parent=5 // pred_check
        %p4406 = pneg %p4405
      $region54: #{tpu_custom_call.1} parent=5 // pred_check_branch
        %4408 = sbr.rel (%p4406) target = $region56
      $region55: #{tpu_custom_call.1} parent=5 // pred_region
        %s4409 = ssub.s32 %s17, 2
        // Predicated region
        $region57: #{tpu_custom_call.1} parent=55 // pred_check
          %p4410 = pneg %p135
        $region58: #{tpu_custom_call.1} parent=55 // pred_check_branch
          %4412 = sbr.rel (%p4410) target = $region60
        $region59: #{tpu_custom_call.1} parent=55 // pred_region
          %s4413 = sand.u32 %s120, 1
          %s4414 = scalar_lea.sflag [#allocation4], %s4413
          %s4415 = sand.u32 %s120, 1
          %s4416 = smul.addr %s4415, 96
          %s4417 = scalar_lea.vmem [#allocation8], %s4416
          %4418 = dma.done %s4414, 1536
        $region60: #{tpu_custom_call.1} parent=55 // pred_fallthru
          _
      $region56: #{tpu_custom_call.1} parent=5 // pred_fallthru
        _
    $region6: #{tpu_custom_call.1} parent=1 // loop_footer
      %s21 = sadd.s32 1, %s17
    $region7: #{tpu_custom_call.1} parent=1 // loop_footer_branch
      %16 = sbr.rel target = $region3
    $region8: #{tpu_custom_call.1} parent=1 // loop_exit
      _
    %4419 = vsyncpa [#allocation3], 1
    %s4420 = scalar_lea.sflag [#allocation3], 1
    %4421 = vsyncpa %s4420, 1
    %4422 = vsyncpa [#allocation6], 1
    %4423 = vsyncpa [#allocation4], 1
    %s4424 = scalar_lea.sflag [#allocation4], 1
    %4425 = vsyncpa %s4424, 1

</llo_original>
